<compile_context>
chip_gen: v6e
topology: v6e:2x2x1
jax: 0.10.0
libtpu: 0.0.40
codegen_flags: <defaults>
</compile_context>

<pallas_src>
import jax
import jax.numpy as jnp
from jax.experimental import pallas as pl
from jax.experimental.pallas import tpu as pltpu


def _round_up(x, m):
    return ((x + m - 1) // m) * m


def _pad2(a, rows, cols, dtype):
    a = a.astype(dtype)
    return jnp.pad(a, ((0, rows - a.shape[0]), (0, cols - a.shape[1])))


def _const_spec(shape, index_map):
    # Resident blocks (never re-fetched): request a single buffer so the
    # default double-buffering doesn't waste VMEM. Fall back gracefully on
    # jax versions without pipeline_mode / Buffered.
    try:
        return pl.BlockSpec(shape, index_map, pipeline_mode=pl.Buffered(1))
    except Exception:
        return pl.BlockSpec(shape, index_map)


def _vmem_limit_bytes():
    try:
        cap = int(pltpu.get_tpu_info().vmem_capacity_bytes)
    except Exception:
        cap = 128 * 1024 * 1024
    return min(int(cap * 0.75), 100 * 1024 * 1024)


# ----------------------------------------------------------------------------
# Kernels
# ----------------------------------------------------------------------------
def _supcon_resident_kernel(x_ref, wbb_ref, bbb_ref, w1_ref, bnb_ref,
                            w2_ref, b2_ref, out_ref):
    # Whole forward for one batch tile; all weights resident in VMEM (bf16).
    # x_ref:   [tm, Dp]  bf16   flattened input tile
    # wbb_ref: [Dp, NFp] bf16   synthetic backbone weight (pre-transposed)
    # bbb_ref: [1, NFp]  f32    backbone bias
    # w1_ref:  [NFp,HIDp] bf16  head Linear-1 weight * BN scale (fused)
    # bnb_ref: [1, HIDp] f32    fused (b1 - mean)*scale + beta shift
    # w2_ref:  [HIDp,OUTp] bf16 head Linear-2 weight
    # b2_ref:  [1, OUTp] f32
    feat = jnp.dot(x_ref[...], wbb_ref[...], preferred_element_type=jnp.float32)
    feat = jnp.maximum(feat + bbb_ref[...], 0.0)
    h = jnp.dot(feat.astype(jnp.bfloat16), w1_ref[...],
                preferred_element_type=jnp.float32)
    h = jnp.maximum(h + bnb_ref[...], 0.0)
    out = jnp.dot(h.astype(jnp.bfloat16), w2_ref[...],
                  preferred_element_type=jnp.float32)
    out_ref[...] = (out + b2_ref[...]).astype(out_ref.dtype)


def _supcon_tiled_kernel(x_ref, wbb_ref, bbb_ref, w1_ref, bnb_ref,
                         w2_ref, b2_ref, out_ref, feat_acc):
    # Large-D path: backbone weight is streamed along a contraction grid
    # axis; the feature accumulates in an f32 VMEM scratch and the whole
    # projection head runs fused in the last-k epilogue.
    k = pl.program_id(1)

    @pl.when(k == 0)
    def _():
        feat_acc[...] = jnp.zeros_like(feat_acc)

    feat_acc[...] += jnp.dot(x_ref[...], wbb_ref[...],
                             preferred_element_type=jnp.float32)

    @pl.when(k == pl.num_programs(1) - 1)
    def _():
        feat = jnp.maximum(feat_acc[...] + bbb_ref[...], 0.0)
        h = jnp.dot(feat.astype(jnp.bfloat16), w1_ref[...],
                    preferred_element_type=jnp.float32)
        h = jnp.maximum(h + bnb_ref[...], 0.0)
        out = jnp.dot(h.astype(jnp.bfloat16), w2_ref[...],
                      preferred_element_type=jnp.float32)
        out_ref[...] = (out + b2_ref[...]).astype(out_ref.dtype)


# ----------------------------------------------------------------------------
# Wrapper
# ----------------------------------------------------------------------------
def prepare_supcon_params(w_backbone, b_backbone, w1, b1, bn_gamma, bn_beta,
                          bn_mean, bn_var, w2, b2, eps=1e-5, max_tk=1024,
                          resident_weight_budget=24 * 1024 * 1024,
                          force_tiled=False):
    """Pad / transpose / fold the static weights ONCE (not per forward)."""
    f32, bf16 = jnp.float32, jnp.bfloat16
    NF, D = int(w_backbone.shape[0]), int(w_backbone.shape[1])
    HID = int(w1.shape[0])
    OUT = int(w2.shape[0])

    NFp = _round_up(NF, 128)
    HIDp = _round_up(HID, 128)
    OUTp = _round_up(OUT, 128)

    # Resident path if the bf16 backbone + head weights comfortably fit VMEM.
    Dp_res = _round_up(D, 128)
    resident_bytes = (Dp_res * NFp + NFp * HIDp + HIDp * OUTp) * 2
    resident = (not force_tiled) and (resident_bytes <= resident_weight_budget)

    if resident:
        tk = Dp_res
        Dp = Dp_res
    else:
        tk = min(max_tk, _round_up(D, 128))
        Dp = _round_up(D, tk)

    # Backbone weight pre-transposed to [D, NF], zero padded, bf16.
    wbb_t = _pad2(w_backbone.T, Dp, NFp, bf16)
    bbb_p = _pad2(b_backbone[None, :], 1, NFp, f32)

    # Head Linear-1 fused with eval-mode BatchNorm1d:
    #   scale = gamma / sqrt(var + eps)
    #   w1'   = w1.T * scale          (per-output-channel column scale)
    #   bnb   = (b1 - mean) * scale + beta
    # Padded columns are zero everywhere, so padded lanes stay exactly zero
    # through ReLU and the final Linear.
    bn_scale = bn_gamma.astype(f32) / jnp.sqrt(bn_var.astype(f32) + eps)
    w1_scaled = w1.T.astype(f32) * bn_scale[None, :]
    bnb = (b1.astype(f32) - bn_mean.astype(f32)) * bn_scale + bn_beta.astype(f32)
    w1_t = _pad2(w1_scaled, NFp, HIDp, bf16)
    bnb_p = _pad2(bnb[None, :], 1, HIDp, f32)

    w2_t = _pad2(w2.T, HIDp, OUTp, bf16)
    b2_p = _pad2(b2[None, :], 1, OUTp, f32)

    return dict(D=D, Dp=Dp, tk=tk, NFp=NFp, HIDp=HIDp, OUTp=OUTp, OUT=OUT,
                resident=resident,
                wbb_t=wbb_t, bbb_p=bbb_p, w1_t=w1_t, bnb_p=bnb_p,
                w2_t=w2_t, b2_p=b2_p)


def supcon_forward(x_nchw, params):
    """Forward of supcon_Model: returns the SupCon projection [B, 128]."""
    f32, bf16 = jnp.float32, jnp.bfloat16
    B = x_nchw.shape[0]
    Dp, tk = params["Dp"], params["tk"]
    NFp, HIDp, OUTp = params["NFp"], params["HIDp"], params["OUTp"]

    # Batch tile: 256 fills the v6e/v7x 256-wide MXU M dimension; with
    # multiple batch tiles the "parallel" axis shards across v7x TensorCores.
    tm = min(256, _round_up(B, 8))
    Bp = _round_up(B, tm)

    x_p = _pad2(x_nchw.reshape(B, -1), Bp, Dp, bf16)

    nbi = Bp // tm
    vmem_limit = _vmem_limit_bytes()

    if params["resident"]:
        grid = (nbi,)
        in_specs = [
            pl.BlockSpec((tm, Dp), lambda i: (i, 0)),         # x tile (streamed)
            _const_spec((Dp, NFp), lambda i: (0, 0)),         # backbone W (resident)
            _const_spec((1, NFp), lambda i: (0, 0)),          # backbone bias
            _const_spec((NFp, HIDp), lambda i: (0, 0)),       # head W1 * bn_scale
            _const_spec((1, HIDp), lambda i: (0, 0)),         # fused BN/bias shift
            _const_spec((HIDp, OUTp), lambda i: (0, 0)),      # head W2
            _const_spec((1, OUTp), lambda i: (0, 0)),         # head b2
        ]
        out_spec = pl.BlockSpec((tm, OUTp), lambda i: (i, 0))
        kernel = _supcon_resident_kernel
        scratch = []
        dims = ("parallel",)
    else:
        grid = (nbi, Dp // tk)
        in_specs = [
            pl.BlockSpec((tm, tk), lambda i, k: (i, k)),      # x tile
            pl.BlockSpec((tk, NFp), lambda i, k: (k, 0)),     # backbone W stream
            _const_spec((1, NFp), lambda i, k: (0, 0)),
            _const_spec((NFp, HIDp), lambda i, k: (0, 0)),
            _const_spec((1, HIDp), lambda i, k: (0, 0)),
            _const_spec((HIDp, OUTp), lambda i, k: (0, 0)),
            _const_spec((1, OUTp), lambda i, k: (0, 0)),
        ]
        out_spec = pl.BlockSpec((tm, OUTp), lambda i, k: (i, 0))
        kernel = _supcon_tiled_kernel
        scratch = [pltpu.VMEM((tm, NFp), jnp.float32)]
        dims = ("parallel", "arbitrary")

    out_p = pl.pallas_call(
        kernel,
        out_shape=jax.ShapeDtypeStruct((Bp, OUTp), f32),
        grid_spec=pltpu.PrefetchScalarGridSpec(
            num_scalar_prefetch=0,
            grid=grid,
            in_specs=in_specs,
            out_specs=out_spec,
            scratch_shapes=scratch,
        ),
        compiler_params=pltpu.CompilerParams(
            dimension_semantics=dims,
            vmem_limit_bytes=vmem_limit,
        ),
    )(x_p, params["wbb_t"], params["bbb_p"], params["w1_t"],
      params["bnb_p"], params["w2_t"], params["b2_p"])

    return out_p[:B, :params["OUT"]]


# ----------------------------------------------------------------------------
# Test
# ----------------------------------------------------------------------------
if __name__ == "__main__":
    # Small shapes: batch=2, channels=4, spatial=16x16, n_features=512,
    # head = Linear(512, 2048) -> BN -> ReLU -> Linear(2048, 128).
    B, C, H, W = 2, 4, 16, 16
    D = C * H * W
    N_FEATURES = 512
    HIDDEN = 2048
    OUT_DIM = 128
    EPS = 1e-5

    key = jax.random.PRNGKey(0)
    (kx, kw0, kb0, kw1, kb1, kg, kbeta, kmu, kvar, kw2, kb2) = jax.random.split(key, 11)

    x = jax.random.normal(kx, (B, C, H, W), dtype=jnp.float32)

    # Synthetic backbone parameters (stand-in for the timm feature extractor).
    w_backbone = jax.random.normal(kw0, (N_FEATURES, D), dtype=jnp.float32) * 0.02
    b_backbone = jax.random.normal(kb0, (N_FEATURES,), dtype=jnp.float32) * 0.02

    # Projection head parameters (PyTorch Linear layout [out, in]).
    w1 = jax.random.normal(kw1, (HIDDEN, N_FEATURES), dtype=jnp.float32) * 0.02
    b1 = jax.random.normal(kb1, (HIDDEN,), dtype=jnp.float32) * 0.02
    bn_gamma = 1.0 + 0.1 * jax.random.normal(kg, (HIDDEN,), dtype=jnp.float32)
    bn_beta = 0.1 * jax.random.normal(kbeta, (HIDDEN,), dtype=jnp.float32)
    bn_mean = 0.1 * jax.random.normal(kmu, (HIDDEN,), dtype=jnp.float32)
    bn_var = 0.5 + jnp.abs(jax.random.normal(kvar, (HIDDEN,), dtype=jnp.float32))
    w2 = jax.random.normal(kw2, (OUT_DIM, HIDDEN), dtype=jnp.float32) * 0.02
    b2 = jax.random.normal(kb2, (OUT_DIM,), dtype=jnp.float32) * 0.02

    # Plain-JAX f32 reference (high-precision matmuls).
    mm = lambda a, b: jnp.dot(a, b, precision=jax.lax.Precision.HIGHEST)
    feat_ref = jnp.maximum(mm(x.reshape(B, D), w_backbone.T) + b_backbone, 0.0)
    h_ref = mm(feat_ref, w1.T) + b1
    h_ref = (h_ref - bn_mean) / jnp.sqrt(bn_var + EPS) * bn_gamma + bn_beta
    h_ref = jnp.maximum(h_ref, 0.0)
    out_ref = mm(h_ref, w2.T) + b2

    # --- resident (single grid axis) path: D is small here ------------------
    params_res = prepare_supcon_params(
        w_backbone, b_backbone, w1, b1, bn_gamma, bn_beta, bn_mean, bn_var,
        w2, b2, eps=EPS)
    assert params_res["resident"]
    out_res = supcon_forward(x, params_res)
    jax.block_until_ready(out_res)

    # --- tiled (contraction grid axis) path: forced, to exercise large-D ----
    params_tiled = prepare_supcon_params(
        w_backbone, b_backbone, w1, b1, bn_gamma, bn_beta, bn_mean, bn_var,
        w2, b2, eps=EPS, force_tiled=True, max_tk=256)
    assert not params_tiled["resident"]
    out_tiled = supcon_forward(x, params_tiled)
    jax.block_until_ready(out_tiled)

    # bf16 matmuls vs f32 HIGHEST reference -> looser tolerance than pure f32.
    tol = dict(atol=3e-2, rtol=3e-2)
    assert out_res.shape == (B, OUT_DIM)
    assert out_tiled.shape == (B, OUT_DIM)
    assert jnp.allclose(out_res, out_ref, **tol), (
        "resident max err", float(jnp.max(jnp.abs(out_res - out_ref))))
    assert jnp.allclose(out_tiled, out_ref, **tol), (
        "tiled max err", float(jnp.max(jnp.abs(out_tiled - out_ref))))

    print("KERNEL_OK")
</pallas_src>

<mosaic_0001>
module attributes {stable_mosaic.version = 11 : i64} {
  func.func @_supcon_resident_kernel(%arg0: i32, %arg1: memref<8x1024xbf16, #tpu.memory_space<vmem>>, %arg2: memref<1024x512xbf16, #tpu.memory_space<vmem>>, %arg3: memref<1x512xf32, #tpu.memory_space<vmem>>, %arg4: memref<512x2048xbf16, #tpu.memory_space<vmem>>, %arg5: memref<1x2048xf32, #tpu.memory_space<vmem>>, %arg6: memref<2048x128xbf16, #tpu.memory_space<vmem>>, %arg7: memref<1x128xf32, #tpu.memory_space<vmem>>, %arg8: memref<8x128xf32, #tpu.memory_space<vmem>>) attributes {dimension_semantics = [#tpu.dimension_semantics<parallel>], iteration_bounds = array<i64: 1>, scalar_prefetch = 0 : i64, scratch_operands = 0 : i64, tpu.core_type = #tpu.core_type<tc>, window_params = [{transform_indices = @transform_0, window_bounds = array<i64: 8, 1024>}, {pipeline_mode = #tpu.pipeline_mode<synchronous>, transform_indices = @transform_1, window_bounds = array<i64: 1024, 512>}, {pipeline_mode = #tpu.pipeline_mode<synchronous>, transform_indices = @transform_2, window_bounds = array<i64: 1, 512>}, {pipeline_mode = #tpu.pipeline_mode<synchronous>, transform_indices = @transform_3, window_bounds = array<i64: 512, 2048>}, {pipeline_mode = #tpu.pipeline_mode<synchronous>, transform_indices = @transform_4, window_bounds = array<i64: 1, 2048>}, {pipeline_mode = #tpu.pipeline_mode<synchronous>, transform_indices = @transform_5, window_bounds = array<i64: 2048, 128>}, {pipeline_mode = #tpu.pipeline_mode<synchronous>, transform_indices = @transform_6, window_bounds = array<i64: 1, 128>}, {transform_indices = @transform_7, window_bounds = array<i64: 8, 128>}]} {
    %c0 = arith.constant 0 : index
    %c0_0 = arith.constant 0 : index
    %0 = vector.load %arg1[%c0, %c0_0] : memref<8x1024xbf16, #tpu.memory_space<vmem>>, vector<8x1024xbf16>
    %c0_1 = arith.constant 0 : index
    %c0_2 = arith.constant 0 : index
    %1 = vector.load %arg2[%c0_1, %c0_2] : memref<1024x512xbf16, #tpu.memory_space<vmem>>, vector<1024x512xbf16>
    %cst = arith.constant dense<0.000000e+00> : vector<8x512xf32>
    %2 = tpu.matmul %0, %1, %cst {dimension_numbers = #tpu.dot_dimension_numbers<[1], [0], [0], [1], [0, 0, 1, 1], [], []>} : vector<8x1024xbf16>, vector<1024x512xbf16>, vector<8x512xf32> -> vector<8x512xf32>
    %c0_3 = arith.constant 0 : index
    %c0_4 = arith.constant 0 : index
    %3 = vector.load %arg3[%c0_3, %c0_4] : memref<1x512xf32, #tpu.memory_space<vmem>>, vector<1x512xf32>
    %4 = vector.broadcast %3 : vector<1x512xf32> to vector<8x512xf32>
    %5 = arith.addf %2, %4 : vector<8x512xf32>
    %cst_5 = arith.constant 0.000000e+00 : f32
    %6 = vector.broadcast %cst_5 : f32 to vector<8x512xf32>
    %7 = arith.maximumf %5, %6 : vector<8x512xf32>
    %8 = arith.truncf %7 : vector<8x512xf32> to vector<8x512xbf16>
    %c0_6 = arith.constant 0 : index
    %c0_7 = arith.constant 0 : index
    %9 = vector.load %arg4[%c0_6, %c0_7] : memref<512x2048xbf16, #tpu.memory_space<vmem>>, vector<512x2048xbf16>
    %cst_8 = arith.constant dense<0.000000e+00> : vector<8x2048xf32>
    %10 = tpu.matmul %8, %9, %cst_8 {dimension_numbers = #tpu.dot_dimension_numbers<[1], [0], [0], [1], [0, 0, 1, 1], [], []>} : vector<8x512xbf16>, vector<512x2048xbf16>, vector<8x2048xf32> -> vector<8x2048xf32>
    %c0_9 = arith.constant 0 : index
    %c0_10 = arith.constant 0 : index
    %11 = vector.load %arg5[%c0_9, %c0_10] : memref<1x2048xf32, #tpu.memory_space<vmem>>, vector<1x2048xf32>
    %12 = vector.broadcast %11 : vector<1x2048xf32> to vector<8x2048xf32>
    %13 = arith.addf %10, %12 : vector<8x2048xf32>
    %cst_11 = arith.constant 0.000000e+00 : f32
    %14 = vector.broadcast %cst_11 : f32 to vector<8x2048xf32>
    %15 = arith.maximumf %13, %14 : vector<8x2048xf32>
    %16 = arith.truncf %15 : vector<8x2048xf32> to vector<8x2048xbf16>
    %c0_12 = arith.constant 0 : index
    %c0_13 = arith.constant 0 : index
    %17 = vector.load %arg6[%c0_12, %c0_13] : memref<2048x128xbf16, #tpu.memory_space<vmem>>, vector<2048x128xbf16>
    %cst_14 = arith.constant dense<0.000000e+00> : vector<8x128xf32>
    %18 = tpu.matmul %16, %17, %cst_14 {dimension_numbers = #tpu.dot_dimension_numbers<[1], [0], [0], [1], [0, 0, 1, 1], [], []>} : vector<8x2048xbf16>, vector<2048x128xbf16>, vector<8x128xf32> -> vector<8x128xf32>
    %c0_15 = arith.constant 0 : index
    %c0_16 = arith.constant 0 : index
    %19 = vector.load %arg7[%c0_15, %c0_16] : memref<1x128xf32, #tpu.memory_space<vmem>>, vector<1x128xf32>
    %20 = vector.broadcast %19 : vector<1x128xf32> to vector<8x128xf32>
    %21 = arith.addf %18, %20 : vector<8x128xf32>
    %c0_17 = arith.constant 0 : index
    %c0_18 = arith.constant 0 : index
    %22 = vector.load %arg8[%c0_17, %c0_18] : memref<8x128xf32, #tpu.memory_space<vmem>>, vector<8x128xf32>
    tpu.vector_store %arg8[%c0_17, %c0_18], %21 {strides = array<i32>} : memref<8x128xf32, #tpu.memory_space<vmem>>, vector<8x128xf32>,
    return
  }
  func.func @transform_0(%arg0: i32) -> (i32, i32) {
    %c0_i32 = arith.constant 0 : i32
    %c0_i32_0 = arith.constant 0 : i32
    return %arg0, %c0_i32 : i32, i32
  }
  func.func @transform_1(%arg0: i32) -> (i32, i32) {
    %c0_i32 = arith.constant 0 : i32
    %c0_i32_0 = arith.constant 0 : i32
    %c0_i32_1 = arith.constant 0 : i32
    return %c0_i32, %c0_i32_0 : i32, i32
  }
  func.func @transform_2(%arg0: i32) -> (i32, i32) {
    %c0_i32 = arith.constant 0 : i32
    %c0_i32_0 = arith.constant 0 : i32
    %c0_i32_1 = arith.constant 0 : i32
    return %c0_i32, %c0_i32_0 : i32, i32
  }
  func.func @transform_3(%arg0: i32) -> (i32, i32) {
    %c0_i32 = arith.constant 0 : i32
    %c0_i32_0 = arith.constant 0 : i32
    %c0_i32_1 = arith.constant 0 : i32
    return %c0_i32, %c0_i32_0 : i32, i32
  }
  func.func @transform_4(%arg0: i32) -> (i32, i32) {
    %c0_i32 = arith.constant 0 : i32
    %c0_i32_0 = arith.constant 0 : i32
    %c0_i32_1 = arith.constant 0 : i32
    return %c0_i32, %c0_i32_0 : i32, i32
  }
  func.func @transform_5(%arg0: i32) -> (i32, i32) {
    %c0_i32 = arith.constant 0 : i32
    %c0_i32_0 = arith.constant 0 : i32
    %c0_i32_1 = arith.constant 0 : i32
    return %c0_i32, %c0_i32_0 : i32, i32
  }
  func.func @transform_6(%arg0: i32) -> (i32, i32) {
    %c0_i32 = arith.constant 0 : i32
    %c0_i32_0 = arith.constant 0 : i32
    %c0_i32_1 = arith.constant 0 : i32
    return %c0_i32, %c0_i32_0 : i32, i32
  }
  func.func @transform_7(%arg0: i32) -> (i32, i32) {
    %c0_i32 = arith.constant 0 : i32
    %c0_i32_0 = arith.constant 0 : i32
    return %arg0, %c0_i32 : i32, i32
  }
}

</mosaic_0001>

<llo_original>
// kernel: tpu_custom_call.1
$region0: #{tpu_custom_call.1}
  #allocation0 [shape = 'u32[]', space=smem, size = 0x4, offset = 0x4, fixed_abs, tag = 'smem constant byte address 0x4 - core index']
  #allocation1 [shape = 'u32[144,128]{1,0:T(1,128)}', space=vmem, size = 0x12000, scoped, tag = 'internal scratch']
  %s0 = inlined_call_operand.hbm [shape: bf16[8,1024], index: 0, kind: input, shape index: {}]
  %s1 = inlined_call_operand.hbm [shape: bf16[1024,512], index: 1, kind: input, shape index: {}]
  %s2 = inlined_call_operand.hbm [shape: f32[1,512], index: 2, kind: input, shape index: {}]
  %s3 = inlined_call_operand.hbm [shape: bf16[512,2048], index: 3, kind: input, shape index: {}]
  %s4 = inlined_call_operand.hbm [shape: f32[1,2048], index: 4, kind: input, shape index: {}]
  %s5 = inlined_call_operand.hbm [shape: bf16[2048,128], index: 5, kind: input, shape index: {}]
  %s6 = inlined_call_operand.hbm [shape: f32[1,128], index: 6, kind: input, shape index: {}]
  %s7 = inlined_call_operand.hbm [shape: f32[8,128], index: 7, kind: output, shape index: {}]
  %s8 = sld [smem:[#allocation0]]
  $region66: #{tpu_custom_call.1} parent=0
    _
  %s10 = ssub.s32 1, %s8
  %s11 = scalar_select 0, %s10, %s8
  $region1: #{tpu_custom_call.1} parent=0
    #allocation2 [shape = 'u8[16384]{0}', space=vmem, size = 0x4000, scoped, tag = 'input window, operand 0, single buffered']
    #allocation3 [shape = 's32[1]{0}', space=sflag, size = 0x4, scoped, tag = 'scoped memory for tpu_custom_call.1']
    #allocation4 [shape = 's32[1]{0}', space=sflag, size = 0x4, scoped, tag = 'scoped memory for tpu_custom_call.1']
    #allocation5 [shape = 'u8[1048576]{0}', space=vmem, size = 0x100000, scoped, tag = 'input window, operand 1, single buffered']
    #allocation6 [shape = 's32[1]{0}', space=sflag, size = 0x4, scoped, tag = 'scoped memory for tpu_custom_call.1']
    #allocation7 [shape = 'u8[2048]{0}', space=vmem, size = 0x800, scoped, tag = 'input window, operand 2, single buffered']
    #allocation8 [shape = 'u8[2097152]{0}', space=vmem, size = 0x200000, scoped, tag = 'input window, operand 3, single buffered']
    #allocation9 [shape = 's32[1]{0}', space=sflag, size = 0x4, scoped, tag = 'scoped memory for tpu_custom_call.1']
    #allocation10 [shape = 'u8[8192]{0}', space=vmem, size = 0x2000, scoped, tag = 'input window, operand 4, single buffered']
    #allocation11 [shape = 'u8[524288]{0}', space=vmem, size = 0x80000, scoped, tag = 'input window, operand 5, single buffered']
    #allocation12 [shape = 's32[1]{0}', space=sflag, size = 0x4, scoped, tag = 'scoped memory for tpu_custom_call.1']
    #allocation13 [shape = 'u8[512]{0}', space=vmem, size = 0x400, scoped, tag = 'input window, operand 6, single buffered']
    #allocation14 [shape = 'u8[4096]{0}', space=vmem, size = 0x1000, scoped, tag = 'output window, operand 0, single buffered']
    %12 = vsyncpa [#allocation3], 0
    %13 = vsyncpa [#allocation6], 0
    %14 = vsyncpa [#allocation9], 0
    %15 = vsyncpa [#allocation12], 0
    %16 = vsyncpa [#allocation4], 0
    // Predicated region
    $region2: #{tpu_custom_call.1} parent=1 // pred_check
      _
    $region3: #{tpu_custom_call.1} parent=1 // pred_check_branch
      %18 = sbr.rel (0) target = $region5
    $region4: #{tpu_custom_call.1} parent=1 // pred_region
      %s20 = ssub.s32 512, 512
      %21 = vsyncadd [#allocation3], %s20
      %s23 = sshll.u32 [#allocation2], 4
      %s24 = int_to_ptr.vmem [resolvable:$true] %s23
      %26 = dma.hbm_to_vmem [thread:$0]  %s0, 512, %s24, [#allocation3]
    $region5: #{tpu_custom_call.1} parent=1 // pred_fallthru
      _
    // Predicated region
    $region6: #{tpu_custom_call.1} parent=1 // pred_check
      _
    $region7: #{tpu_custom_call.1} parent=1 // pred_check_branch
      %28 = sbr.rel (0) target = $region9
    $region8: #{tpu_custom_call.1} parent=1 // pred_region
      %s30 = ssub.s32 32768, 32768
      %31 = vsyncadd [#allocation6], %s30
      %s32 = sshll.u32 [#allocation5], 4
      %s33 = int_to_ptr.vmem [resolvable:$true] %s32
      %38 = dma.hbm_to_vmem [thread:$0]  %s1, 32768, %s33, [#allocation6], 256, 256, 16
    $region9: #{tpu_custom_call.1} parent=1 // pred_fallthru
      _
    // Predicated region
    $region10: #{tpu_custom_call.1} parent=1 // pred_check
      _
    $region11: #{tpu_custom_call.1} parent=1 // pred_check_branch
      %40 = sbr.rel (0) target = $region13
    $region12: #{tpu_custom_call.1} parent=1 // pred_region
      %s42 = ssub.s32 64, 64
      %43 = vsyncadd [#allocation6], %s42
      %s45 = sshll.u32 [#allocation7], 4
      %s46 = int_to_ptr.vmem [resolvable:$true] %s45
      %48 = dma.hbm_to_vmem [thread:$0]  %s2, 64, %s46, [#allocation6]
    $region13: #{tpu_custom_call.1} parent=1 // pred_fallthru
      _
    // Predicated region
    $region14: #{tpu_custom_call.1} parent=1 // pred_check
      _
    $region15: #{tpu_custom_call.1} parent=1 // pred_check_branch
      %50 = sbr.rel (0) target = $region17
    $region16: #{tpu_custom_call.1} parent=1 // pred_region
      %s52 = ssub.s32 65536, 65536
      %53 = vsyncadd [#allocation9], %s52
      %s54 = sshll.u32 [#allocation8], 4
      %s55 = int_to_ptr.vmem [resolvable:$true] %s54
      %60 = dma.hbm_to_vmem [thread:$0]  %s3, 65536, %s55, [#allocation9], 1024, 1024, 64
    $region17: #{tpu_custom_call.1} parent=1 // pred_fallthru
      _
    // Predicated region
    $region18: #{tpu_custom_call.1} parent=1 // pred_check
      _
    $region19: #{tpu_custom_call.1} parent=1 // pred_check_branch
      %62 = sbr.rel (0) target = $region21
    $region20: #{tpu_custom_call.1} parent=1 // pred_region
      %s64 = ssub.s32 256, 256
      %65 = vsyncadd [#allocation9], %s64
      %s67 = sshll.u32 [#allocation10], 4
      %s68 = int_to_ptr.vmem [resolvable:$true] %s67
      %70 = dma.hbm_to_vmem [thread:$0]  %s4, 256, %s68, [#allocation9]
    $region21: #{tpu_custom_call.1} parent=1 // pred_fallthru
      _
    // Predicated region
    $region22: #{tpu_custom_call.1} parent=1 // pred_check
      _
    $region23: #{tpu_custom_call.1} parent=1 // pred_check_branch
      %72 = sbr.rel (0) target = $region25
    $region24: #{tpu_custom_call.1} parent=1 // pred_region
      %s74 = ssub.s32 16384, 16384
      %75 = vsyncadd [#allocation12], %s74
      %s76 = sshll.u32 [#allocation11], 4
      %s77 = int_to_ptr.vmem [resolvable:$true] %s76
      %82 = dma.hbm_to_vmem [thread:$0]  %s5, 16384, %s77, [#allocation12], 64, 64, 4
    $region25: #{tpu_custom_call.1} parent=1 // pred_fallthru
      _
    // Predicated region
    $region26: #{tpu_custom_call.1} parent=1 // pred_check
      _
    $region27: #{tpu_custom_call.1} parent=1 // pred_check_branch
      %84 = sbr.rel (0) target = $region29
    $region28: #{tpu_custom_call.1} parent=1 // pred_region
      %s86 = ssub.s32 16, 16
      %87 = vsyncadd [#allocation12], %s86
      %s89 = sshll.u32 [#allocation13], 4
      %s90 = int_to_ptr.vmem [resolvable:$true] %s89
      %92 = dma.hbm_to_vmem [thread:$0]  %s6, 16, %s90, [#allocation12]
    $region29: #{tpu_custom_call.1} parent=1 // pred_fallthru
      _
    // Predicated region
    $region30: #{tpu_custom_call.1} parent=1 // pred_check
      _
    $region31: #{tpu_custom_call.1} parent=1 // pred_check_branch
      %94 = sbr.rel (0) target = $region33
    $region32: #{tpu_custom_call.1} parent=1 // pred_region
      %95 = dma.done [#allocation3], 512
    $region33: #{tpu_custom_call.1} parent=1 // pred_fallthru
      _
    // Predicated region
    $region34: #{tpu_custom_call.1} parent=1 // pred_check
      _
    $region35: #{tpu_custom_call.1} parent=1 // pred_check_branch
      %97 = sbr.rel (0) target = $region37
    $region36: #{tpu_custom_call.1} parent=1 // pred_region
      %98 = dma.done [#allocation6], 32768
    $region37: #{tpu_custom_call.1} parent=1 // pred_fallthru
      _
    // Predicated region
    $region38: #{tpu_custom_call.1} parent=1 // pred_check
      _
    $region39: #{tpu_custom_call.1} parent=1 // pred_check_branch
      %100 = sbr.rel (0) target = $region41
    $region40: #{tpu_custom_call.1} parent=1 // pred_region
      %101 = dma.done [#allocation6], 64
    $region41: #{tpu_custom_call.1} parent=1 // pred_fallthru
      _
    // Predicated region
    $region42: #{tpu_custom_call.1} parent=1 // pred_check
      _
    $region43: #{tpu_custom_call.1} parent=1 // pred_check_branch
      %103 = sbr.rel (0) target = $region45
    $region44: #{tpu_custom_call.1} parent=1 // pred_region
      %104 = dma.done [#allocation9], 65536
    $region45: #{tpu_custom_call.1} parent=1 // pred_fallthru
      _
    // Predicated region
    $region46: #{tpu_custom_call.1} parent=1 // pred_check
      _
    $region47: #{tpu_custom_call.1} parent=1 // pred_check_branch
      %106 = sbr.rel (0) target = $region49
    $region48: #{tpu_custom_call.1} parent=1 // pred_region
      %107 = dma.done [#allocation9], 256
    $region49: #{tpu_custom_call.1} parent=1 // pred_fallthru
      _
    // Predicated region
    $region50: #{tpu_custom_call.1} parent=1 // pred_check
      _
    $region51: #{tpu_custom_call.1} parent=1 // pred_check_branch
      %109 = sbr.rel (0) target = $region53
    $region52: #{tpu_custom_call.1} parent=1 // pred_region
      %110 = dma.done [#allocation12], 16384
    $region53: #{tpu_custom_call.1} parent=1 // pred_fallthru
      _
    // Predicated region
    $region54: #{tpu_custom_call.1} parent=1 // pred_check
      _
    $region55: #{tpu_custom_call.1} parent=1 // pred_check_branch
      %112 = sbr.rel (0) target = $region57
    $region56: #{tpu_custom_call.1} parent=1 // pred_region
      %113 = dma.done [#allocation12], 16
    $region57: #{tpu_custom_call.1} parent=1 // pred_fallthru
      _
    %v115 = vld [vmem:[#allocation2] sm:$0xff]
    %v116 = vld [vmem:[#allocation2 + $0x8] sm:$0xff]
    %v117 = vld [vmem:[#allocation2 + $0x10] sm:$0xff]
    %v118 = vld [vmem:[#allocation2 + $0x18] sm:$0xff]
    %v119 = vld [vmem:[#allocation5] sm:$0xff]
    %v120 = vld [vmem:[#allocation5 + $0x8] sm:$0xff]
    %v121 = vld [vmem:[#allocation5 + $0x10] sm:$0xff]
    %v122 = vld [vmem:[#allocation5 + $0x18] sm:$0xff]
    %v123 = vld [vmem:[#allocation5 + $0x20] sm:$0xff]
    %v124 = vld [vmem:[#allocation5 + $0x28] sm:$0xff]
    %v125 = vld [vmem:[#allocation5 + $0x30] sm:$0xff]
    %v126 = vld [vmem:[#allocation5 + $0x38] sm:$0xff]
    %v127 = vld [vmem:[#allocation5 + $0x40] sm:$0xff]
    %v128 = vld [vmem:[#allocation5 + $0x48] sm:$0xff]
    %v129 = vld [vmem:[#allocation5 + $0x50] sm:$0xff]
    %v130 = vld [vmem:[#allocation5 + $0x58] sm:$0xff]
    %v131 = vld [vmem:[#allocation5 + $0x60] sm:$0xff]
    %v132 = vld [vmem:[#allocation5 + $0x68] sm:$0xff]
    %v133 = vld [vmem:[#allocation5 + $0x70] sm:$0xff]
    %v134 = vld [vmem:[#allocation5 + $0x78] sm:$0xff]
    %v135 = vld [vmem:[#allocation5 + $0x80] sm:$0xff]
    %v136 = vld [vmem:[#allocation5 + $0x88] sm:$0xff]
    %v137 = vld [vmem:[#allocation5 + $0x90] sm:$0xff]
    %v138 = vld [vmem:[#allocation5 + $0x98] sm:$0xff]
    %v139 = vld [vmem:[#allocation5 + $0xa0] sm:$0xff]
    %v140 = vld [vmem:[#allocation5 + $0xa8] sm:$0xff]
    %v141 = vld [vmem:[#allocation5 + $0xb0] sm:$0xff]
    %v142 = vld [vmem:[#allocation5 + $0xb8] sm:$0xff]
    %v143 = vld [vmem:[#allocation5 + $0xc0] sm:$0xff]
    %v144 = vld [vmem:[#allocation5 + $0xc8] sm:$0xff]
    %v145 = vld [vmem:[#allocation5 + $0xd0] sm:$0xff]
    %v146 = vld [vmem:[#allocation5 + $0xd8] sm:$0xff]
    %v147 = vld [vmem:[#allocation5 + $0xe0] sm:$0xff]
    %v148 = vld [vmem:[#allocation5 + $0xe8] sm:$0xff]
    %v149 = vld [vmem:[#allocation5 + $0xf0] sm:$0xff]
    %v150 = vld [vmem:[#allocation5 + $0xf8] sm:$0xff]
    %v151 = vld [vmem:[#allocation5 + $0x100] sm:$0xff]
    %v152 = vld [vmem:[#allocation5 + $0x108] sm:$0xff]
    %v153 = vld [vmem:[#allocation5 + $0x110] sm:$0xff]
    %v154 = vld [vmem:[#allocation5 + $0x118] sm:$0xff]
    %v155 = vld [vmem:[#allocation5 + $0x120] sm:$0xff]
    %v156 = vld [vmem:[#allocation5 + $0x128] sm:$0xff]
    %v157 = vld [vmem:[#allocation5 + $0x130] sm:$0xff]
    %v158 = vld [vmem:[#allocation5 + $0x138] sm:$0xff]
    %v159 = vld [vmem:[#allocation5 + $0x140] sm:$0xff]
    %v160 = vld [vmem:[#allocation5 + $0x148] sm:$0xff]
    %v161 = vld [vmem:[#allocation5 + $0x150] sm:$0xff]
    %v162 = vld [vmem:[#allocation5 + $0x158] sm:$0xff]
    %v163 = vld [vmem:[#allocation5 + $0x160] sm:$0xff]
    %v164 = vld [vmem:[#allocation5 + $0x168] sm:$0xff]
    %v165 = vld [vmem:[#allocation5 + $0x170] sm:$0xff]
    %v166 = vld [vmem:[#allocation5 + $0x178] sm:$0xff]
    %v167 = vld [vmem:[#allocation5 + $0x180] sm:$0xff]
    %v168 = vld [vmem:[#allocation5 + $0x188] sm:$0xff]
    %v169 = vld [vmem:[#allocation5 + $0x190] sm:$0xff]
    %v170 = vld [vmem:[#allocation5 + $0x198] sm:$0xff]
    %v171 = vld [vmem:[#allocation5 + $0x1a0] sm:$0xff]
    %v172 = vld [vmem:[#allocation5 + $0x1a8] sm:$0xff]
    %v173 = vld [vmem:[#allocation5 + $0x1b0] sm:$0xff]
    %v174 = vld [vmem:[#allocation5 + $0x1b8] sm:$0xff]
    %v175 = vld [vmem:[#allocation5 + $0x1c0] sm:$0xff]
    %v176 = vld [vmem:[#allocation5 + $0x1c8] sm:$0xff]
    %v177 = vld [vmem:[#allocation5 + $0x1d0] sm:$0xff]
    %v178 = vld [vmem:[#allocation5 + $0x1d8] sm:$0xff]
    %v179 = vld [vmem:[#allocation5 + $0x1e0] sm:$0xff]
    %v180 = vld [vmem:[#allocation5 + $0x1e8] sm:$0xff]
    %v181 = vld [vmem:[#allocation5 + $0x1f0] sm:$0xff]
    %v182 = vld [vmem:[#allocation5 + $0x1f8] sm:$0xff]
    %v183 = vld [vmem:[#allocation5 + $0x200] sm:$0xff]
    %v184 = vld [vmem:[#allocation5 + $0x208] sm:$0xff]
    %v185 = vld [vmem:[#allocation5 + $0x210] sm:$0xff]
    %v186 = vld [vmem:[#allocation5 + $0x218] sm:$0xff]
    %v187 = vld [vmem:[#allocation5 + $0x220] sm:$0xff]
    %v188 = vld [vmem:[#allocation5 + $0x228] sm:$0xff]
    %v189 = vld [vmem:[#allocation5 + $0x230] sm:$0xff]
    %v190 = vld [vmem:[#allocation5 + $0x238] sm:$0xff]
    %v191 = vld [vmem:[#allocation5 + $0x240] sm:$0xff]
    %v192 = vld [vmem:[#allocation5 + $0x248] sm:$0xff]
    %v193 = vld [vmem:[#allocation5 + $0x250] sm:$0xff]
    %v194 = vld [vmem:[#allocation5 + $0x258] sm:$0xff]
    %v195 = vld [vmem:[#allocation5 + $0x260] sm:$0xff]
    %v196 = vld [vmem:[#allocation5 + $0x268] sm:$0xff]
    %v197 = vld [vmem:[#allocation5 + $0x270] sm:$0xff]
    %v198 = vld [vmem:[#allocation5 + $0x278] sm:$0xff]
    %v199 = vld [vmem:[#allocation5 + $0x280] sm:$0xff]
    %v200 = vld [vmem:[#allocation5 + $0x288] sm:$0xff]
    %v201 = vld [vmem:[#allocation5 + $0x290] sm:$0xff]
    %v202 = vld [vmem:[#allocation5 + $0x298] sm:$0xff]
    %v203 = vld [vmem:[#allocation5 + $0x2a0] sm:$0xff]
    %v204 = vld [vmem:[#allocation5 + $0x2a8] sm:$0xff]
    %v205 = vld [vmem:[#allocation5 + $0x2b0] sm:$0xff]
    %v206 = vld [vmem:[#allocation5 + $0x2b8] sm:$0xff]
    %v207 = vld [vmem:[#allocation5 + $0x2c0] sm:$0xff]
    %v208 = vld [vmem:[#allocation5 + $0x2c8] sm:$0xff]
    %v209 = vld [vmem:[#allocation5 + $0x2d0] sm:$0xff]
    %v210 = vld [vmem:[#allocation5 + $0x2d8] sm:$0xff]
    %v211 = vld [vmem:[#allocation5 + $0x2e0] sm:$0xff]
    %v212 = vld [vmem:[#allocation5 + $0x2e8] sm:$0xff]
    %v213 = vld [vmem:[#allocation5 + $0x2f0] sm:$0xff]
    %v214 = vld [vmem:[#allocation5 + $0x2f8] sm:$0xff]
    %v215 = vld [vmem:[#allocation5 + $0x300] sm:$0xff]
    %v216 = vld [vmem:[#allocation5 + $0x308] sm:$0xff]
    %v217 = vld [vmem:[#allocation5 + $0x310] sm:$0xff]
    %v218 = vld [vmem:[#allocation5 + $0x318] sm:$0xff]
    %v219 = vld [vmem:[#allocation5 + $0x320] sm:$0xff]
    %v220 = vld [vmem:[#allocation5 + $0x328] sm:$0xff]
    %v221 = vld [vmem:[#allocation5 + $0x330] sm:$0xff]
    %v222 = vld [vmem:[#allocation5 + $0x338] sm:$0xff]
    %v223 = vld [vmem:[#allocation5 + $0x340] sm:$0xff]
    %v224 = vld [vmem:[#allocation5 + $0x348] sm:$0xff]
    %v225 = vld [vmem:[#allocation5 + $0x350] sm:$0xff]
    %v226 = vld [vmem:[#allocation5 + $0x358] sm:$0xff]
    %v227 = vld [vmem:[#allocation5 + $0x360] sm:$0xff]
    %v228 = vld [vmem:[#allocation5 + $0x368] sm:$0xff]
    %v229 = vld [vmem:[#allocation5 + $0x370] sm:$0xff]
    %v230 = vld [vmem:[#allocation5 + $0x378] sm:$0xff]
    %v231 = vld [vmem:[#allocation5 + $0x380] sm:$0xff]
    %v232 = vld [vmem:[#allocation5 + $0x388] sm:$0xff]
    %v233 = vld [vmem:[#allocation5 + $0x390] sm:$0xff]
    %v234 = vld [vmem:[#allocation5 + $0x398] sm:$0xff]
    %v235 = vld [vmem:[#allocation5 + $0x3a0] sm:$0xff]
    %v236 = vld [vmem:[#allocation5 + $0x3a8] sm:$0xff]
    %v237 = vld [vmem:[#allocation5 + $0x3b0] sm:$0xff]
    %v238 = vld [vmem:[#allocation5 + $0x3b8] sm:$0xff]
    %v239 = vld [vmem:[#allocation5 + $0x3c0] sm:$0xff]
    %v240 = vld [vmem:[#allocation5 + $0x3c8] sm:$0xff]
    %v241 = vld [vmem:[#allocation5 + $0x3d0] sm:$0xff]
    %v242 = vld [vmem:[#allocation5 + $0x3d8] sm:$0xff]
    %v243 = vld [vmem:[#allocation5 + $0x3e0] sm:$0xff]
    %v244 = vld [vmem:[#allocation5 + $0x3e8] sm:$0xff]
    %v245 = vld [vmem:[#allocation5 + $0x3f0] sm:$0xff]
    %v246 = vld [vmem:[#allocation5 + $0x3f8] sm:$0xff]
    %v247 = vld [vmem:[#allocation5 + $0x400] sm:$0xff]
    %v248 = vld [vmem:[#allocation5 + $0x408] sm:$0xff]
    %v249 = vld [vmem:[#allocation5 + $0x410] sm:$0xff]
    %v250 = vld [vmem:[#allocation5 + $0x418] sm:$0xff]
    %v251 = vld [vmem:[#allocation5 + $0x420] sm:$0xff]
    %v252 = vld [vmem:[#allocation5 + $0x428] sm:$0xff]
    %v253 = vld [vmem:[#allocation5 + $0x430] sm:$0xff]
    %v254 = vld [vmem:[#allocation5 + $0x438] sm:$0xff]
    %v255 = vld [vmem:[#allocation5 + $0x440] sm:$0xff]
    %v256 = vld [vmem:[#allocation5 + $0x448] sm:$0xff]
    %v257 = vld [vmem:[#allocation5 + $0x450] sm:$0xff]
    %v258 = vld [vmem:[#allocation5 + $0x458] sm:$0xff]
    %v259 = vld [vmem:[#allocation5 + $0x460] sm:$0xff]
    %v260 = vld [vmem:[#allocation5 + $0x468] sm:$0xff]
    %v261 = vld [vmem:[#allocation5 + $0x470] sm:$0xff]
    %v262 = vld [vmem:[#allocation5 + $0x478] sm:$0xff]
    %v263 = vld [vmem:[#allocation5 + $0x480] sm:$0xff]
    %v264 = vld [vmem:[#allocation5 + $0x488] sm:$0xff]
    %v265 = vld [vmem:[#allocation5 + $0x490] sm:$0xff]
    %v266 = vld [vmem:[#allocation5 + $0x498] sm:$0xff]
    %v267 = vld [vmem:[#allocation5 + $0x4a0] sm:$0xff]
    %v268 = vld [vmem:[#allocation5 + $0x4a8] sm:$0xff]
    %v269 = vld [vmem:[#allocation5 + $0x4b0] sm:$0xff]
    %v270 = vld [vmem:[#allocation5 + $0x4b8] sm:$0xff]
    %v271 = vld [vmem:[#allocation5 + $0x4c0] sm:$0xff]
    %v272 = vld [vmem:[#allocation5 + $0x4c8] sm:$0xff]
    %v273 = vld [vmem:[#allocation5 + $0x4d0] sm:$0xff]
    %v274 = vld [vmem:[#allocation5 + $0x4d8] sm:$0xff]
    %v275 = vld [vmem:[#allocation5 + $0x4e0] sm:$0xff]
    %v276 = vld [vmem:[#allocation5 + $0x4e8] sm:$0xff]
    %v277 = vld [vmem:[#allocation5 + $0x4f0] sm:$0xff]
    %v278 = vld [vmem:[#allocation5 + $0x4f8] sm:$0xff]
    %v279 = vld [vmem:[#allocation5 + $0x500] sm:$0xff]
    %v280 = vld [vmem:[#allocation5 + $0x508] sm:$0xff]
    %v281 = vld [vmem:[#allocation5 + $0x510] sm:$0xff]
    %v282 = vld [vmem:[#allocation5 + $0x518] sm:$0xff]
    %v283 = vld [vmem:[#allocation5 + $0x520] sm:$0xff]
    %v284 = vld [vmem:[#allocation5 + $0x528] sm:$0xff]
    %v285 = vld [vmem:[#allocation5 + $0x530] sm:$0xff]
    %v286 = vld [vmem:[#allocation5 + $0x538] sm:$0xff]
    %v287 = vld [vmem:[#allocation5 + $0x540] sm:$0xff]
    %v288 = vld [vmem:[#allocation5 + $0x548] sm:$0xff]
    %v289 = vld [vmem:[#allocation5 + $0x550] sm:$0xff]
    %v290 = vld [vmem:[#allocation5 + $0x558] sm:$0xff]
    %v291 = vld [vmem:[#allocation5 + $0x560] sm:$0xff]
    %v292 = vld [vmem:[#allocation5 + $0x568] sm:$0xff]
    %v293 = vld [vmem:[#allocation5 + $0x570] sm:$0xff]
    %v294 = vld [vmem:[#allocation5 + $0x578] sm:$0xff]
    %v295 = vld [vmem:[#allocation5 + $0x580] sm:$0xff]
    %v296 = vld [vmem:[#allocation5 + $0x588] sm:$0xff]
    %v297 = vld [vmem:[#allocation5 + $0x590] sm:$0xff]
    %v298 = vld [vmem:[#allocation5 + $0x598] sm:$0xff]
    %v299 = vld [vmem:[#allocation5 + $0x5a0] sm:$0xff]
    %v300 = vld [vmem:[#allocation5 + $0x5a8] sm:$0xff]
    %v301 = vld [vmem:[#allocation5 + $0x5b0] sm:$0xff]
    %v302 = vld [vmem:[#allocation5 + $0x5b8] sm:$0xff]
    %v303 = vld [vmem:[#allocation5 + $0x5c0] sm:$0xff]
    %v304 = vld [vmem:[#allocation5 + $0x5c8] sm:$0xff]
    %v305 = vld [vmem:[#allocation5 + $0x5d0] sm:$0xff]
    %v306 = vld [vmem:[#allocation5 + $0x5d8] sm:$0xff]
    %v307 = vld [vmem:[#allocation5 + $0x5e0] sm:$0xff]
    %v308 = vld [vmem:[#allocation5 + $0x5e8] sm:$0xff]
    %v309 = vld [vmem:[#allocation5 + $0x5f0] sm:$0xff]
    %v310 = vld [vmem:[#allocation5 + $0x5f8] sm:$0xff]
    %v311 = vld [vmem:[#allocation5 + $0x600] sm:$0xff]
    %v312 = vld [vmem:[#allocation5 + $0x608] sm:$0xff]
    %v313 = vld [vmem:[#allocation5 + $0x610] sm:$0xff]
    %v314 = vld [vmem:[#allocation5 + $0x618] sm:$0xff]
    %v315 = vld [vmem:[#allocation5 + $0x620] sm:$0xff]
    %v316 = vld [vmem:[#allocation5 + $0x628] sm:$0xff]
    %v317 = vld [vmem:[#allocation5 + $0x630] sm:$0xff]
    %v318 = vld [vmem:[#allocation5 + $0x638] sm:$0xff]
    %v319 = vld [vmem:[#allocation5 + $0x640] sm:$0xff]
    %v320 = vld [vmem:[#allocation5 + $0x648] sm:$0xff]
    %v321 = vld [vmem:[#allocation5 + $0x650] sm:$0xff]
    %v322 = vld [vmem:[#allocation5 + $0x658] sm:$0xff]
    %v323 = vld [vmem:[#allocation5 + $0x660] sm:$0xff]
    %v324 = vld [vmem:[#allocation5 + $0x668] sm:$0xff]
    %v325 = vld [vmem:[#allocation5 + $0x670] sm:$0xff]
    %v326 = vld [vmem:[#allocation5 + $0x678] sm:$0xff]
    %v327 = vld [vmem:[#allocation5 + $0x680] sm:$0xff]
    %v328 = vld [vmem:[#allocation5 + $0x688] sm:$0xff]
    %v329 = vld [vmem:[#allocation5 + $0x690] sm:$0xff]
    %v330 = vld [vmem:[#allocation5 + $0x698] sm:$0xff]
    %v331 = vld [vmem:[#allocation5 + $0x6a0] sm:$0xff]
    %v332 = vld [vmem:[#allocation5 + $0x6a8] sm:$0xff]
    %v333 = vld [vmem:[#allocation5 + $0x6b0] sm:$0xff]
    %v334 = vld [vmem:[#allocation5 + $0x6b8] sm:$0xff]
    %v335 = vld [vmem:[#allocation5 + $0x6c0] sm:$0xff]
    %v336 = vld [vmem:[#allocation5 + $0x6c8] sm:$0xff]
    %v337 = vld [vmem:[#allocation5 + $0x6d0] sm:$0xff]
    %v338 = vld [vmem:[#allocation5 + $0x6d8] sm:$0xff]
    %v339 = vld [vmem:[#allocation5 + $0x6e0] sm:$0xff]
    %v340 = vld [vmem:[#allocation5 + $0x6e8] sm:$0xff]
    %v341 = vld [vmem:[#allocation5 + $0x6f0] sm:$0xff]
    %v342 = vld [vmem:[#allocation5 + $0x6f8] sm:$0xff]
    %v343 = vld [vmem:[#allocation5 + $0x700] sm:$0xff]
    %v344 = vld [vmem:[#allocation5 + $0x708] sm:$0xff]
    %v345 = vld [vmem:[#allocation5 + $0x710] sm:$0xff]
    %v346 = vld [vmem:[#allocation5 + $0x718] sm:$0xff]
    %v347 = vld [vmem:[#allocation5 + $0x720] sm:$0xff]
    %v348 = vld [vmem:[#allocation5 + $0x728] sm:$0xff]
    %v349 = vld [vmem:[#allocation5 + $0x730] sm:$0xff]
    %v350 = vld [vmem:[#allocation5 + $0x738] sm:$0xff]
    %v351 = vld [vmem:[#allocation5 + $0x740] sm:$0xff]
    %v352 = vld [vmem:[#allocation5 + $0x748] sm:$0xff]
    %v353 = vld [vmem:[#allocation5 + $0x750] sm:$0xff]
    %v354 = vld [vmem:[#allocation5 + $0x758] sm:$0xff]
    %v355 = vld [vmem:[#allocation5 + $0x760] sm:$0xff]
    %v356 = vld [vmem:[#allocation5 + $0x768] sm:$0xff]
    %v357 = vld [vmem:[#allocation5 + $0x770] sm:$0xff]
    %v358 = vld [vmem:[#allocation5 + $0x778] sm:$0xff]
    %v359 = vld [vmem:[#allocation5 + $0x780] sm:$0xff]
    %v360 = vld [vmem:[#allocation5 + $0x788] sm:$0xff]
    %v361 = vld [vmem:[#allocation5 + $0x790] sm:$0xff]
    %v362 = vld [vmem:[#allocation5 + $0x798] sm:$0xff]
    %v363 = vld [vmem:[#allocation5 + $0x7a0] sm:$0xff]
    %v364 = vld [vmem:[#allocation5 + $0x7a8] sm:$0xff]
    %v365 = vld [vmem:[#allocation5 + $0x7b0] sm:$0xff]
    %v366 = vld [vmem:[#allocation5 + $0x7b8] sm:$0xff]
    %v367 = vld [vmem:[#allocation5 + $0x7c0] sm:$0xff]
    %v368 = vld [vmem:[#allocation5 + $0x7c8] sm:$0xff]
    %v369 = vld [vmem:[#allocation5 + $0x7d0] sm:$0xff]
    %v370 = vld [vmem:[#allocation5 + $0x7d8] sm:$0xff]
    %v371 = vld [vmem:[#allocation5 + $0x7e0] sm:$0xff]
    %v372 = vld [vmem:[#allocation5 + $0x7e8] sm:$0xff]
    %v373 = vld [vmem:[#allocation5 + $0x7f0] sm:$0xff]
    %v374 = vld [vmem:[#allocation5 + $0x7f8] sm:$0xff]
    %v375 = vld [vmem:[#allocation7] sm:$0xf]
    %v377 = vlaneseq
    %v378 = vshrl.u32 %v377, 7
    %v379 = vsub.s32 0, %v378
    %v380 = vrot.slane %v375, %v379
    %v381 = vlaneseq
    %v382 = vshrl.u32 %v381, 7
    %v383 = vsub.s32 1, %v382
    %v384 = vrot.slane %v375, %v383
    %v385 = vlaneseq
    %v386 = vshrl.u32 %v385, 7
    %v387 = vsub.s32 2, %v386
    %v388 = vrot.slane %v375, %v387
    %v389 = vlaneseq
    %v390 = vshrl.u32 %v389, 7
    %v391 = vsub.s32 3, %v390
    %v392 = vrot.slane %v375, %v391
    %v401 = vunpack.c.l.b16 %v115
    %v402 = vunpack.c.h.b16 %v115
    %v403 = vunpack.c.l.b16 %v116
    %v404 = vunpack.c.h.b16 %v116
    %v405 = vunpack.c.l.b16 %v117
    %v406 = vunpack.c.h.b16 %v117
    %v407 = vunpack.c.l.b16 %v118
    %v408 = vunpack.c.h.b16 %v118
    %v409 = vpack.c.b16 %v401, %v401
    %v410 = vpack.c.b16 %v402, %v402
    %v411 = vpack.c.b16 %v403, %v403
    %v412 = vpack.c.b16 %v404, %v404
    %v413 = vpack.c.b16 %v405, %v405
    %v414 = vpack.c.b16 %v406, %v406
    %v415 = vpack.c.b16 %v407, %v407
    %v416 = vpack.c.b16 %v408, %v408
    %v681 = vunpack.c.l.b16 %v119
    %v682 = vunpack.c.h.b16 %v119
    %v683 = vunpack.c.l.b16 %v120
    %v684 = vunpack.c.h.b16 %v120
    %v685 = vunpack.c.l.b16 %v121
    %v686 = vunpack.c.h.b16 %v121
    %v687 = vunpack.c.l.b16 %v122
    %v688 = vunpack.c.h.b16 %v122
    %v689 = vunpack.c.l.b16 %v123
    %v690 = vunpack.c.h.b16 %v123
    %v691 = vunpack.c.l.b16 %v124
    %v692 = vunpack.c.h.b16 %v124
    %v693 = vunpack.c.l.b16 %v125
    %v694 = vunpack.c.h.b16 %v125
    %v695 = vunpack.c.l.b16 %v126
    %v696 = vunpack.c.h.b16 %v126
    %v697 = vunpack.c.l.b16 %v127
    %v698 = vunpack.c.h.b16 %v127
    %v699 = vunpack.c.l.b16 %v128
    %v700 = vunpack.c.h.b16 %v128
    %v701 = vunpack.c.l.b16 %v129
    %v702 = vunpack.c.h.b16 %v129
    %v703 = vunpack.c.l.b16 %v130
    %v704 = vunpack.c.h.b16 %v130
    %v705 = vunpack.c.l.b16 %v131
    %v706 = vunpack.c.h.b16 %v131
    %v707 = vunpack.c.l.b16 %v132
    %v708 = vunpack.c.h.b16 %v132
    %v709 = vunpack.c.l.b16 %v133
    %v710 = vunpack.c.h.b16 %v133
    %v711 = vunpack.c.l.b16 %v134
    %v712 = vunpack.c.h.b16 %v134
    %v713 = vunpack.c.l.b16 %v135
    %v714 = vunpack.c.h.b16 %v135
    %v715 = vunpack.c.l.b16 %v136
    %v716 = vunpack.c.h.b16 %v136
    %v717 = vunpack.c.l.b16 %v137
    %v718 = vunpack.c.h.b16 %v137
    %v719 = vunpack.c.l.b16 %v138
    %v720 = vunpack.c.h.b16 %v138
    %v721 = vunpack.c.l.b16 %v139
    %v722 = vunpack.c.h.b16 %v139
    %v723 = vunpack.c.l.b16 %v140
    %v724 = vunpack.c.h.b16 %v140
    %v725 = vunpack.c.l.b16 %v141
    %v726 = vunpack.c.h.b16 %v141
    %v727 = vunpack.c.l.b16 %v142
    %v728 = vunpack.c.h.b16 %v142
    %v729 = vunpack.c.l.b16 %v143
    %v730 = vunpack.c.h.b16 %v143
    %v731 = vunpack.c.l.b16 %v144
    %v732 = vunpack.c.h.b16 %v144
    %v733 = vunpack.c.l.b16 %v145
    %v734 = vunpack.c.h.b16 %v145
    %v735 = vunpack.c.l.b16 %v146
    %v736 = vunpack.c.h.b16 %v146
    %v737 = vunpack.c.l.b16 %v147
    %v738 = vunpack.c.h.b16 %v147
    %v739 = vunpack.c.l.b16 %v148
    %v740 = vunpack.c.h.b16 %v148
    %v741 = vunpack.c.l.b16 %v149
    %v742 = vunpack.c.h.b16 %v149
    %v743 = vunpack.c.l.b16 %v150
    %v744 = vunpack.c.h.b16 %v150
    %v745 = vunpack.c.l.b16 %v151
    %v746 = vunpack.c.h.b16 %v151
    %v747 = vunpack.c.l.b16 %v152
    %v748 = vunpack.c.h.b16 %v152
    %v749 = vunpack.c.l.b16 %v153
    %v750 = vunpack.c.h.b16 %v153
    %v751 = vunpack.c.l.b16 %v154
    %v752 = vunpack.c.h.b16 %v154
    %v753 = vunpack.c.l.b16 %v155
    %v754 = vunpack.c.h.b16 %v155
    %v755 = vunpack.c.l.b16 %v156
    %v756 = vunpack.c.h.b16 %v156
    %v757 = vunpack.c.l.b16 %v157
    %v758 = vunpack.c.h.b16 %v157
    %v759 = vunpack.c.l.b16 %v158
    %v760 = vunpack.c.h.b16 %v158
    %v761 = vunpack.c.l.b16 %v159
    %v762 = vunpack.c.h.b16 %v159
    %v763 = vunpack.c.l.b16 %v160
    %v764 = vunpack.c.h.b16 %v160
    %v765 = vunpack.c.l.b16 %v161
    %v766 = vunpack.c.h.b16 %v161
    %v767 = vunpack.c.l.b16 %v162
    %v768 = vunpack.c.h.b16 %v162
    %v769 = vunpack.c.l.b16 %v163
    %v770 = vunpack.c.h.b16 %v163
    %v771 = vunpack.c.l.b16 %v164
    %v772 = vunpack.c.h.b16 %v164
    %v773 = vunpack.c.l.b16 %v165
    %v774 = vunpack.c.h.b16 %v165
    %v775 = vunpack.c.l.b16 %v166
    %v776 = vunpack.c.h.b16 %v166
    %v777 = vunpack.c.l.b16 %v167
    %v778 = vunpack.c.h.b16 %v167
    %v779 = vunpack.c.l.b16 %v168
    %v780 = vunpack.c.h.b16 %v168
    %v781 = vunpack.c.l.b16 %v169
    %v782 = vunpack.c.h.b16 %v169
    %v783 = vunpack.c.l.b16 %v170
    %v784 = vunpack.c.h.b16 %v170
    %v785 = vunpack.c.l.b16 %v171
    %v786 = vunpack.c.h.b16 %v171
    %v787 = vunpack.c.l.b16 %v172
    %v788 = vunpack.c.h.b16 %v172
    %v789 = vunpack.c.l.b16 %v173
    %v790 = vunpack.c.h.b16 %v173
    %v791 = vunpack.c.l.b16 %v174
    %v792 = vunpack.c.h.b16 %v174
    %v793 = vunpack.c.l.b16 %v175
    %v794 = vunpack.c.h.b16 %v175
    %v795 = vunpack.c.l.b16 %v176
    %v796 = vunpack.c.h.b16 %v176
    %v797 = vunpack.c.l.b16 %v177
    %v798 = vunpack.c.h.b16 %v177
    %v799 = vunpack.c.l.b16 %v178
    %v800 = vunpack.c.h.b16 %v178
    %v801 = vunpack.c.l.b16 %v179
    %v802 = vunpack.c.h.b16 %v179
    %v803 = vunpack.c.l.b16 %v180
    %v804 = vunpack.c.h.b16 %v180
    %v805 = vunpack.c.l.b16 %v181
    %v806 = vunpack.c.h.b16 %v181
    %v807 = vunpack.c.l.b16 %v182
    %v808 = vunpack.c.h.b16 %v182
    %v809 = vunpack.c.l.b16 %v183
    %v810 = vunpack.c.h.b16 %v183
    %v811 = vunpack.c.l.b16 %v184
    %v812 = vunpack.c.h.b16 %v184
    %v813 = vunpack.c.l.b16 %v185
    %v814 = vunpack.c.h.b16 %v185
    %v815 = vunpack.c.l.b16 %v186
    %v816 = vunpack.c.h.b16 %v186
    %v817 = vunpack.c.l.b16 %v187
    %v818 = vunpack.c.h.b16 %v187
    %v819 = vunpack.c.l.b16 %v188
    %v820 = vunpack.c.h.b16 %v188
    %v821 = vunpack.c.l.b16 %v189
    %v822 = vunpack.c.h.b16 %v189
    %v823 = vunpack.c.l.b16 %v190
    %v824 = vunpack.c.h.b16 %v190
    %v825 = vunpack.c.l.b16 %v191
    %v826 = vunpack.c.h.b16 %v191
    %v827 = vunpack.c.l.b16 %v192
    %v828 = vunpack.c.h.b16 %v192
    %v829 = vunpack.c.l.b16 %v193
    %v830 = vunpack.c.h.b16 %v193
    %v831 = vunpack.c.l.b16 %v194
    %v832 = vunpack.c.h.b16 %v194
    %v833 = vunpack.c.l.b16 %v195
    %v834 = vunpack.c.h.b16 %v195
    %v835 = vunpack.c.l.b16 %v196
    %v836 = vunpack.c.h.b16 %v196
    %v837 = vunpack.c.l.b16 %v197
    %v838 = vunpack.c.h.b16 %v197
    %v839 = vunpack.c.l.b16 %v198
    %v840 = vunpack.c.h.b16 %v198
    %v841 = vunpack.c.l.b16 %v199
    %v842 = vunpack.c.h.b16 %v199
    %v843 = vunpack.c.l.b16 %v200
    %v844 = vunpack.c.h.b16 %v200
    %v845 = vunpack.c.l.b16 %v201
    %v846 = vunpack.c.h.b16 %v201
    %v847 = vunpack.c.l.b16 %v202
    %v848 = vunpack.c.h.b16 %v202
    %v849 = vunpack.c.l.b16 %v203
    %v850 = vunpack.c.h.b16 %v203
    %v851 = vunpack.c.l.b16 %v204
    %v852 = vunpack.c.h.b16 %v204
    %v853 = vunpack.c.l.b16 %v205
    %v854 = vunpack.c.h.b16 %v205
    %v855 = vunpack.c.l.b16 %v206
    %v856 = vunpack.c.h.b16 %v206
    %v857 = vunpack.c.l.b16 %v207
    %v858 = vunpack.c.h.b16 %v207
    %v859 = vunpack.c.l.b16 %v208
    %v860 = vunpack.c.h.b16 %v208
    %v861 = vunpack.c.l.b16 %v209
    %v862 = vunpack.c.h.b16 %v209
    %v863 = vunpack.c.l.b16 %v210
    %v864 = vunpack.c.h.b16 %v210
    %v865 = vunpack.c.l.b16 %v211
    %v866 = vunpack.c.h.b16 %v211
    %v867 = vunpack.c.l.b16 %v212
    %v868 = vunpack.c.h.b16 %v212
    %v869 = vunpack.c.l.b16 %v213
    %v870 = vunpack.c.h.b16 %v213
    %v871 = vunpack.c.l.b16 %v214
    %v872 = vunpack.c.h.b16 %v214
    %v873 = vunpack.c.l.b16 %v215
    %v874 = vunpack.c.h.b16 %v215
    %v875 = vunpack.c.l.b16 %v216
    %v876 = vunpack.c.h.b16 %v216
    %v877 = vunpack.c.l.b16 %v217
    %v878 = vunpack.c.h.b16 %v217
    %v879 = vunpack.c.l.b16 %v218
    %v880 = vunpack.c.h.b16 %v218
    %v881 = vunpack.c.l.b16 %v219
    %v882 = vunpack.c.h.b16 %v219
    %v883 = vunpack.c.l.b16 %v220
    %v884 = vunpack.c.h.b16 %v220
    %v885 = vunpack.c.l.b16 %v221
    %v886 = vunpack.c.h.b16 %v221
    %v887 = vunpack.c.l.b16 %v222
    %v888 = vunpack.c.h.b16 %v222
    %v889 = vunpack.c.l.b16 %v223
    %v890 = vunpack.c.h.b16 %v223
    %v891 = vunpack.c.l.b16 %v224
    %v892 = vunpack.c.h.b16 %v224
    %v893 = vunpack.c.l.b16 %v225
    %v894 = vunpack.c.h.b16 %v225
    %v895 = vunpack.c.l.b16 %v226
    %v896 = vunpack.c.h.b16 %v226
    %v897 = vunpack.c.l.b16 %v227
    %v898 = vunpack.c.h.b16 %v227
    %v899 = vunpack.c.l.b16 %v228
    %v900 = vunpack.c.h.b16 %v228
    %v901 = vunpack.c.l.b16 %v229
    %v902 = vunpack.c.h.b16 %v229
    %v903 = vunpack.c.l.b16 %v230
    %v904 = vunpack.c.h.b16 %v230
    %v905 = vunpack.c.l.b16 %v231
    %v906 = vunpack.c.h.b16 %v231
    %v907 = vunpack.c.l.b16 %v232
    %v908 = vunpack.c.h.b16 %v232
    %v909 = vunpack.c.l.b16 %v233
    %v910 = vunpack.c.h.b16 %v233
    %v911 = vunpack.c.l.b16 %v234
    %v912 = vunpack.c.h.b16 %v234
    %v913 = vunpack.c.l.b16 %v235
    %v914 = vunpack.c.h.b16 %v235
    %v915 = vunpack.c.l.b16 %v236
    %v916 = vunpack.c.h.b16 %v236
    %v917 = vunpack.c.l.b16 %v237
    %v918 = vunpack.c.h.b16 %v237
    %v919 = vunpack.c.l.b16 %v238
    %v920 = vunpack.c.h.b16 %v238
    %v921 = vunpack.c.l.b16 %v239
    %v922 = vunpack.c.h.b16 %v239
    %v923 = vunpack.c.l.b16 %v240
    %v924 = vunpack.c.h.b16 %v240
    %v925 = vunpack.c.l.b16 %v241
    %v926 = vunpack.c.h.b16 %v241
    %v927 = vunpack.c.l.b16 %v242
    %v928 = vunpack.c.h.b16 %v242
    %v929 = vunpack.c.l.b16 %v243
    %v930 = vunpack.c.h.b16 %v243
    %v931 = vunpack.c.l.b16 %v244
    %v932 = vunpack.c.h.b16 %v244
    %v933 = vunpack.c.l.b16 %v245
    %v934 = vunpack.c.h.b16 %v245
    %v935 = vunpack.c.l.b16 %v246
    %v936 = vunpack.c.h.b16 %v246
    %v937 = vunpack.c.l.b16 %v247
    %v938 = vunpack.c.h.b16 %v247
    %v939 = vunpack.c.l.b16 %v248
    %v940 = vunpack.c.h.b16 %v248
    %v941 = vunpack.c.l.b16 %v249
    %v942 = vunpack.c.h.b16 %v249
    %v943 = vunpack.c.l.b16 %v250
    %v944 = vunpack.c.h.b16 %v250
    %v945 = vunpack.c.l.b16 %v251
    %v946 = vunpack.c.h.b16 %v251
    %v947 = vunpack.c.l.b16 %v252
    %v948 = vunpack.c.h.b16 %v252
    %v949 = vunpack.c.l.b16 %v253
    %v950 = vunpack.c.h.b16 %v253
    %v951 = vunpack.c.l.b16 %v254
    %v952 = vunpack.c.h.b16 %v254
    %v953 = vunpack.c.l.b16 %v255
    %v954 = vunpack.c.h.b16 %v255
    %v955 = vunpack.c.l.b16 %v256
    %v956 = vunpack.c.h.b16 %v256
    %v957 = vunpack.c.l.b16 %v257
    %v958 = vunpack.c.h.b16 %v257
    %v959 = vunpack.c.l.b16 %v258
    %v960 = vunpack.c.h.b16 %v258
    %v961 = vunpack.c.l.b16 %v259
    %v962 = vunpack.c.h.b16 %v259
    %v963 = vunpack.c.l.b16 %v260
    %v964 = vunpack.c.h.b16 %v260
    %v965 = vunpack.c.l.b16 %v261
    %v966 = vunpack.c.h.b16 %v261
    %v967 = vunpack.c.l.b16 %v262
    %v968 = vunpack.c.h.b16 %v262
    %v969 = vunpack.c.l.b16 %v263
    %v970 = vunpack.c.h.b16 %v263
    %v971 = vunpack.c.l.b16 %v264
    %v972 = vunpack.c.h.b16 %v264
    %v973 = vunpack.c.l.b16 %v265
    %v974 = vunpack.c.h.b16 %v265
    %v975 = vunpack.c.l.b16 %v266
    %v976 = vunpack.c.h.b16 %v266
    %v977 = vunpack.c.l.b16 %v267
    %v978 = vunpack.c.h.b16 %v267
    %v979 = vunpack.c.l.b16 %v268
    %v980 = vunpack.c.h.b16 %v268
    %v981 = vunpack.c.l.b16 %v269
    %v982 = vunpack.c.h.b16 %v269
    %v983 = vunpack.c.l.b16 %v270
    %v984 = vunpack.c.h.b16 %v270
    %v985 = vunpack.c.l.b16 %v271
    %v986 = vunpack.c.h.b16 %v271
    %v987 = vunpack.c.l.b16 %v272
    %v988 = vunpack.c.h.b16 %v272
    %v989 = vunpack.c.l.b16 %v273
    %v990 = vunpack.c.h.b16 %v273
    %v991 = vunpack.c.l.b16 %v274
    %v992 = vunpack.c.h.b16 %v274
    %v993 = vunpack.c.l.b16 %v275
    %v994 = vunpack.c.h.b16 %v275
    %v995 = vunpack.c.l.b16 %v276
    %v996 = vunpack.c.h.b16 %v276
    %v997 = vunpack.c.l.b16 %v277
    %v998 = vunpack.c.h.b16 %v277
    %v999 = vunpack.c.l.b16 %v278
    %v1000 = vunpack.c.h.b16 %v278
    %v1001 = vunpack.c.l.b16 %v279
    %v1002 = vunpack.c.h.b16 %v279
    %v1003 = vunpack.c.l.b16 %v280
    %v1004 = vunpack.c.h.b16 %v280
    %v1005 = vunpack.c.l.b16 %v281
    %v1006 = vunpack.c.h.b16 %v281
    %v1007 = vunpack.c.l.b16 %v282
    %v1008 = vunpack.c.h.b16 %v282
    %v1009 = vunpack.c.l.b16 %v283
    %v1010 = vunpack.c.h.b16 %v283
    %v1011 = vunpack.c.l.b16 %v284
    %v1012 = vunpack.c.h.b16 %v284
    %v1013 = vunpack.c.l.b16 %v285
    %v1014 = vunpack.c.h.b16 %v285
    %v1015 = vunpack.c.l.b16 %v286
    %v1016 = vunpack.c.h.b16 %v286
    %v1017 = vunpack.c.l.b16 %v287
    %v1018 = vunpack.c.h.b16 %v287
    %v1019 = vunpack.c.l.b16 %v288
    %v1020 = vunpack.c.h.b16 %v288
    %v1021 = vunpack.c.l.b16 %v289
    %v1022 = vunpack.c.h.b16 %v289
    %v1023 = vunpack.c.l.b16 %v290
    %v1024 = vunpack.c.h.b16 %v290
    %v1025 = vunpack.c.l.b16 %v291
    %v1026 = vunpack.c.h.b16 %v291
    %v1027 = vunpack.c.l.b16 %v292
    %v1028 = vunpack.c.h.b16 %v292
    %v1029 = vunpack.c.l.b16 %v293
    %v1030 = vunpack.c.h.b16 %v293
    %v1031 = vunpack.c.l.b16 %v294
    %v1032 = vunpack.c.h.b16 %v294
    %v1033 = vunpack.c.l.b16 %v295
    %v1034 = vunpack.c.h.b16 %v295
    %v1035 = vunpack.c.l.b16 %v296
    %v1036 = vunpack.c.h.b16 %v296
    %v1037 = vunpack.c.l.b16 %v297
    %v1038 = vunpack.c.h.b16 %v297
    %v1039 = vunpack.c.l.b16 %v298
    %v1040 = vunpack.c.h.b16 %v298
    %v1041 = vunpack.c.l.b16 %v299
    %v1042 = vunpack.c.h.b16 %v299
    %v1043 = vunpack.c.l.b16 %v300
    %v1044 = vunpack.c.h.b16 %v300
    %v1045 = vunpack.c.l.b16 %v301
    %v1046 = vunpack.c.h.b16 %v301
    %v1047 = vunpack.c.l.b16 %v302
    %v1048 = vunpack.c.h.b16 %v302
    %v1049 = vunpack.c.l.b16 %v303
    %v1050 = vunpack.c.h.b16 %v303
    %v1051 = vunpack.c.l.b16 %v304
    %v1052 = vunpack.c.h.b16 %v304
    %v1053 = vunpack.c.l.b16 %v305
    %v1054 = vunpack.c.h.b16 %v305
    %v1055 = vunpack.c.l.b16 %v306
    %v1056 = vunpack.c.h.b16 %v306
    %v1057 = vunpack.c.l.b16 %v307
    %v1058 = vunpack.c.h.b16 %v307
    %v1059 = vunpack.c.l.b16 %v308
    %v1060 = vunpack.c.h.b16 %v308
    %v1061 = vunpack.c.l.b16 %v309
    %v1062 = vunpack.c.h.b16 %v309
    %v1063 = vunpack.c.l.b16 %v310
    %v1064 = vunpack.c.h.b16 %v310
    %v1065 = vunpack.c.l.b16 %v311
    %v1066 = vunpack.c.h.b16 %v311
    %v1067 = vunpack.c.l.b16 %v312
    %v1068 = vunpack.c.h.b16 %v312
    %v1069 = vunpack.c.l.b16 %v313
    %v1070 = vunpack.c.h.b16 %v313
    %v1071 = vunpack.c.l.b16 %v314
    %v1072 = vunpack.c.h.b16 %v314
    %v1073 = vunpack.c.l.b16 %v315
    %v1074 = vunpack.c.h.b16 %v315
    %v1075 = vunpack.c.l.b16 %v316
    %v1076 = vunpack.c.h.b16 %v316
    %v1077 = vunpack.c.l.b16 %v317
    %v1078 = vunpack.c.h.b16 %v317
    %v1079 = vunpack.c.l.b16 %v318
    %v1080 = vunpack.c.h.b16 %v318
    %v1081 = vunpack.c.l.b16 %v319
    %v1082 = vunpack.c.h.b16 %v319
    %v1083 = vunpack.c.l.b16 %v320
    %v1084 = vunpack.c.h.b16 %v320
    %v1085 = vunpack.c.l.b16 %v321
    %v1086 = vunpack.c.h.b16 %v321
    %v1087 = vunpack.c.l.b16 %v322
    %v1088 = vunpack.c.h.b16 %v322
    %v1089 = vunpack.c.l.b16 %v323
    %v1090 = vunpack.c.h.b16 %v323
    %v1091 = vunpack.c.l.b16 %v324
    %v1092 = vunpack.c.h.b16 %v324
    %v1093 = vunpack.c.l.b16 %v325
    %v1094 = vunpack.c.h.b16 %v325
    %v1095 = vunpack.c.l.b16 %v326
    %v1096 = vunpack.c.h.b16 %v326
    %v1097 = vunpack.c.l.b16 %v327
    %v1098 = vunpack.c.h.b16 %v327
    %v1099 = vunpack.c.l.b16 %v328
    %v1100 = vunpack.c.h.b16 %v328
    %v1101 = vunpack.c.l.b16 %v329
    %v1102 = vunpack.c.h.b16 %v329
    %v1103 = vunpack.c.l.b16 %v330
    %v1104 = vunpack.c.h.b16 %v330
    %v1105 = vunpack.c.l.b16 %v331
    %v1106 = vunpack.c.h.b16 %v331
    %v1107 = vunpack.c.l.b16 %v332
    %v1108 = vunpack.c.h.b16 %v332
    %v1109 = vunpack.c.l.b16 %v333
    %v1110 = vunpack.c.h.b16 %v333
    %v1111 = vunpack.c.l.b16 %v334
    %v1112 = vunpack.c.h.b16 %v334
    %v1113 = vunpack.c.l.b16 %v335
    %v1114 = vunpack.c.h.b16 %v335
    %v1115 = vunpack.c.l.b16 %v336
    %v1116 = vunpack.c.h.b16 %v336
    %v1117 = vunpack.c.l.b16 %v337
    %v1118 = vunpack.c.h.b16 %v337
    %v1119 = vunpack.c.l.b16 %v338
    %v1120 = vunpack.c.h.b16 %v338
    %v1121 = vunpack.c.l.b16 %v339
    %v1122 = vunpack.c.h.b16 %v339
    %v1123 = vunpack.c.l.b16 %v340
    %v1124 = vunpack.c.h.b16 %v340
    %v1125 = vunpack.c.l.b16 %v341
    %v1126 = vunpack.c.h.b16 %v341
    %v1127 = vunpack.c.l.b16 %v342
    %v1128 = vunpack.c.h.b16 %v342
    %v1129 = vunpack.c.l.b16 %v343
    %v1130 = vunpack.c.h.b16 %v343
    %v1131 = vunpack.c.l.b16 %v344
    %v1132 = vunpack.c.h.b16 %v344
    %v1133 = vunpack.c.l.b16 %v345
    %v1134 = vunpack.c.h.b16 %v345
    %v1135 = vunpack.c.l.b16 %v346
    %v1136 = vunpack.c.h.b16 %v346
    %v1137 = vunpack.c.l.b16 %v347
    %v1138 = vunpack.c.h.b16 %v347
    %v1139 = vunpack.c.l.b16 %v348
    %v1140 = vunpack.c.h.b16 %v348
    %v1141 = vunpack.c.l.b16 %v349
    %v1142 = vunpack.c.h.b16 %v349
    %v1143 = vunpack.c.l.b16 %v350
    %v1144 = vunpack.c.h.b16 %v350
    %v1145 = vunpack.c.l.b16 %v351
    %v1146 = vunpack.c.h.b16 %v351
    %v1147 = vunpack.c.l.b16 %v352
    %v1148 = vunpack.c.h.b16 %v352
    %v1149 = vunpack.c.l.b16 %v353
    %v1150 = vunpack.c.h.b16 %v353
    %v1151 = vunpack.c.l.b16 %v354
    %v1152 = vunpack.c.h.b16 %v354
    %v1153 = vunpack.c.l.b16 %v355
    %v1154 = vunpack.c.h.b16 %v355
    %v1155 = vunpack.c.l.b16 %v356
    %v1156 = vunpack.c.h.b16 %v356
    %v1157 = vunpack.c.l.b16 %v357
    %v1158 = vunpack.c.h.b16 %v357
    %v1159 = vunpack.c.l.b16 %v358
    %v1160 = vunpack.c.h.b16 %v358
    %v1161 = vunpack.c.l.b16 %v359
    %v1162 = vunpack.c.h.b16 %v359
    %v1163 = vunpack.c.l.b16 %v360
    %v1164 = vunpack.c.h.b16 %v360
    %v1165 = vunpack.c.l.b16 %v361
    %v1166 = vunpack.c.h.b16 %v361
    %v1167 = vunpack.c.l.b16 %v362
    %v1168 = vunpack.c.h.b16 %v362
    %v1169 = vunpack.c.l.b16 %v363
    %v1170 = vunpack.c.h.b16 %v363
    %v1171 = vunpack.c.l.b16 %v364
    %v1172 = vunpack.c.h.b16 %v364
    %v1173 = vunpack.c.l.b16 %v365
    %v1174 = vunpack.c.h.b16 %v365
    %v1175 = vunpack.c.l.b16 %v366
    %v1176 = vunpack.c.h.b16 %v366
    %v1177 = vunpack.c.l.b16 %v367
    %v1178 = vunpack.c.h.b16 %v367
    %v1179 = vunpack.c.l.b16 %v368
    %v1180 = vunpack.c.h.b16 %v368
    %v1181 = vunpack.c.l.b16 %v369
    %v1182 = vunpack.c.h.b16 %v369
    %v1183 = vunpack.c.l.b16 %v370
    %v1184 = vunpack.c.h.b16 %v370
    %v1185 = vunpack.c.l.b16 %v371
    %v1186 = vunpack.c.h.b16 %v371
    %v1187 = vunpack.c.l.b16 %v372
    %v1188 = vunpack.c.h.b16 %v372
    %v1189 = vunpack.c.l.b16 %v373
    %v1190 = vunpack.c.h.b16 %v373
    %v1191 = vunpack.c.l.b16 %v374
    %v1192 = vunpack.c.h.b16 %v374
    %v1193 = vpack.c.b16 %v685, %v681
    %v1194 = vpack.c.b16 %v686, %v682
    %v1195 = vpack.c.b16 %v687, %v683
    %v1196 = vpack.c.b16 %v688, %v684
    %v1197 = vpack.c.b16 %v693, %v689
    %v1198 = vpack.c.b16 %v694, %v690
    %v1199 = vpack.c.b16 %v695, %v691
    %v1200 = vpack.c.b16 %v696, %v692
    %v1201 = vpack.c.b16 %v701, %v697
    %v1202 = vpack.c.b16 %v702, %v698
    %v1203 = vpack.c.b16 %v703, %v699
    %v1204 = vpack.c.b16 %v704, %v700
    %v1205 = vpack.c.b16 %v709, %v705
    %v1206 = vpack.c.b16 %v710, %v706
    %v1207 = vpack.c.b16 %v711, %v707
    %v1208 = vpack.c.b16 %v712, %v708
    %v1209 = vpack.c.b16 %v717, %v713
    %v1210 = vpack.c.b16 %v718, %v714
    %v1211 = vpack.c.b16 %v719, %v715
    %v1212 = vpack.c.b16 %v720, %v716
    %v1213 = vpack.c.b16 %v725, %v721
    %v1214 = vpack.c.b16 %v726, %v722
    %v1215 = vpack.c.b16 %v727, %v723
    %v1216 = vpack.c.b16 %v728, %v724
    %v1217 = vpack.c.b16 %v733, %v729
    %v1218 = vpack.c.b16 %v734, %v730
    %v1219 = vpack.c.b16 %v735, %v731
    %v1220 = vpack.c.b16 %v736, %v732
    %v1221 = vpack.c.b16 %v741, %v737
    %v1222 = vpack.c.b16 %v742, %v738
    %v1223 = vpack.c.b16 %v743, %v739
    %v1224 = vpack.c.b16 %v744, %v740
    %v1225 = vpack.c.b16 %v749, %v745
    %v1226 = vpack.c.b16 %v750, %v746
    %v1227 = vpack.c.b16 %v751, %v747
    %v1228 = vpack.c.b16 %v752, %v748
    %v1229 = vpack.c.b16 %v757, %v753
    %v1230 = vpack.c.b16 %v758, %v754
    %v1231 = vpack.c.b16 %v759, %v755
    %v1232 = vpack.c.b16 %v760, %v756
    %v1233 = vpack.c.b16 %v765, %v761
    %v1234 = vpack.c.b16 %v766, %v762
    %v1235 = vpack.c.b16 %v767, %v763
    %v1236 = vpack.c.b16 %v768, %v764
    %v1237 = vpack.c.b16 %v773, %v769
    %v1238 = vpack.c.b16 %v774, %v770
    %v1239 = vpack.c.b16 %v775, %v771
    %v1240 = vpack.c.b16 %v776, %v772
    %v1241 = vpack.c.b16 %v781, %v777
    %v1242 = vpack.c.b16 %v782, %v778
    %v1243 = vpack.c.b16 %v783, %v779
    %v1244 = vpack.c.b16 %v784, %v780
    %v1245 = vpack.c.b16 %v789, %v785
    %v1246 = vpack.c.b16 %v790, %v786
    %v1247 = vpack.c.b16 %v791, %v787
    %v1248 = vpack.c.b16 %v792, %v788
    %v1249 = vpack.c.b16 %v797, %v793
    %v1250 = vpack.c.b16 %v798, %v794
    %v1251 = vpack.c.b16 %v799, %v795
    %v1252 = vpack.c.b16 %v800, %v796
    %v1253 = vpack.c.b16 %v805, %v801
    %v1254 = vpack.c.b16 %v806, %v802
    %v1255 = vpack.c.b16 %v807, %v803
    %v1256 = vpack.c.b16 %v808, %v804
    %v1257 = vpack.c.b16 %v813, %v809
    %v1258 = vpack.c.b16 %v814, %v810
    %v1259 = vpack.c.b16 %v815, %v811
    %v1260 = vpack.c.b16 %v816, %v812
    %v1261 = vpack.c.b16 %v821, %v817
    %v1262 = vpack.c.b16 %v822, %v818
    %v1263 = vpack.c.b16 %v823, %v819
    %v1264 = vpack.c.b16 %v824, %v820
    %v1265 = vpack.c.b16 %v829, %v825
    %v1266 = vpack.c.b16 %v830, %v826
    %v1267 = vpack.c.b16 %v831, %v827
    %v1268 = vpack.c.b16 %v832, %v828
    %v1269 = vpack.c.b16 %v837, %v833
    %v1270 = vpack.c.b16 %v838, %v834
    %v1271 = vpack.c.b16 %v839, %v835
    %v1272 = vpack.c.b16 %v840, %v836
    %v1273 = vpack.c.b16 %v845, %v841
    %v1274 = vpack.c.b16 %v846, %v842
    %v1275 = vpack.c.b16 %v847, %v843
    %v1276 = vpack.c.b16 %v848, %v844
    %v1277 = vpack.c.b16 %v853, %v849
    %v1278 = vpack.c.b16 %v854, %v850
    %v1279 = vpack.c.b16 %v855, %v851
    %v1280 = vpack.c.b16 %v856, %v852
    %v1281 = vpack.c.b16 %v861, %v857
    %v1282 = vpack.c.b16 %v862, %v858
    %v1283 = vpack.c.b16 %v863, %v859
    %v1284 = vpack.c.b16 %v864, %v860
    %v1285 = vpack.c.b16 %v869, %v865
    %v1286 = vpack.c.b16 %v870, %v866
    %v1287 = vpack.c.b16 %v871, %v867
    %v1288 = vpack.c.b16 %v872, %v868
    %v1289 = vpack.c.b16 %v877, %v873
    %v1290 = vpack.c.b16 %v878, %v874
    %v1291 = vpack.c.b16 %v879, %v875
    %v1292 = vpack.c.b16 %v880, %v876
    %v1293 = vpack.c.b16 %v885, %v881
    %v1294 = vpack.c.b16 %v886, %v882
    %v1295 = vpack.c.b16 %v887, %v883
    %v1296 = vpack.c.b16 %v888, %v884
    %v1297 = vpack.c.b16 %v893, %v889
    %v1298 = vpack.c.b16 %v894, %v890
    %v1299 = vpack.c.b16 %v895, %v891
    %v1300 = vpack.c.b16 %v896, %v892
    %v1301 = vpack.c.b16 %v901, %v897
    %v1302 = vpack.c.b16 %v902, %v898
    %v1303 = vpack.c.b16 %v903, %v899
    %v1304 = vpack.c.b16 %v904, %v900
    %v1305 = vpack.c.b16 %v909, %v905
    %v1306 = vpack.c.b16 %v910, %v906
    %v1307 = vpack.c.b16 %v911, %v907
    %v1308 = vpack.c.b16 %v912, %v908
    %v1309 = vpack.c.b16 %v917, %v913
    %v1310 = vpack.c.b16 %v918, %v914
    %v1311 = vpack.c.b16 %v919, %v915
    %v1312 = vpack.c.b16 %v920, %v916
    %v1313 = vpack.c.b16 %v925, %v921
    %v1314 = vpack.c.b16 %v926, %v922
    %v1315 = vpack.c.b16 %v927, %v923
    %v1316 = vpack.c.b16 %v928, %v924
    %v1317 = vpack.c.b16 %v933, %v929
    %v1318 = vpack.c.b16 %v934, %v930
    %v1319 = vpack.c.b16 %v935, %v931
    %v1320 = vpack.c.b16 %v936, %v932
    %v1321 = vpack.c.b16 %v941, %v937
    %v1322 = vpack.c.b16 %v942, %v938
    %v1323 = vpack.c.b16 %v943, %v939
    %v1324 = vpack.c.b16 %v944, %v940
    %v1325 = vpack.c.b16 %v949, %v945
    %v1326 = vpack.c.b16 %v950, %v946
    %v1327 = vpack.c.b16 %v951, %v947
    %v1328 = vpack.c.b16 %v952, %v948
    %v1329 = vpack.c.b16 %v957, %v953
    %v1330 = vpack.c.b16 %v958, %v954
    %v1331 = vpack.c.b16 %v959, %v955
    %v1332 = vpack.c.b16 %v960, %v956
    %v1333 = vpack.c.b16 %v965, %v961
    %v1334 = vpack.c.b16 %v966, %v962
    %v1335 = vpack.c.b16 %v967, %v963
    %v1336 = vpack.c.b16 %v968, %v964
    %v1337 = vpack.c.b16 %v973, %v969
    %v1338 = vpack.c.b16 %v974, %v970
    %v1339 = vpack.c.b16 %v975, %v971
    %v1340 = vpack.c.b16 %v976, %v972
    %v1341 = vpack.c.b16 %v981, %v977
    %v1342 = vpack.c.b16 %v982, %v978
    %v1343 = vpack.c.b16 %v983, %v979
    %v1344 = vpack.c.b16 %v984, %v980
    %v1345 = vpack.c.b16 %v989, %v985
    %v1346 = vpack.c.b16 %v990, %v986
    %v1347 = vpack.c.b16 %v991, %v987
    %v1348 = vpack.c.b16 %v992, %v988
    %v1349 = vpack.c.b16 %v997, %v993
    %v1350 = vpack.c.b16 %v998, %v994
    %v1351 = vpack.c.b16 %v999, %v995
    %v1352 = vpack.c.b16 %v1000, %v996
    %v1353 = vpack.c.b16 %v1005, %v1001
    %v1354 = vpack.c.b16 %v1006, %v1002
    %v1355 = vpack.c.b16 %v1007, %v1003
    %v1356 = vpack.c.b16 %v1008, %v1004
    %v1357 = vpack.c.b16 %v1013, %v1009
    %v1358 = vpack.c.b16 %v1014, %v1010
    %v1359 = vpack.c.b16 %v1015, %v1011
    %v1360 = vpack.c.b16 %v1016, %v1012
    %v1361 = vpack.c.b16 %v1021, %v1017
    %v1362 = vpack.c.b16 %v1022, %v1018
    %v1363 = vpack.c.b16 %v1023, %v1019
    %v1364 = vpack.c.b16 %v1024, %v1020
    %v1365 = vpack.c.b16 %v1029, %v1025
    %v1366 = vpack.c.b16 %v1030, %v1026
    %v1367 = vpack.c.b16 %v1031, %v1027
    %v1368 = vpack.c.b16 %v1032, %v1028
    %v1369 = vpack.c.b16 %v1037, %v1033
    %v1370 = vpack.c.b16 %v1038, %v1034
    %v1371 = vpack.c.b16 %v1039, %v1035
    %v1372 = vpack.c.b16 %v1040, %v1036
    %v1373 = vpack.c.b16 %v1045, %v1041
    %v1374 = vpack.c.b16 %v1046, %v1042
    %v1375 = vpack.c.b16 %v1047, %v1043
    %v1376 = vpack.c.b16 %v1048, %v1044
    %v1377 = vpack.c.b16 %v1053, %v1049
    %v1378 = vpack.c.b16 %v1054, %v1050
    %v1379 = vpack.c.b16 %v1055, %v1051
    %v1380 = vpack.c.b16 %v1056, %v1052
    %v1381 = vpack.c.b16 %v1061, %v1057
    %v1382 = vpack.c.b16 %v1062, %v1058
    %v1383 = vpack.c.b16 %v1063, %v1059
    %v1384 = vpack.c.b16 %v1064, %v1060
    %v1385 = vpack.c.b16 %v1069, %v1065
    %v1386 = vpack.c.b16 %v1070, %v1066
    %v1387 = vpack.c.b16 %v1071, %v1067
    %v1388 = vpack.c.b16 %v1072, %v1068
    %v1389 = vpack.c.b16 %v1077, %v1073
    %v1390 = vpack.c.b16 %v1078, %v1074
    %v1391 = vpack.c.b16 %v1079, %v1075
    %v1392 = vpack.c.b16 %v1080, %v1076
    %v1393 = vpack.c.b16 %v1085, %v1081
    %v1394 = vpack.c.b16 %v1086, %v1082
    %v1395 = vpack.c.b16 %v1087, %v1083
    %v1396 = vpack.c.b16 %v1088, %v1084
    %v1397 = vpack.c.b16 %v1093, %v1089
    %v1398 = vpack.c.b16 %v1094, %v1090
    %v1399 = vpack.c.b16 %v1095, %v1091
    %v1400 = vpack.c.b16 %v1096, %v1092
    %v1401 = vpack.c.b16 %v1101, %v1097
    %v1402 = vpack.c.b16 %v1102, %v1098
    %v1403 = vpack.c.b16 %v1103, %v1099
    %v1404 = vpack.c.b16 %v1104, %v1100
    %v1405 = vpack.c.b16 %v1109, %v1105
    %v1406 = vpack.c.b16 %v1110, %v1106
    %v1407 = vpack.c.b16 %v1111, %v1107
    %v1408 = vpack.c.b16 %v1112, %v1108
    %v1409 = vpack.c.b16 %v1117, %v1113
    %v1410 = vpack.c.b16 %v1118, %v1114
    %v1411 = vpack.c.b16 %v1119, %v1115
    %v1412 = vpack.c.b16 %v1120, %v1116
    %v1413 = vpack.c.b16 %v1125, %v1121
    %v1414 = vpack.c.b16 %v1126, %v1122
    %v1415 = vpack.c.b16 %v1127, %v1123
    %v1416 = vpack.c.b16 %v1128, %v1124
    %v1417 = vpack.c.b16 %v1133, %v1129
    %v1418 = vpack.c.b16 %v1134, %v1130
    %v1419 = vpack.c.b16 %v1135, %v1131
    %v1420 = vpack.c.b16 %v1136, %v1132
    %v1421 = vpack.c.b16 %v1141, %v1137
    %v1422 = vpack.c.b16 %v1142, %v1138
    %v1423 = vpack.c.b16 %v1143, %v1139
    %v1424 = vpack.c.b16 %v1144, %v1140
    %v1425 = vpack.c.b16 %v1149, %v1145
    %v1426 = vpack.c.b16 %v1150, %v1146
    %v1427 = vpack.c.b16 %v1151, %v1147
    %v1428 = vpack.c.b16 %v1152, %v1148
    %v1429 = vpack.c.b16 %v1157, %v1153
    %v1430 = vpack.c.b16 %v1158, %v1154
    %v1431 = vpack.c.b16 %v1159, %v1155
    %v1432 = vpack.c.b16 %v1160, %v1156
    %v1433 = vpack.c.b16 %v1165, %v1161
    %v1434 = vpack.c.b16 %v1166, %v1162
    %v1435 = vpack.c.b16 %v1167, %v1163
    %v1436 = vpack.c.b16 %v1168, %v1164
    %v1437 = vpack.c.b16 %v1173, %v1169
    %v1438 = vpack.c.b16 %v1174, %v1170
    %v1439 = vpack.c.b16 %v1175, %v1171
    %v1440 = vpack.c.b16 %v1176, %v1172
    %v1441 = vpack.c.b16 %v1181, %v1177
    %v1442 = vpack.c.b16 %v1182, %v1178
    %v1443 = vpack.c.b16 %v1183, %v1179
    %v1444 = vpack.c.b16 %v1184, %v1180
    %v1445 = vpack.c.b16 %v1189, %v1185
    %v1446 = vpack.c.b16 %v1190, %v1186
    %v1447 = vpack.c.b16 %v1191, %v1187
    %v1448 = vpack.c.b16 %v1192, %v1188
    %1705 = vmatprep.subr.bf16.mxu0 %v1222
    %1706 = vmatpush1.bf16.msra.mxu0 %v1221
    %1707 = vmatprep.subr.bf16.mxu0 %v1218
    %1708 = vmatpush1.bf16.msra.mxu0 %v1217
    %1709 = vmatprep.subr.bf16.mxu0 %v1214
    %1710 = vmatpush1.bf16.msra.mxu0 %v1213
    %1711 = vmatprep.subr.bf16.mxu0 %v1210
    %1712 = vmatpush1.bf16.msra.mxu0 %v1209
    %1713 = vmatprep.subr.bf16.mxu0 %v1206
    %1714 = vmatpush1.bf16.msra.mxu0 %v1205
    %1715 = vmatprep.subr.bf16.mxu0 %v1202
    %1716 = vmatpush1.bf16.msra.mxu0 %v1201
    %1717 = vmatprep.subr.bf16.mxu0 %v1198
    %1718 = vmatpush1.bf16.msra.mxu0 %v1197
    %1719 = vmatprep.subr.bf16.mxu0 %v1194
    %1720 = vmatpush1.bf16.msra.mxu0 %v1193
    %1721 = vmatprep.subr.bf16.mxu0 %v1254
    %1722 = vmatpush2.bf16.msra.mxu0 %v1253
    %1723 = vmatprep.subr.bf16.mxu0 %v1250
    %1724 = vmatpush2.bf16.msra.mxu0 %v1249
    %1725 = vmatprep.subr.bf16.mxu0 %v1246
    %1726 = vmatpush2.bf16.msra.mxu0 %v1245
    %1727 = vmatprep.subr.bf16.mxu0 %v1242
    %1728 = vmatpush2.bf16.msra.mxu0 %v1241
    %1729 = vmatprep.subr.bf16.mxu0 %v1238
    %1730 = vmatpush2.bf16.msra.mxu0 %v1237
    %1731 = vmatprep.subr.bf16.mxu0 %v1234
    %1732 = vmatpush2.bf16.msra.mxu0 %v1233
    %1733 = vmatprep.subr.bf16.mxu0 %v1230
    %1734 = vmatpush2.bf16.msra.mxu0 %v1229
    %1735 = vmatprep.subr.bf16.mxu0 %v1226
    %1736 = vmatpush2.bf16.msra.mxu0 %v1225
    %1737 = vmatprep.mubr.bf16.mxu0 %v410
    %1738 = vmatmul.mubr.bf16.gmra.mxu0 %v409
    %v1739 = vpop.f32.mrf.mxu0
    %v1740 = vadd.f32 %v380, %v1739
    %v1741 = vpop.f32.mrf.mxu0
    %v1742 = vadd.f32 %v384, %v1741
    %v1743 = vpop.f32.mrf.mxu0
    %v1744 = vpop.f32.mrf.mxu0
    %1745 = vdwg.mxu0
    %1746 = vmatprep.subr.bf16.mxu0 %v1286
    %1747 = vmatpush1.bf16.msra.mxu0 %v1285
    %1748 = vmatprep.subr.bf16.mxu0 %v1282
    %1749 = vmatpush1.bf16.msra.mxu0 %v1281
    %1750 = vmatprep.subr.bf16.mxu0 %v1278
    %1751 = vmatpush1.bf16.msra.mxu0 %v1277
    %1752 = vmatprep.subr.bf16.mxu0 %v1274
    %1753 = vmatpush1.bf16.msra.mxu0 %v1273
    %1754 = vmatprep.subr.bf16.mxu0 %v1270
    %1755 = vmatpush1.bf16.msra.mxu0 %v1269
    %1756 = vmatprep.subr.bf16.mxu0 %v1266
    %1757 = vmatpush1.bf16.msra.mxu0 %v1265
    %1758 = vmatprep.subr.bf16.mxu0 %v1262
    %1759 = vmatpush1.bf16.msra.mxu0 %v1261
    %1760 = vmatprep.subr.bf16.mxu0 %v1258
    %1761 = vmatpush1.bf16.msra.mxu0 %v1257
    %1762 = vmatprep.subr.bf16.mxu0 %v1318
    %1763 = vmatpush2.bf16.msra.mxu0 %v1317
    %1764 = vmatprep.subr.bf16.mxu0 %v1314
    %1765 = vmatpush2.bf16.msra.mxu0 %v1313
    %1766 = vmatprep.subr.bf16.mxu0 %v1310
    %1767 = vmatpush2.bf16.msra.mxu0 %v1309
    %1768 = vmatprep.subr.bf16.mxu0 %v1306
    %1769 = vmatpush2.bf16.msra.mxu0 %v1305
    %1770 = vmatprep.subr.bf16.mxu0 %v1302
    %1771 = vmatpush2.bf16.msra.mxu0 %v1301
    %1772 = vmatprep.subr.bf16.mxu0 %v1298
    %1773 = vmatpush2.bf16.msra.mxu0 %v1297
    %1774 = vmatprep.subr.bf16.mxu0 %v1294
    %1775 = vmatpush2.bf16.msra.mxu0 %v1293
    %1776 = vmatprep.subr.bf16.mxu0 %v1290
    %1777 = vmatpush2.bf16.msra.mxu0 %v1289
    %1778 = vmatprep.mubr.bf16.mxu0 %v412
    %1779 = vmatmul.mubr.bf16.gmra.mxu0 %v411
    %v1780 = vpop.f32.mrf.mxu0
    %v1781 = vadd.f32 %v1740, %v1780
    %v1782 = vpop.f32.mrf.mxu0
    %v1783 = vadd.f32 %v1742, %v1782
    %v1784 = vpop.f32.mrf.mxu0
    %v1785 = vpop.f32.mrf.mxu0
    %1786 = vdwg.mxu0
    %1787 = vmatprep.subr.bf16.mxu0 %v1350
    %1788 = vmatpush1.bf16.msra.mxu0 %v1349
    %1789 = vmatprep.subr.bf16.mxu0 %v1346
    %1790 = vmatpush1.bf16.msra.mxu0 %v1345
    %1791 = vmatprep.subr.bf16.mxu0 %v1342
    %1792 = vmatpush1.bf16.msra.mxu0 %v1341
    %1793 = vmatprep.subr.bf16.mxu0 %v1338
    %1794 = vmatpush1.bf16.msra.mxu0 %v1337
    %1795 = vmatprep.subr.bf16.mxu0 %v1334
    %1796 = vmatpush1.bf16.msra.mxu0 %v1333
    %1797 = vmatprep.subr.bf16.mxu0 %v1330
    %1798 = vmatpush1.bf16.msra.mxu0 %v1329
    %1799 = vmatprep.subr.bf16.mxu0 %v1326
    %1800 = vmatpush1.bf16.msra.mxu0 %v1325
    %1801 = vmatprep.subr.bf16.mxu0 %v1322
    %1802 = vmatpush1.bf16.msra.mxu0 %v1321
    %1803 = vmatprep.subr.bf16.mxu0 %v1382
    %1804 = vmatpush2.bf16.msra.mxu0 %v1381
    %1805 = vmatprep.subr.bf16.mxu0 %v1378
    %1806 = vmatpush2.bf16.msra.mxu0 %v1377
    %1807 = vmatprep.subr.bf16.mxu0 %v1374
    %1808 = vmatpush2.bf16.msra.mxu0 %v1373
    %1809 = vmatprep.subr.bf16.mxu0 %v1370
    %1810 = vmatpush2.bf16.msra.mxu0 %v1369
    %1811 = vmatprep.subr.bf16.mxu0 %v1366
    %1812 = vmatpush2.bf16.msra.mxu0 %v1365
    %1813 = vmatprep.subr.bf16.mxu0 %v1362
    %1814 = vmatpush2.bf16.msra.mxu0 %v1361
    %1815 = vmatprep.subr.bf16.mxu0 %v1358
    %1816 = vmatpush2.bf16.msra.mxu0 %v1357
    %1817 = vmatprep.subr.bf16.mxu0 %v1354
    %1818 = vmatpush2.bf16.msra.mxu0 %v1353
    %1819 = vmatprep.mubr.bf16.mxu0 %v414
    %1820 = vmatmul.mubr.bf16.gmra.mxu0 %v413
    %v1821 = vpop.f32.mrf.mxu0
    %v1822 = vadd.f32 %v1781, %v1821
    %v1823 = vpop.f32.mrf.mxu0
    %v1824 = vadd.f32 %v1783, %v1823
    %v1825 = vpop.f32.mrf.mxu0
    %v1826 = vpop.f32.mrf.mxu0
    %1827 = vdwg.mxu0
    %1828 = vmatprep.subr.bf16.mxu0 %v1414
    %1829 = vmatpush1.bf16.msra.mxu0 %v1413
    %1830 = vmatprep.subr.bf16.mxu0 %v1410
    %1831 = vmatpush1.bf16.msra.mxu0 %v1409
    %1832 = vmatprep.subr.bf16.mxu0 %v1406
    %1833 = vmatpush1.bf16.msra.mxu0 %v1405
    %1834 = vmatprep.subr.bf16.mxu0 %v1402
    %1835 = vmatpush1.bf16.msra.mxu0 %v1401
    %1836 = vmatprep.subr.bf16.mxu0 %v1398
    %1837 = vmatpush1.bf16.msra.mxu0 %v1397
    %1838 = vmatprep.subr.bf16.mxu0 %v1394
    %1839 = vmatpush1.bf16.msra.mxu0 %v1393
    %1840 = vmatprep.subr.bf16.mxu0 %v1390
    %1841 = vmatpush1.bf16.msra.mxu0 %v1389
    %1842 = vmatprep.subr.bf16.mxu0 %v1386
    %1843 = vmatpush1.bf16.msra.mxu0 %v1385
    %1844 = vmatprep.subr.bf16.mxu0 %v1446
    %1845 = vmatpush2.bf16.msra.mxu0 %v1445
    %1846 = vmatprep.subr.bf16.mxu0 %v1442
    %1847 = vmatpush2.bf16.msra.mxu0 %v1441
    %1848 = vmatprep.subr.bf16.mxu0 %v1438
    %1849 = vmatpush2.bf16.msra.mxu0 %v1437
    %1850 = vmatprep.subr.bf16.mxu0 %v1434
    %1851 = vmatpush2.bf16.msra.mxu0 %v1433
    %1852 = vmatprep.subr.bf16.mxu0 %v1430
    %1853 = vmatpush2.bf16.msra.mxu0 %v1429
    %1854 = vmatprep.subr.bf16.mxu0 %v1426
    %1855 = vmatpush2.bf16.msra.mxu0 %v1425
    %1856 = vmatprep.subr.bf16.mxu0 %v1422
    %1857 = vmatpush2.bf16.msra.mxu0 %v1421
    %1858 = vmatprep.subr.bf16.mxu0 %v1418
    %1859 = vmatpush2.bf16.msra.mxu0 %v1417
    %1860 = vmatprep.mubr.bf16.mxu0 %v416
    %1861 = vmatmul.mubr.bf16.gmra.mxu0 %v415
    %v1862 = vpop.f32.mrf.mxu0
    %v1863 = vadd.f32 %v1822, %v1862
    %v1864 = vpop.f32.mrf.mxu0
    %v1865 = vadd.f32 %v1824, %v1864
    %v1866 = vpop.f32.mrf.mxu0
    %v1867 = vpop.f32.mrf.mxu0
    %1868 = vdwg.mxu0
    %1869 = vmatprep.subr.bf16.mxu0 %v1224
    %1870 = vmatpush1.bf16.msra.mxu0 %v1223
    %1871 = vmatprep.subr.bf16.mxu0 %v1220
    %1872 = vmatpush1.bf16.msra.mxu0 %v1219
    %1873 = vmatprep.subr.bf16.mxu0 %v1216
    %1874 = vmatpush1.bf16.msra.mxu0 %v1215
    %1875 = vmatprep.subr.bf16.mxu0 %v1212
    %1876 = vmatpush1.bf16.msra.mxu0 %v1211
    %1877 = vmatprep.subr.bf16.mxu0 %v1208
    %1878 = vmatpush1.bf16.msra.mxu0 %v1207
    %1879 = vmatprep.subr.bf16.mxu0 %v1204
    %1880 = vmatpush1.bf16.msra.mxu0 %v1203
    %1881 = vmatprep.subr.bf16.mxu0 %v1200
    %1882 = vmatpush1.bf16.msra.mxu0 %v1199
    %1883 = vmatprep.subr.bf16.mxu0 %v1196
    %1884 = vmatpush1.bf16.msra.mxu0 %v1195
    %1885 = vmatprep.subr.bf16.mxu0 %v1256
    %1886 = vmatpush2.bf16.msra.mxu0 %v1255
    %1887 = vmatprep.subr.bf16.mxu0 %v1252
    %1888 = vmatpush2.bf16.msra.mxu0 %v1251
    %1889 = vmatprep.subr.bf16.mxu0 %v1248
    %1890 = vmatpush2.bf16.msra.mxu0 %v1247
    %1891 = vmatprep.subr.bf16.mxu0 %v1244
    %1892 = vmatpush2.bf16.msra.mxu0 %v1243
    %1893 = vmatprep.subr.bf16.mxu0 %v1240
    %1894 = vmatpush2.bf16.msra.mxu0 %v1239
    %1895 = vmatprep.subr.bf16.mxu0 %v1236
    %1896 = vmatpush2.bf16.msra.mxu0 %v1235
    %1897 = vmatprep.subr.bf16.mxu0 %v1232
    %1898 = vmatpush2.bf16.msra.mxu0 %v1231
    %1899 = vmatprep.subr.bf16.mxu0 %v1228
    %1900 = vmatpush2.bf16.msra.mxu0 %v1227
    %1901 = vmatprep.mubr.bf16.mxu0 %v410
    %1902 = vmatmul.mubr.bf16.gmra.mxu0 %v409
    %v1903 = vpop.f32.mrf.mxu0
    %v1904 = vadd.f32 %v388, %v1903
    %v1905 = vpop.f32.mrf.mxu0
    %v1906 = vadd.f32 %v392, %v1905
    %v1907 = vpop.f32.mrf.mxu0
    %v1908 = vpop.f32.mrf.mxu0
    %1909 = vdwg.mxu0
    %1910 = vmatprep.subr.bf16.mxu0 %v1288
    %1911 = vmatpush1.bf16.msra.mxu0 %v1287
    %1912 = vmatprep.subr.bf16.mxu0 %v1284
    %1913 = vmatpush1.bf16.msra.mxu0 %v1283
    %1914 = vmatprep.subr.bf16.mxu0 %v1280
    %1915 = vmatpush1.bf16.msra.mxu0 %v1279
    %1916 = vmatprep.subr.bf16.mxu0 %v1276
    %1917 = vmatpush1.bf16.msra.mxu0 %v1275
    %1918 = vmatprep.subr.bf16.mxu0 %v1272
    %1919 = vmatpush1.bf16.msra.mxu0 %v1271
    %1920 = vmatprep.subr.bf16.mxu0 %v1268
    %1921 = vmatpush1.bf16.msra.mxu0 %v1267
    %1922 = vmatprep.subr.bf16.mxu0 %v1264
    %1923 = vmatpush1.bf16.msra.mxu0 %v1263
    %1924 = vmatprep.subr.bf16.mxu0 %v1260
    %1925 = vmatpush1.bf16.msra.mxu0 %v1259
    %1926 = vmatprep.subr.bf16.mxu0 %v1320
    %1927 = vmatpush2.bf16.msra.mxu0 %v1319
    %1928 = vmatprep.subr.bf16.mxu0 %v1316
    %1929 = vmatpush2.bf16.msra.mxu0 %v1315
    %1930 = vmatprep.subr.bf16.mxu0 %v1312
    %1931 = vmatpush2.bf16.msra.mxu0 %v1311
    %1932 = vmatprep.subr.bf16.mxu0 %v1308
    %1933 = vmatpush2.bf16.msra.mxu0 %v1307
    %1934 = vmatprep.subr.bf16.mxu0 %v1304
    %1935 = vmatpush2.bf16.msra.mxu0 %v1303
    %1936 = vmatprep.subr.bf16.mxu0 %v1300
    %1937 = vmatpush2.bf16.msra.mxu0 %v1299
    %1938 = vmatprep.subr.bf16.mxu0 %v1296
    %1939 = vmatpush2.bf16.msra.mxu0 %v1295
    %1940 = vmatprep.subr.bf16.mxu0 %v1292
    %1941 = vmatpush2.bf16.msra.mxu0 %v1291
    %1942 = vmatprep.mubr.bf16.mxu0 %v412
    %1943 = vmatmul.mubr.bf16.gmra.mxu0 %v411
    %v1944 = vpop.f32.mrf.mxu0
    %v1945 = vadd.f32 %v1904, %v1944
    %v1946 = vpop.f32.mrf.mxu0
    %v1947 = vadd.f32 %v1906, %v1946
    %v1948 = vpop.f32.mrf.mxu0
    %v1949 = vpop.f32.mrf.mxu0
    %1950 = vdwg.mxu0
    %1951 = vmatprep.subr.bf16.mxu0 %v1352
    %1952 = vmatpush1.bf16.msra.mxu0 %v1351
    %1953 = vmatprep.subr.bf16.mxu0 %v1348
    %1954 = vmatpush1.bf16.msra.mxu0 %v1347
    %1955 = vmatprep.subr.bf16.mxu0 %v1344
    %1956 = vmatpush1.bf16.msra.mxu0 %v1343
    %1957 = vmatprep.subr.bf16.mxu0 %v1340
    %1958 = vmatpush1.bf16.msra.mxu0 %v1339
    %1959 = vmatprep.subr.bf16.mxu0 %v1336
    %1960 = vmatpush1.bf16.msra.mxu0 %v1335
    %1961 = vmatprep.subr.bf16.mxu0 %v1332
    %1962 = vmatpush1.bf16.msra.mxu0 %v1331
    %1963 = vmatprep.subr.bf16.mxu0 %v1328
    %1964 = vmatpush1.bf16.msra.mxu0 %v1327
    %1965 = vmatprep.subr.bf16.mxu0 %v1324
    %1966 = vmatpush1.bf16.msra.mxu0 %v1323
    %1967 = vmatprep.subr.bf16.mxu0 %v1384
    %1968 = vmatpush2.bf16.msra.mxu0 %v1383
    %1969 = vmatprep.subr.bf16.mxu0 %v1380
    %1970 = vmatpush2.bf16.msra.mxu0 %v1379
    %1971 = vmatprep.subr.bf16.mxu0 %v1376
    %1972 = vmatpush2.bf16.msra.mxu0 %v1375
    %1973 = vmatprep.subr.bf16.mxu0 %v1372
    %1974 = vmatpush2.bf16.msra.mxu0 %v1371
    %1975 = vmatprep.subr.bf16.mxu0 %v1368
    %1976 = vmatpush2.bf16.msra.mxu0 %v1367
    %1977 = vmatprep.subr.bf16.mxu0 %v1364
    %1978 = vmatpush2.bf16.msra.mxu0 %v1363
    %1979 = vmatprep.subr.bf16.mxu0 %v1360
    %1980 = vmatpush2.bf16.msra.mxu0 %v1359
    %1981 = vmatprep.subr.bf16.mxu0 %v1356
    %1982 = vmatpush2.bf16.msra.mxu0 %v1355
    %1983 = vmatprep.mubr.bf16.mxu0 %v414
    %1984 = vmatmul.mubr.bf16.gmra.mxu0 %v413
    %v1985 = vpop.f32.mrf.mxu0
    %v1986 = vadd.f32 %v1945, %v1985
    %v1987 = vpop.f32.mrf.mxu0
    %v1988 = vadd.f32 %v1947, %v1987
    %v1989 = vpop.f32.mrf.mxu0
    %v1990 = vpop.f32.mrf.mxu0
    %1991 = vdwg.mxu0
    %1992 = vmatprep.subr.bf16.mxu0 %v1416
    %1993 = vmatpush1.bf16.msra.mxu0 %v1415
    %1994 = vmatprep.subr.bf16.mxu0 %v1412
    %1995 = vmatpush1.bf16.msra.mxu0 %v1411
    %1996 = vmatprep.subr.bf16.mxu0 %v1408
    %1997 = vmatpush1.bf16.msra.mxu0 %v1407
    %1998 = vmatprep.subr.bf16.mxu0 %v1404
    %1999 = vmatpush1.bf16.msra.mxu0 %v1403
    %2000 = vmatprep.subr.bf16.mxu0 %v1400
    %2001 = vmatpush1.bf16.msra.mxu0 %v1399
    %2002 = vmatprep.subr.bf16.mxu0 %v1396
    %2003 = vmatpush1.bf16.msra.mxu0 %v1395
    %2004 = vmatprep.subr.bf16.mxu0 %v1392
    %2005 = vmatpush1.bf16.msra.mxu0 %v1391
    %2006 = vmatprep.subr.bf16.mxu0 %v1388
    %2007 = vmatpush1.bf16.msra.mxu0 %v1387
    %2008 = vmatprep.subr.bf16.mxu0 %v1448
    %2009 = vmatpush2.bf16.msra.mxu0 %v1447
    %2010 = vmatprep.subr.bf16.mxu0 %v1444
    %2011 = vmatpush2.bf16.msra.mxu0 %v1443
    %2012 = vmatprep.subr.bf16.mxu0 %v1440
    %2013 = vmatpush2.bf16.msra.mxu0 %v1439
    %2014 = vmatprep.subr.bf16.mxu0 %v1436
    %2015 = vmatpush2.bf16.msra.mxu0 %v1435
    %2016 = vmatprep.subr.bf16.mxu0 %v1432
    %2017 = vmatpush2.bf16.msra.mxu0 %v1431
    %2018 = vmatprep.subr.bf16.mxu0 %v1428
    %2019 = vmatpush2.bf16.msra.mxu0 %v1427
    %2020 = vmatprep.subr.bf16.mxu0 %v1424
    %2021 = vmatpush2.bf16.msra.mxu0 %v1423
    %2022 = vmatprep.subr.bf16.mxu0 %v1420
    %2023 = vmatpush2.bf16.msra.mxu0 %v1419
    %2024 = vmatprep.mubr.bf16.mxu0 %v416
    %2025 = vmatmul.mubr.bf16.gmra.mxu0 %v415
    %v2026 = vpop.f32.mrf.mxu0
    %v2027 = vadd.f32 %v1986, %v2026
    %v2028 = vpop.f32.mrf.mxu0
    %v2029 = vadd.f32 %v1988, %v2028
    %v2030 = vpop.f32.mrf.mxu0
    %v2031 = vpop.f32.mrf.mxu0
    %2032 = vdwg.mxu0
    %v2033 = vmax.f32 %v1863, 0.0
    %v2034 = vmax.f32 %v1865, 0.0
    %v2035 = vmax.f32 %v2027, 0.0
    %v2036 = vmax.f32 %v2029, 0.0
    %v2037 = vpack.c.bf16 %v2033, %v2033
    %v2038 = vpack.c.bf16 %v2034, %v2034
    %v2039 = vpack.c.bf16 %v2035, %v2035
    %v2040 = vpack.c.bf16 %v2036, %v2036
    %v2041 = vld [vmem:[#allocation8] sm:$0xff]
    %v2042 = vld [vmem:[#allocation8 + $0x8] sm:$0xff]
    %v2043 = vld [vmem:[#allocation8 + $0x10] sm:$0xff]
    %v2044 = vld [vmem:[#allocation8 + $0x18] sm:$0xff]
    %v2045 = vld [vmem:[#allocation8 + $0x20] sm:$0xff]
    %v2046 = vld [vmem:[#allocation8 + $0x28] sm:$0xff]
    %v2047 = vld [vmem:[#allocation8 + $0x30] sm:$0xff]
    %v2048 = vld [vmem:[#allocation8 + $0x38] sm:$0xff]
    %v2049 = vld [vmem:[#allocation8 + $0x40] sm:$0xff]
    %v2050 = vld [vmem:[#allocation8 + $0x48] sm:$0xff]
    %v2051 = vld [vmem:[#allocation8 + $0x50] sm:$0xff]
    %v2052 = vld [vmem:[#allocation8 + $0x58] sm:$0xff]
    %v2053 = vld [vmem:[#allocation8 + $0x60] sm:$0xff]
    %v2054 = vld [vmem:[#allocation8 + $0x68] sm:$0xff]
    %v2055 = vld [vmem:[#allocation8 + $0x70] sm:$0xff]
    %v2056 = vld [vmem:[#allocation8 + $0x78] sm:$0xff]
    %v2057 = vld [vmem:[#allocation8 + $0x80] sm:$0xff]
    %v2058 = vld [vmem:[#allocation8 + $0x88] sm:$0xff]
    %v2059 = vld [vmem:[#allocation8 + $0x90] sm:$0xff]
    %v2060 = vld [vmem:[#allocation8 + $0x98] sm:$0xff]
    %v2061 = vld [vmem:[#allocation8 + $0xa0] sm:$0xff]
    %v2062 = vld [vmem:[#allocation8 + $0xa8] sm:$0xff]
    %v2063 = vld [vmem:[#allocation8 + $0xb0] sm:$0xff]
    %v2064 = vld [vmem:[#allocation8 + $0xb8] sm:$0xff]
    %v2065 = vld [vmem:[#allocation8 + $0xc0] sm:$0xff]
    %v2066 = vld [vmem:[#allocation8 + $0xc8] sm:$0xff]
    %v2067 = vld [vmem:[#allocation8 + $0xd0] sm:$0xff]
    %v2068 = vld [vmem:[#allocation8 + $0xd8] sm:$0xff]
    %v2069 = vld [vmem:[#allocation8 + $0xe0] sm:$0xff]
    %v2070 = vld [vmem:[#allocation8 + $0xe8] sm:$0xff]
    %v2071 = vld [vmem:[#allocation8 + $0xf0] sm:$0xff]
    %v2072 = vld [vmem:[#allocation8 + $0xf8] sm:$0xff]
    %v2073 = vld [vmem:[#allocation8 + $0x100] sm:$0xff]
    %v2074 = vld [vmem:[#allocation8 + $0x108] sm:$0xff]
    %v2075 = vld [vmem:[#allocation8 + $0x110] sm:$0xff]
    %v2076 = vld [vmem:[#allocation8 + $0x118] sm:$0xff]
    %v2077 = vld [vmem:[#allocation8 + $0x120] sm:$0xff]
    %v2078 = vld [vmem:[#allocation8 + $0x128] sm:$0xff]
    %v2079 = vld [vmem:[#allocation8 + $0x130] sm:$0xff]
    %v2080 = vld [vmem:[#allocation8 + $0x138] sm:$0xff]
    %v2081 = vld [vmem:[#allocation8 + $0x140] sm:$0xff]
    %v2082 = vld [vmem:[#allocation8 + $0x148] sm:$0xff]
    %v2083 = vld [vmem:[#allocation8 + $0x150] sm:$0xff]
    %v2084 = vld [vmem:[#allocation8 + $0x158] sm:$0xff]
    %v2085 = vld [vmem:[#allocation8 + $0x160] sm:$0xff]
    %v2086 = vld [vmem:[#allocation8 + $0x168] sm:$0xff]
    %v2087 = vld [vmem:[#allocation8 + $0x170] sm:$0xff]
    %v2088 = vld [vmem:[#allocation8 + $0x178] sm:$0xff]
    %v2089 = vld [vmem:[#allocation8 + $0x180] sm:$0xff]
    %v2090 = vld [vmem:[#allocation8 + $0x188] sm:$0xff]
    %v2091 = vld [vmem:[#allocation8 + $0x190] sm:$0xff]
    %v2092 = vld [vmem:[#allocation8 + $0x198] sm:$0xff]
    %v2093 = vld [vmem:[#allocation8 + $0x1a0] sm:$0xff]
    %v2094 = vld [vmem:[#allocation8 + $0x1a8] sm:$0xff]
    %v2095 = vld [vmem:[#allocation8 + $0x1b0] sm:$0xff]
    %v2096 = vld [vmem:[#allocation8 + $0x1b8] sm:$0xff]
    %v2097 = vld [vmem:[#allocation8 + $0x1c0] sm:$0xff]
    %v2098 = vld [vmem:[#allocation8 + $0x1c8] sm:$0xff]
    %v2099 = vld [vmem:[#allocation8 + $0x1d0] sm:$0xff]
    %v2100 = vld [vmem:[#allocation8 + $0x1d8] sm:$0xff]
    %v2101 = vld [vmem:[#allocation8 + $0x1e0] sm:$0xff]
    %v2102 = vld [vmem:[#allocation8 + $0x1e8] sm:$0xff]
    %v2103 = vld [vmem:[#allocation8 + $0x1f0] sm:$0xff]
    %v2104 = vld [vmem:[#allocation8 + $0x1f8] sm:$0xff]
    %v2105 = vld [vmem:[#allocation8 + $0x200] sm:$0xff]
    %v2106 = vld [vmem:[#allocation8 + $0x208] sm:$0xff]
    %v2107 = vld [vmem:[#allocation8 + $0x210] sm:$0xff]
    %v2108 = vld [vmem:[#allocation8 + $0x218] sm:$0xff]
    %v2109 = vld [vmem:[#allocation8 + $0x220] sm:$0xff]
    %v2110 = vld [vmem:[#allocation8 + $0x228] sm:$0xff]
    %v2111 = vld [vmem:[#allocation8 + $0x230] sm:$0xff]
    %v2112 = vld [vmem:[#allocation8 + $0x238] sm:$0xff]
    %v2113 = vld [vmem:[#allocation8 + $0x240] sm:$0xff]
    %v2114 = vld [vmem:[#allocation8 + $0x248] sm:$0xff]
    %v2115 = vld [vmem:[#allocation8 + $0x250] sm:$0xff]
    %v2116 = vld [vmem:[#allocation8 + $0x258] sm:$0xff]
    %v2117 = vld [vmem:[#allocation8 + $0x260] sm:$0xff]
    %v2118 = vld [vmem:[#allocation8 + $0x268] sm:$0xff]
    %v2119 = vld [vmem:[#allocation8 + $0x270] sm:$0xff]
    %v2120 = vld [vmem:[#allocation8 + $0x278] sm:$0xff]
    %v2121 = vld [vmem:[#allocation8 + $0x280] sm:$0xff]
    %v2122 = vld [vmem:[#allocation8 + $0x288] sm:$0xff]
    %v2123 = vld [vmem:[#allocation8 + $0x290] sm:$0xff]
    %v2124 = vld [vmem:[#allocation8 + $0x298] sm:$0xff]
    %v2125 = vld [vmem:[#allocation8 + $0x2a0] sm:$0xff]
    %v2126 = vld [vmem:[#allocation8 + $0x2a8] sm:$0xff]
    %v2127 = vld [vmem:[#allocation8 + $0x2b0] sm:$0xff]
    %v2128 = vld [vmem:[#allocation8 + $0x2b8] sm:$0xff]
    %v2129 = vld [vmem:[#allocation8 + $0x2c0] sm:$0xff]
    %v2130 = vld [vmem:[#allocation8 + $0x2c8] sm:$0xff]
    %v2131 = vld [vmem:[#allocation8 + $0x2d0] sm:$0xff]
    %v2132 = vld [vmem:[#allocation8 + $0x2d8] sm:$0xff]
    %v2133 = vld [vmem:[#allocation8 + $0x2e0] sm:$0xff]
    %v2134 = vld [vmem:[#allocation8 + $0x2e8] sm:$0xff]
    %v2135 = vld [vmem:[#allocation8 + $0x2f0] sm:$0xff]
    %v2136 = vld [vmem:[#allocation8 + $0x2f8] sm:$0xff]
    %v2137 = vld [vmem:[#allocation8 + $0x300] sm:$0xff]
    %v2138 = vld [vmem:[#allocation8 + $0x308] sm:$0xff]
    %v2139 = vld [vmem:[#allocation8 + $0x310] sm:$0xff]
    %v2140 = vld [vmem:[#allocation8 + $0x318] sm:$0xff]
    %v2141 = vld [vmem:[#allocation8 + $0x320] sm:$0xff]
    %v2142 = vld [vmem:[#allocation8 + $0x328] sm:$0xff]
    %v2143 = vld [vmem:[#allocation8 + $0x330] sm:$0xff]
    %v2144 = vld [vmem:[#allocation8 + $0x338] sm:$0xff]
    %v2145 = vld [vmem:[#allocation8 + $0x340] sm:$0xff]
    %v2146 = vld [vmem:[#allocation8 + $0x348] sm:$0xff]
    %v2147 = vld [vmem:[#allocation8 + $0x350] sm:$0xff]
    %v2148 = vld [vmem:[#allocation8 + $0x358] sm:$0xff]
    %v2149 = vld [vmem:[#allocation8 + $0x360] sm:$0xff]
    %v2150 = vld [vmem:[#allocation8 + $0x368] sm:$0xff]
    %v2151 = vld [vmem:[#allocation8 + $0x370] sm:$0xff]
    %v2152 = vld [vmem:[#allocation8 + $0x378] sm:$0xff]
    %v2153 = vld [vmem:[#allocation8 + $0x380] sm:$0xff]
    %v2154 = vld [vmem:[#allocation8 + $0x388] sm:$0xff]
    %v2155 = vld [vmem:[#allocation8 + $0x390] sm:$0xff]
    %v2156 = vld [vmem:[#allocation8 + $0x398] sm:$0xff]
    %v2157 = vld [vmem:[#allocation8 + $0x3a0] sm:$0xff]
    %v2158 = vld [vmem:[#allocation8 + $0x3a8] sm:$0xff]
    %v2159 = vld [vmem:[#allocation8 + $0x3b0] sm:$0xff]
    %v2160 = vld [vmem:[#allocation8 + $0x3b8] sm:$0xff]
    %v2161 = vld [vmem:[#allocation8 + $0x3c0] sm:$0xff]
    %v2162 = vld [vmem:[#allocation8 + $0x3c8] sm:$0xff]
    %v2163 = vld [vmem:[#allocation8 + $0x3d0] sm:$0xff]
    %v2164 = vld [vmem:[#allocation8 + $0x3d8] sm:$0xff]
    %v2165 = vld [vmem:[#allocation8 + $0x3e0] sm:$0xff]
    %v2166 = vld [vmem:[#allocation8 + $0x3e8] sm:$0xff]
    %v2167 = vld [vmem:[#allocation8 + $0x3f0] sm:$0xff]
    %v2168 = vld [vmem:[#allocation8 + $0x3f8] sm:$0xff]
    %v2169 = vld [vmem:[#allocation8 + $0x400] sm:$0xff]
    %v2170 = vld [vmem:[#allocation8 + $0x408] sm:$0xff]
    %v2171 = vld [vmem:[#allocation8 + $0x410] sm:$0xff]
    %v2172 = vld [vmem:[#allocation8 + $0x418] sm:$0xff]
    %v2173 = vld [vmem:[#allocation8 + $0x420] sm:$0xff]
    %v2174 = vld [vmem:[#allocation8 + $0x428] sm:$0xff]
    %v2175 = vld [vmem:[#allocation8 + $0x430] sm:$0xff]
    %v2176 = vld [vmem:[#allocation8 + $0x438] sm:$0xff]
    %v2177 = vld [vmem:[#allocation8 + $0x440] sm:$0xff]
    %v2178 = vld [vmem:[#allocation8 + $0x448] sm:$0xff]
    %v2179 = vld [vmem:[#allocation8 + $0x450] sm:$0xff]
    %v2180 = vld [vmem:[#allocation8 + $0x458] sm:$0xff]
    %v2181 = vld [vmem:[#allocation8 + $0x460] sm:$0xff]
    %v2182 = vld [vmem:[#allocation8 + $0x468] sm:$0xff]
    %v2183 = vld [vmem:[#allocation8 + $0x470] sm:$0xff]
    %v2184 = vld [vmem:[#allocation8 + $0x478] sm:$0xff]
    %v2185 = vld [vmem:[#allocation8 + $0x480] sm:$0xff]
    %v2186 = vld [vmem:[#allocation8 + $0x488] sm:$0xff]
    %v2187 = vld [vmem:[#allocation8 + $0x490] sm:$0xff]
    %v2188 = vld [vmem:[#allocation8 + $0x498] sm:$0xff]
    %v2189 = vld [vmem:[#allocation8 + $0x4a0] sm:$0xff]
    %v2190 = vld [vmem:[#allocation8 + $0x4a8] sm:$0xff]
    %v2191 = vld [vmem:[#allocation8 + $0x4b0] sm:$0xff]
    %v2192 = vld [vmem:[#allocation8 + $0x4b8] sm:$0xff]
    %v2193 = vld [vmem:[#allocation8 + $0x4c0] sm:$0xff]
    %v2194 = vld [vmem:[#allocation8 + $0x4c8] sm:$0xff]
    %v2195 = vld [vmem:[#allocation8 + $0x4d0] sm:$0xff]
    %v2196 = vld [vmem:[#allocation8 + $0x4d8] sm:$0xff]
    %v2197 = vld [vmem:[#allocation8 + $0x4e0] sm:$0xff]
    %v2198 = vld [vmem:[#allocation8 + $0x4e8] sm:$0xff]
    %v2199 = vld [vmem:[#allocation8 + $0x4f0] sm:$0xff]
    %v2200 = vld [vmem:[#allocation8 + $0x4f8] sm:$0xff]
    %v2201 = vld [vmem:[#allocation8 + $0x500] sm:$0xff]
    %v2202 = vld [vmem:[#allocation8 + $0x508] sm:$0xff]
    %v2203 = vld [vmem:[#allocation8 + $0x510] sm:$0xff]
    %v2204 = vld [vmem:[#allocation8 + $0x518] sm:$0xff]
    %v2205 = vld [vmem:[#allocation8 + $0x520] sm:$0xff]
    %v2206 = vld [vmem:[#allocation8 + $0x528] sm:$0xff]
    %v2207 = vld [vmem:[#allocation8 + $0x530] sm:$0xff]
    %v2208 = vld [vmem:[#allocation8 + $0x538] sm:$0xff]
    %v2209 = vld [vmem:[#allocation8 + $0x540] sm:$0xff]
    %v2210 = vld [vmem:[#allocation8 + $0x548] sm:$0xff]
    %v2211 = vld [vmem:[#allocation8 + $0x550] sm:$0xff]
    %v2212 = vld [vmem:[#allocation8 + $0x558] sm:$0xff]
    %v2213 = vld [vmem:[#allocation8 + $0x560] sm:$0xff]
    %v2214 = vld [vmem:[#allocation8 + $0x568] sm:$0xff]
    %v2215 = vld [vmem:[#allocation8 + $0x570] sm:$0xff]
    %v2216 = vld [vmem:[#allocation8 + $0x578] sm:$0xff]
    %v2217 = vld [vmem:[#allocation8 + $0x580] sm:$0xff]
    %v2218 = vld [vmem:[#allocation8 + $0x588] sm:$0xff]
    %v2219 = vld [vmem:[#allocation8 + $0x590] sm:$0xff]
    %v2220 = vld [vmem:[#allocation8 + $0x598] sm:$0xff]
    %v2221 = vld [vmem:[#allocation8 + $0x5a0] sm:$0xff]
    %v2222 = vld [vmem:[#allocation8 + $0x5a8] sm:$0xff]
    %v2223 = vld [vmem:[#allocation8 + $0x5b0] sm:$0xff]
    %v2224 = vld [vmem:[#allocation8 + $0x5b8] sm:$0xff]
    %v2225 = vld [vmem:[#allocation8 + $0x5c0] sm:$0xff]
    %v2226 = vld [vmem:[#allocation8 + $0x5c8] sm:$0xff]
    %v2227 = vld [vmem:[#allocation8 + $0x5d0] sm:$0xff]
    %v2228 = vld [vmem:[#allocation8 + $0x5d8] sm:$0xff]
    %v2229 = vld [vmem:[#allocation8 + $0x5e0] sm:$0xff]
    %v2230 = vld [vmem:[#allocation8 + $0x5e8] sm:$0xff]
    %v2231 = vld [vmem:[#allocation8 + $0x5f0] sm:$0xff]
    %v2232 = vld [vmem:[#allocation8 + $0x5f8] sm:$0xff]
    %v2233 = vld [vmem:[#allocation8 + $0x600] sm:$0xff]
    %v2234 = vld [vmem:[#allocation8 + $0x608] sm:$0xff]
    %v2235 = vld [vmem:[#allocation8 + $0x610] sm:$0xff]
    %v2236 = vld [vmem:[#allocation8 + $0x618] sm:$0xff]
    %v2237 = vld [vmem:[#allocation8 + $0x620] sm:$0xff]
    %v2238 = vld [vmem:[#allocation8 + $0x628] sm:$0xff]
    %v2239 = vld [vmem:[#allocation8 + $0x630] sm:$0xff]
    %v2240 = vld [vmem:[#allocation8 + $0x638] sm:$0xff]
    %v2241 = vld [vmem:[#allocation8 + $0x640] sm:$0xff]
    %v2242 = vld [vmem:[#allocation8 + $0x648] sm:$0xff]
    %v2243 = vld [vmem:[#allocation8 + $0x650] sm:$0xff]
    %v2244 = vld [vmem:[#allocation8 + $0x658] sm:$0xff]
    %v2245 = vld [vmem:[#allocation8 + $0x660] sm:$0xff]
    %v2246 = vld [vmem:[#allocation8 + $0x668] sm:$0xff]
    %v2247 = vld [vmem:[#allocation8 + $0x670] sm:$0xff]
    %v2248 = vld [vmem:[#allocation8 + $0x678] sm:$0xff]
    %v2249 = vld [vmem:[#allocation8 + $0x680] sm:$0xff]
    %v2250 = vld [vmem:[#allocation8 + $0x688] sm:$0xff]
    %v2251 = vld [vmem:[#allocation8 + $0x690] sm:$0xff]
    %v2252 = vld [vmem:[#allocation8 + $0x698] sm:$0xff]
    %v2253 = vld [vmem:[#allocation8 + $0x6a0] sm:$0xff]
    %v2254 = vld [vmem:[#allocation8 + $0x6a8] sm:$0xff]
    %v2255 = vld [vmem:[#allocation8 + $0x6b0] sm:$0xff]
    %v2256 = vld [vmem:[#allocation8 + $0x6b8] sm:$0xff]
    %v2257 = vld [vmem:[#allocation8 + $0x6c0] sm:$0xff]
    %v2258 = vld [vmem:[#allocation8 + $0x6c8] sm:$0xff]
    %v2259 = vld [vmem:[#allocation8 + $0x6d0] sm:$0xff]
    %v2260 = vld [vmem:[#allocation8 + $0x6d8] sm:$0xff]
    %v2261 = vld [vmem:[#allocation8 + $0x6e0] sm:$0xff]
    %v2262 = vld [vmem:[#allocation8 + $0x6e8] sm:$0xff]
    %v2263 = vld [vmem:[#allocation8 + $0x6f0] sm:$0xff]
    %v2264 = vld [vmem:[#allocation8 + $0x6f8] sm:$0xff]
    %v2265 = vld [vmem:[#allocation8 + $0x700] sm:$0xff]
    %v2266 = vld [vmem:[#allocation8 + $0x708] sm:$0xff]
    %v2267 = vld [vmem:[#allocation8 + $0x710] sm:$0xff]
    %v2268 = vld [vmem:[#allocation8 + $0x718] sm:$0xff]
    %v2269 = vld [vmem:[#allocation8 + $0x720] sm:$0xff]
    %v2270 = vld [vmem:[#allocation8 + $0x728] sm:$0xff]
    %v2271 = vld [vmem:[#allocation8 + $0x730] sm:$0xff]
    %v2272 = vld [vmem:[#allocation8 + $0x738] sm:$0xff]
    %v2273 = vld [vmem:[#allocation8 + $0x740] sm:$0xff]
    %v2274 = vld [vmem:[#allocation8 + $0x748] sm:$0xff]
    %v2275 = vld [vmem:[#allocation8 + $0x750] sm:$0xff]
    %v2276 = vld [vmem:[#allocation8 + $0x758] sm:$0xff]
    %v2277 = vld [vmem:[#allocation8 + $0x760] sm:$0xff]
    %v2278 = vld [vmem:[#allocation8 + $0x768] sm:$0xff]
    %v2279 = vld [vmem:[#allocation8 + $0x770] sm:$0xff]
    %v2280 = vld [vmem:[#allocation8 + $0x778] sm:$0xff]
    %v2281 = vld [vmem:[#allocation8 + $0x780] sm:$0xff]
    %v2282 = vld [vmem:[#allocation8 + $0x788] sm:$0xff]
    %v2283 = vld [vmem:[#allocation8 + $0x790] sm:$0xff]
    %v2284 = vld [vmem:[#allocation8 + $0x798] sm:$0xff]
    %v2285 = vld [vmem:[#allocation8 + $0x7a0] sm:$0xff]
    %v2286 = vld [vmem:[#allocation8 + $0x7a8] sm:$0xff]
    %v2287 = vld [vmem:[#allocation8 + $0x7b0] sm:$0xff]
    %v2288 = vld [vmem:[#allocation8 + $0x7b8] sm:$0xff]
    %v2289 = vld [vmem:[#allocation8 + $0x7c0] sm:$0xff]
    %v2290 = vld [vmem:[#allocation8 + $0x7c8] sm:$0xff]
    %v2291 = vld [vmem:[#allocation8 + $0x7d0] sm:$0xff]
    %v2292 = vld [vmem:[#allocation8 + $0x7d8] sm:$0xff]
    %v2293 = vld [vmem:[#allocation8 + $0x7e0] sm:$0xff]
    %v2294 = vld [vmem:[#allocation8 + $0x7e8] sm:$0xff]
    %v2295 = vld [vmem:[#allocation8 + $0x7f0] sm:$0xff]
    %v2296 = vld [vmem:[#allocation8 + $0x7f8] sm:$0xff]
    %v2297 = vld [vmem:[#allocation8 + $0x800] sm:$0xff]
    %v2298 = vld [vmem:[#allocation8 + $0x808] sm:$0xff]
    %v2299 = vld [vmem:[#allocation8 + $0x810] sm:$0xff]
    %v2300 = vld [vmem:[#allocation8 + $0x818] sm:$0xff]
    %v2301 = vld [vmem:[#allocation8 + $0x820] sm:$0xff]
    %v2302 = vld [vmem:[#allocation8 + $0x828] sm:$0xff]
    %v2303 = vld [vmem:[#allocation8 + $0x830] sm:$0xff]
    %v2304 = vld [vmem:[#allocation8 + $0x838] sm:$0xff]
    %v2305 = vld [vmem:[#allocation8 + $0x840] sm:$0xff]
    %v2306 = vld [vmem:[#allocation8 + $0x848] sm:$0xff]
    %v2307 = vld [vmem:[#allocation8 + $0x850] sm:$0xff]
    %v2308 = vld [vmem:[#allocation8 + $0x858] sm:$0xff]
    %v2309 = vld [vmem:[#allocation8 + $0x860] sm:$0xff]
    %v2310 = vld [vmem:[#allocation8 + $0x868] sm:$0xff]
    %v2311 = vld [vmem:[#allocation8 + $0x870] sm:$0xff]
    %v2312 = vld [vmem:[#allocation8 + $0x878] sm:$0xff]
    %v2313 = vld [vmem:[#allocation8 + $0x880] sm:$0xff]
    %v2314 = vld [vmem:[#allocation8 + $0x888] sm:$0xff]
    %v2315 = vld [vmem:[#allocation8 + $0x890] sm:$0xff]
    %v2316 = vld [vmem:[#allocation8 + $0x898] sm:$0xff]
    %v2317 = vld [vmem:[#allocation8 + $0x8a0] sm:$0xff]
    %v2318 = vld [vmem:[#allocation8 + $0x8a8] sm:$0xff]
    %v2319 = vld [vmem:[#allocation8 + $0x8b0] sm:$0xff]
    %v2320 = vld [vmem:[#allocation8 + $0x8b8] sm:$0xff]
    %v2321 = vld [vmem:[#allocation8 + $0x8c0] sm:$0xff]
    %v2322 = vld [vmem:[#allocation8 + $0x8c8] sm:$0xff]
    %v2323 = vld [vmem:[#allocation8 + $0x8d0] sm:$0xff]
    %v2324 = vld [vmem:[#allocation8 + $0x8d8] sm:$0xff]
    %v2325 = vld [vmem:[#allocation8 + $0x8e0] sm:$0xff]
    %v2326 = vld [vmem:[#allocation8 + $0x8e8] sm:$0xff]
    %v2327 = vld [vmem:[#allocation8 + $0x8f0] sm:$0xff]
    %v2328 = vld [vmem:[#allocation8 + $0x8f8] sm:$0xff]
    %v2329 = vld [vmem:[#allocation8 + $0x900] sm:$0xff]
    %v2330 = vld [vmem:[#allocation8 + $0x908] sm:$0xff]
    %v2331 = vld [vmem:[#allocation8 + $0x910] sm:$0xff]
    %v2332 = vld [vmem:[#allocation8 + $0x918] sm:$0xff]
    %v2333 = vld [vmem:[#allocation8 + $0x920] sm:$0xff]
    %v2334 = vld [vmem:[#allocation8 + $0x928] sm:$0xff]
    %v2335 = vld [vmem:[#allocation8 + $0x930] sm:$0xff]
    %v2336 = vld [vmem:[#allocation8 + $0x938] sm:$0xff]
    %v2337 = vld [vmem:[#allocation8 + $0x940] sm:$0xff]
    %v2338 = vld [vmem:[#allocation8 + $0x948] sm:$0xff]
    %v2339 = vld [vmem:[#allocation8 + $0x950] sm:$0xff]
    %v2340 = vld [vmem:[#allocation8 + $0x958] sm:$0xff]
    %v2341 = vld [vmem:[#allocation8 + $0x960] sm:$0xff]
    %v2342 = vld [vmem:[#allocation8 + $0x968] sm:$0xff]
    %v2343 = vld [vmem:[#allocation8 + $0x970] sm:$0xff]
    %v2344 = vld [vmem:[#allocation8 + $0x978] sm:$0xff]
    %v2345 = vld [vmem:[#allocation8 + $0x980] sm:$0xff]
    %v2346 = vld [vmem:[#allocation8 + $0x988] sm:$0xff]
    %v2347 = vld [vmem:[#allocation8 + $0x990] sm:$0xff]
    %v2348 = vld [vmem:[#allocation8 + $0x998] sm:$0xff]
    %v2349 = vld [vmem:[#allocation8 + $0x9a0] sm:$0xff]
    %v2350 = vld [vmem:[#allocation8 + $0x9a8] sm:$0xff]
    %v2351 = vld [vmem:[#allocation8 + $0x9b0] sm:$0xff]
    %v2352 = vld [vmem:[#allocation8 + $0x9b8] sm:$0xff]
    %v2353 = vld [vmem:[#allocation8 + $0x9c0] sm:$0xff]
    %v2354 = vld [vmem:[#allocation8 + $0x9c8] sm:$0xff]
    %v2355 = vld [vmem:[#allocation8 + $0x9d0] sm:$0xff]
    %v2356 = vld [vmem:[#allocation8 + $0x9d8] sm:$0xff]
    %v2357 = vld [vmem:[#allocation8 + $0x9e0] sm:$0xff]
    %v2358 = vld [vmem:[#allocation8 + $0x9e8] sm:$0xff]
    %v2359 = vld [vmem:[#allocation8 + $0x9f0] sm:$0xff]
    %v2360 = vld [vmem:[#allocation8 + $0x9f8] sm:$0xff]
    %v2361 = vld [vmem:[#allocation8 + $0xa00] sm:$0xff]
    %v2362 = vld [vmem:[#allocation8 + $0xa08] sm:$0xff]
    %v2363 = vld [vmem:[#allocation8 + $0xa10] sm:$0xff]
    %v2364 = vld [vmem:[#allocation8 + $0xa18] sm:$0xff]
    %v2365 = vld [vmem:[#allocation8 + $0xa20] sm:$0xff]
    %v2366 = vld [vmem:[#allocation8 + $0xa28] sm:$0xff]
    %v2367 = vld [vmem:[#allocation8 + $0xa30] sm:$0xff]
    %v2368 = vld [vmem:[#allocation8 + $0xa38] sm:$0xff]
    %v2369 = vld [vmem:[#allocation8 + $0xa40] sm:$0xff]
    %v2370 = vld [vmem:[#allocation8 + $0xa48] sm:$0xff]
    %v2371 = vld [vmem:[#allocation8 + $0xa50] sm:$0xff]
    %v2372 = vld [vmem:[#allocation8 + $0xa58] sm:$0xff]
    %v2373 = vld [vmem:[#allocation8 + $0xa60] sm:$0xff]
    %v2374 = vld [vmem:[#allocation8 + $0xa68] sm:$0xff]
    %v2375 = vld [vmem:[#allocation8 + $0xa70] sm:$0xff]
    %v2376 = vld [vmem:[#allocation8 + $0xa78] sm:$0xff]
    %v2377 = vld [vmem:[#allocation8 + $0xa80] sm:$0xff]
    %v2378 = vld [vmem:[#allocation8 + $0xa88] sm:$0xff]
    %v2379 = vld [vmem:[#allocation8 + $0xa90] sm:$0xff]
    %v2380 = vld [vmem:[#allocation8 + $0xa98] sm:$0xff]
    %v2381 = vld [vmem:[#allocation8 + $0xaa0] sm:$0xff]
    %v2382 = vld [vmem:[#allocation8 + $0xaa8] sm:$0xff]
    %v2383 = vld [vmem:[#allocation8 + $0xab0] sm:$0xff]
    %v2384 = vld [vmem:[#allocation8 + $0xab8] sm:$0xff]
    %v2385 = vld [vmem:[#allocation8 + $0xac0] sm:$0xff]
    %v2386 = vld [vmem:[#allocation8 + $0xac8] sm:$0xff]
    %v2387 = vld [vmem:[#allocation8 + $0xad0] sm:$0xff]
    %v2388 = vld [vmem:[#allocation8 + $0xad8] sm:$0xff]
    %v2389 = vld [vmem:[#allocation8 + $0xae0] sm:$0xff]
    %v2390 = vld [vmem:[#allocation8 + $0xae8] sm:$0xff]
    %v2391 = vld [vmem:[#allocation8 + $0xaf0] sm:$0xff]
    %v2392 = vld [vmem:[#allocation8 + $0xaf8] sm:$0xff]
    %v2393 = vld [vmem:[#allocation8 + $0xb00] sm:$0xff]
    %v2394 = vld [vmem:[#allocation8 + $0xb08] sm:$0xff]
    %v2395 = vld [vmem:[#allocation8 + $0xb10] sm:$0xff]
    %v2396 = vld [vmem:[#allocation8 + $0xb18] sm:$0xff]
    %v2397 = vld [vmem:[#allocation8 + $0xb20] sm:$0xff]
    %v2398 = vld [vmem:[#allocation8 + $0xb28] sm:$0xff]
    %v2399 = vld [vmem:[#allocation8 + $0xb30] sm:$0xff]
    %v2400 = vld [vmem:[#allocation8 + $0xb38] sm:$0xff]
    %v2401 = vld [vmem:[#allocation8 + $0xb40] sm:$0xff]
    %v2402 = vld [vmem:[#allocation8 + $0xb48] sm:$0xff]
    %v2403 = vld [vmem:[#allocation8 + $0xb50] sm:$0xff]
    %v2404 = vld [vmem:[#allocation8 + $0xb58] sm:$0xff]
    %v2405 = vld [vmem:[#allocation8 + $0xb60] sm:$0xff]
    %v2406 = vld [vmem:[#allocation8 + $0xb68] sm:$0xff]
    %v2407 = vld [vmem:[#allocation8 + $0xb70] sm:$0xff]
    %v2408 = vld [vmem:[#allocation8 + $0xb78] sm:$0xff]
    %v2409 = vld [vmem:[#allocation8 + $0xb80] sm:$0xff]
    %v2410 = vld [vmem:[#allocation8 + $0xb88] sm:$0xff]
    %v2411 = vld [vmem:[#allocation8 + $0xb90] sm:$0xff]
    %v2412 = vld [vmem:[#allocation8 + $0xb98] sm:$0xff]
    %v2413 = vld [vmem:[#allocation8 + $0xba0] sm:$0xff]
    %v2414 = vld [vmem:[#allocation8 + $0xba8] sm:$0xff]
    %v2415 = vld [vmem:[#allocation8 + $0xbb0] sm:$0xff]
    %v2416 = vld [vmem:[#allocation8 + $0xbb8] sm:$0xff]
    %v2417 = vld [vmem:[#allocation8 + $0xbc0] sm:$0xff]
    %v2418 = vld [vmem:[#allocation8 + $0xbc8] sm:$0xff]
    %v2419 = vld [vmem:[#allocation8 + $0xbd0] sm:$0xff]
    %v2420 = vld [vmem:[#allocation8 + $0xbd8] sm:$0xff]
    %v2421 = vld [vmem:[#allocation8 + $0xbe0] sm:$0xff]
    %v2422 = vld [vmem:[#allocation8 + $0xbe8] sm:$0xff]
    %v2423 = vld [vmem:[#allocation8 + $0xbf0] sm:$0xff]
    %v2424 = vld [vmem:[#allocation8 + $0xbf8] sm:$0xff]
    %v2425 = vld [vmem:[#allocation8 + $0xc00] sm:$0xff]
    %v2426 = vld [vmem:[#allocation8 + $0xc08] sm:$0xff]
    %v2427 = vld [vmem:[#allocation8 + $0xc10] sm:$0xff]
    %v2428 = vld [vmem:[#allocation8 + $0xc18] sm:$0xff]
    %v2429 = vld [vmem:[#allocation8 + $0xc20] sm:$0xff]
    %v2430 = vld [vmem:[#allocation8 + $0xc28] sm:$0xff]
    %v2431 = vld [vmem:[#allocation8 + $0xc30] sm:$0xff]
    %v2432 = vld [vmem:[#allocation8 + $0xc38] sm:$0xff]
    %v2433 = vld [vmem:[#allocation8 + $0xc40] sm:$0xff]
    %v2434 = vld [vmem:[#allocation8 + $0xc48] sm:$0xff]
    %v2435 = vld [vmem:[#allocation8 + $0xc50] sm:$0xff]
    %v2436 = vld [vmem:[#allocation8 + $0xc58] sm:$0xff]
    %v2437 = vld [vmem:[#allocation8 + $0xc60] sm:$0xff]
    %v2438 = vld [vmem:[#allocation8 + $0xc68] sm:$0xff]
    %v2439 = vld [vmem:[#allocation8 + $0xc70] sm:$0xff]
    %v2440 = vld [vmem:[#allocation8 + $0xc78] sm:$0xff]
    %v2441 = vld [vmem:[#allocation8 + $0xc80] sm:$0xff]
    %v2442 = vld [vmem:[#allocation8 + $0xc88] sm:$0xff]
    %v2443 = vld [vmem:[#allocation8 + $0xc90] sm:$0xff]
    %v2444 = vld [vmem:[#allocation8 + $0xc98] sm:$0xff]
    %v2445 = vld [vmem:[#allocation8 + $0xca0] sm:$0xff]
    %v2446 = vld [vmem:[#allocation8 + $0xca8] sm:$0xff]
    %v2447 = vld [vmem:[#allocation8 + $0xcb0] sm:$0xff]
    %v2448 = vld [vmem:[#allocation8 + $0xcb8] sm:$0xff]
    %v2449 = vld [vmem:[#allocation8 + $0xcc0] sm:$0xff]
    %v2450 = vld [vmem:[#allocation8 + $0xcc8] sm:$0xff]
    %v2451 = vld [vmem:[#allocation8 + $0xcd0] sm:$0xff]
    %v2452 = vld [vmem:[#allocation8 + $0xcd8] sm:$0xff]
    %v2453 = vld [vmem:[#allocation8 + $0xce0] sm:$0xff]
    %v2454 = vld [vmem:[#allocation8 + $0xce8] sm:$0xff]
    %v2455 = vld [vmem:[#allocation8 + $0xcf0] sm:$0xff]
    %v2456 = vld [vmem:[#allocation8 + $0xcf8] sm:$0xff]
    %v2457 = vld [vmem:[#allocation8 + $0xd00] sm:$0xff]
    %v2458 = vld [vmem:[#allocation8 + $0xd08] sm:$0xff]
    %v2459 = vld [vmem:[#allocation8 + $0xd10] sm:$0xff]
    %v2460 = vld [vmem:[#allocation8 + $0xd18] sm:$0xff]
    %v2461 = vld [vmem:[#allocation8 + $0xd20] sm:$0xff]
    %v2462 = vld [vmem:[#allocation8 + $0xd28] sm:$0xff]
    %v2463 = vld [vmem:[#allocation8 + $0xd30] sm:$0xff]
    %v2464 = vld [vmem:[#allocation8 + $0xd38] sm:$0xff]
    %v2465 = vld [vmem:[#allocation8 + $0xd40] sm:$0xff]
    %v2466 = vld [vmem:[#allocation8 + $0xd48] sm:$0xff]
    %v2467 = vld [vmem:[#allocation8 + $0xd50] sm:$0xff]
    %v2468 = vld [vmem:[#allocation8 + $0xd58] sm:$0xff]
    %v2469 = vld [vmem:[#allocation8 + $0xd60] sm:$0xff]
    %v2470 = vld [vmem:[#allocation8 + $0xd68] sm:$0xff]
    %v2471 = vld [vmem:[#allocation8 + $0xd70] sm:$0xff]
    %v2472 = vld [vmem:[#allocation8 + $0xd78] sm:$0xff]
    %v2473 = vld [vmem:[#allocation8 + $0xd80] sm:$0xff]
    %v2474 = vld [vmem:[#allocation8 + $0xd88] sm:$0xff]
    %v2475 = vld [vmem:[#allocation8 + $0xd90] sm:$0xff]
    %v2476 = vld [vmem:[#allocation8 + $0xd98] sm:$0xff]
    %v2477 = vld [vmem:[#allocation8 + $0xda0] sm:$0xff]
    %v2478 = vld [vmem:[#allocation8 + $0xda8] sm:$0xff]
    %v2479 = vld [vmem:[#allocation8 + $0xdb0] sm:$0xff]
    %v2480 = vld [vmem:[#allocation8 + $0xdb8] sm:$0xff]
    %v2481 = vld [vmem:[#allocation8 + $0xdc0] sm:$0xff]
    %v2482 = vld [vmem:[#allocation8 + $0xdc8] sm:$0xff]
    %v2483 = vld [vmem:[#allocation8 + $0xdd0] sm:$0xff]
    %v2484 = vld [vmem:[#allocation8 + $0xdd8] sm:$0xff]
    %v2485 = vld [vmem:[#allocation8 + $0xde0] sm:$0xff]
    %v2486 = vld [vmem:[#allocation8 + $0xde8] sm:$0xff]
    %v2487 = vld [vmem:[#allocation8 + $0xdf0] sm:$0xff]
    %v2488 = vld [vmem:[#allocation8 + $0xdf8] sm:$0xff]
    %v2489 = vld [vmem:[#allocation8 + $0xe00] sm:$0xff]
    %v2490 = vld [vmem:[#allocation8 + $0xe08] sm:$0xff]
    %v2491 = vld [vmem:[#allocation8 + $0xe10] sm:$0xff]
    %v2492 = vld [vmem:[#allocation8 + $0xe18] sm:$0xff]
    %v2493 = vld [vmem:[#allocation8 + $0xe20] sm:$0xff]
    %v2494 = vld [vmem:[#allocation8 + $0xe28] sm:$0xff]
    %v2495 = vld [vmem:[#allocation8 + $0xe30] sm:$0xff]
    %v2496 = vld [vmem:[#allocation8 + $0xe38] sm:$0xff]
    %v2497 = vld [vmem:[#allocation8 + $0xe40] sm:$0xff]
    %v2498 = vld [vmem:[#allocation8 + $0xe48] sm:$0xff]
    %v2499 = vld [vmem:[#allocation8 + $0xe50] sm:$0xff]
    %v2500 = vld [vmem:[#allocation8 + $0xe58] sm:$0xff]
    %v2501 = vld [vmem:[#allocation8 + $0xe60] sm:$0xff]
    %v2502 = vld [vmem:[#allocation8 + $0xe68] sm:$0xff]
    %v2503 = vld [vmem:[#allocation8 + $0xe70] sm:$0xff]
    %v2504 = vld [vmem:[#allocation8 + $0xe78] sm:$0xff]
    %v2505 = vld [vmem:[#allocation8 + $0xe80] sm:$0xff]
    %v2506 = vld [vmem:[#allocation8 + $0xe88] sm:$0xff]
    %v2507 = vld [vmem:[#allocation8 + $0xe90] sm:$0xff]
    %v2508 = vld [vmem:[#allocation8 + $0xe98] sm:$0xff]
    %v2509 = vld [vmem:[#allocation8 + $0xea0] sm:$0xff]
    %v2510 = vld [vmem:[#allocation8 + $0xea8] sm:$0xff]
    %v2511 = vld [vmem:[#allocation8 + $0xeb0] sm:$0xff]
    %v2512 = vld [vmem:[#allocation8 + $0xeb8] sm:$0xff]
    %v2513 = vld [vmem:[#allocation8 + $0xec0] sm:$0xff]
    %v2514 = vld [vmem:[#allocation8 + $0xec8] sm:$0xff]
    %v2515 = vld [vmem:[#allocation8 + $0xed0] sm:$0xff]
    %v2516 = vld [vmem:[#allocation8 + $0xed8] sm:$0xff]
    %v2517 = vld [vmem:[#allocation8 + $0xee0] sm:$0xff]
    %v2518 = vld [vmem:[#allocation8 + $0xee8] sm:$0xff]
    %v2519 = vld [vmem:[#allocation8 + $0xef0] sm:$0xff]
    %v2520 = vld [vmem:[#allocation8 + $0xef8] sm:$0xff]
    %v2521 = vld [vmem:[#allocation8 + $0xf00] sm:$0xff]
    %v2522 = vld [vmem:[#allocation8 + $0xf08] sm:$0xff]
    %v2523 = vld [vmem:[#allocation8 + $0xf10] sm:$0xff]
    %v2524 = vld [vmem:[#allocation8 + $0xf18] sm:$0xff]
    %v2525 = vld [vmem:[#allocation8 + $0xf20] sm:$0xff]
    %v2526 = vld [vmem:[#allocation8 + $0xf28] sm:$0xff]
    %v2527 = vld [vmem:[#allocation8 + $0xf30] sm:$0xff]
    %v2528 = vld [vmem:[#allocation8 + $0xf38] sm:$0xff]
    %v2529 = vld [vmem:[#allocation8 + $0xf40] sm:$0xff]
    %v2530 = vld [vmem:[#allocation8 + $0xf48] sm:$0xff]
    %v2531 = vld [vmem:[#allocation8 + $0xf50] sm:$0xff]
    %v2532 = vld [vmem:[#allocation8 + $0xf58] sm:$0xff]
    %v2533 = vld [vmem:[#allocation8 + $0xf60] sm:$0xff]
    %v2534 = vld [vmem:[#allocation8 + $0xf68] sm:$0xff]
    %v2535 = vld [vmem:[#allocation8 + $0xf70] sm:$0xff]
    %v2536 = vld [vmem:[#allocation8 + $0xf78] sm:$0xff]
    %v2537 = vld [vmem:[#allocation8 + $0xf80] sm:$0xff]
    %v2538 = vld [vmem:[#allocation8 + $0xf88] sm:$0xff]
    %v2539 = vld [vmem:[#allocation8 + $0xf90] sm:$0xff]
    %v2540 = vld [vmem:[#allocation8 + $0xf98] sm:$0xff]
    %v2541 = vld [vmem:[#allocation8 + $0xfa0] sm:$0xff]
    %v2542 = vld [vmem:[#allocation8 + $0xfa8] sm:$0xff]
    %v2543 = vld [vmem:[#allocation8 + $0xfb0] sm:$0xff]
    %v2544 = vld [vmem:[#allocation8 + $0xfb8] sm:$0xff]
    %v2545 = vld [vmem:[#allocation8 + $0xfc0] sm:$0xff]
    %v2546 = vld [vmem:[#allocation8 + $0xfc8] sm:$0xff]
    %v2547 = vld [vmem:[#allocation8 + $0xfd0] sm:$0xff]
    %v2548 = vld [vmem:[#allocation8 + $0xfd8] sm:$0xff]
    %v2549 = vld [vmem:[#allocation8 + $0xfe0] sm:$0xff]
    %v2550 = vld [vmem:[#allocation8 + $0xfe8] sm:$0xff]
    %v2551 = vld [vmem:[#allocation8 + $0xff0] sm:$0xff]
    %v2552 = vld [vmem:[#allocation8 + $0xff8] sm:$0xff]
    %v2553 = vld [vmem:[#allocation10] sm:$0xff]
    %v2554 = vld [vmem:[#allocation10 + $0x8] sm:$0xff]
    %v2557 = vlaneseq
    %v2558 = vshrl.u32 %v2557, 7
    %v2559 = vsub.s32 0, %v2558
    %v2560 = vrot.slane %v2553, %v2559
    %v2561 = vlaneseq
    %v2562 = vshrl.u32 %v2561, 7
    %v2563 = vsub.s32 1, %v2562
    %v2564 = vrot.slane %v2553, %v2563
    %v2565 = vlaneseq
    %v2566 = vshrl.u32 %v2565, 7
    %v2567 = vsub.s32 2, %v2566
    %v2568 = vrot.slane %v2553, %v2567
    %v2569 = vlaneseq
    %v2570 = vshrl.u32 %v2569, 7
    %v2571 = vsub.s32 3, %v2570
    %v2572 = vrot.slane %v2553, %v2571
    %v2573 = vlaneseq
    %v2574 = vshrl.u32 %v2573, 7
    %v2575 = vsub.s32 4, %v2574
    %v2576 = vrot.slane %v2553, %v2575
    %v2577 = vlaneseq
    %v2578 = vshrl.u32 %v2577, 7
    %v2579 = vsub.s32 5, %v2578
    %v2580 = vrot.slane %v2553, %v2579
    %v2581 = vlaneseq
    %v2582 = vshrl.u32 %v2581, 7
    %v2583 = vsub.s32 6, %v2582
    %v2584 = vrot.slane %v2553, %v2583
    %v2585 = vlaneseq
    %v2586 = vshrl.u32 %v2585, 7
    %v2587 = vsub.s32 7, %v2586
    %v2588 = vrot.slane %v2553, %v2587
    %v2589 = vlaneseq
    %v2590 = vshrl.u32 %v2589, 7
    %v2591 = vsub.s32 0, %v2590
    %v2592 = vrot.slane %v2554, %v2591
    %v2593 = vlaneseq
    %v2594 = vshrl.u32 %v2593, 7
    %v2595 = vsub.s32 1, %v2594
    %v2596 = vrot.slane %v2554, %v2595
    %v2597 = vlaneseq
    %v2598 = vshrl.u32 %v2597, 7
    %v2599 = vsub.s32 2, %v2598
    %v2600 = vrot.slane %v2554, %v2599
    %v2601 = vlaneseq
    %v2602 = vshrl.u32 %v2601, 7
    %v2603 = vsub.s32 3, %v2602
    %v2604 = vrot.slane %v2554, %v2603
    %v2605 = vlaneseq
    %v2606 = vshrl.u32 %v2605, 7
    %v2607 = vsub.s32 4, %v2606
    %v2608 = vrot.slane %v2554, %v2607
    %v2609 = vlaneseq
    %v2610 = vshrl.u32 %v2609, 7
    %v2611 = vsub.s32 5, %v2610
    %v2612 = vrot.slane %v2554, %v2611
    %v2613 = vlaneseq
    %v2614 = vshrl.u32 %v2613, 7
    %v2615 = vsub.s32 6, %v2614
    %v2616 = vrot.slane %v2554, %v2615
    %v2617 = vlaneseq
    %v2618 = vshrl.u32 %v2617, 7
    %v2619 = vsub.s32 7, %v2618
    %v2620 = vrot.slane %v2554, %v2619
    %v3149 = vunpack.c.l.b16 %v2041
    %v3150 = vunpack.c.h.b16 %v2041
    %v3151 = vunpack.c.l.b16 %v2042
    %v3152 = vunpack.c.h.b16 %v2042
    %v3153 = vunpack.c.l.b16 %v2043
    %v3154 = vunpack.c.h.b16 %v2043
    %v3155 = vunpack.c.l.b16 %v2044
    %v3156 = vunpack.c.h.b16 %v2044
    %v3157 = vunpack.c.l.b16 %v2045
    %v3158 = vunpack.c.h.b16 %v2045
    %v3159 = vunpack.c.l.b16 %v2046
    %v3160 = vunpack.c.h.b16 %v2046
    %v3161 = vunpack.c.l.b16 %v2047
    %v3162 = vunpack.c.h.b16 %v2047
    %v3163 = vunpack.c.l.b16 %v2048
    %v3164 = vunpack.c.h.b16 %v2048
    %v3165 = vunpack.c.l.b16 %v2049
    %v3166 = vunpack.c.h.b16 %v2049
    %v3167 = vunpack.c.l.b16 %v2050
    %v3168 = vunpack.c.h.b16 %v2050
    %v3169 = vunpack.c.l.b16 %v2051
    %v3170 = vunpack.c.h.b16 %v2051
    %v3171 = vunpack.c.l.b16 %v2052
    %v3172 = vunpack.c.h.b16 %v2052
    %v3173 = vunpack.c.l.b16 %v2053
    %v3174 = vunpack.c.h.b16 %v2053
    %v3175 = vunpack.c.l.b16 %v2054
    %v3176 = vunpack.c.h.b16 %v2054
    %v3177 = vunpack.c.l.b16 %v2055
    %v3178 = vunpack.c.h.b16 %v2055
    %v3179 = vunpack.c.l.b16 %v2056
    %v3180 = vunpack.c.h.b16 %v2056
    %v3181 = vunpack.c.l.b16 %v2057
    %v3182 = vunpack.c.h.b16 %v2057
    %v3183 = vunpack.c.l.b16 %v2058
    %v3184 = vunpack.c.h.b16 %v2058
    %v3185 = vunpack.c.l.b16 %v2059
    %v3186 = vunpack.c.h.b16 %v2059
    %v3187 = vunpack.c.l.b16 %v2060
    %v3188 = vunpack.c.h.b16 %v2060
    %v3189 = vunpack.c.l.b16 %v2061
    %v3190 = vunpack.c.h.b16 %v2061
    %v3191 = vunpack.c.l.b16 %v2062
    %v3192 = vunpack.c.h.b16 %v2062
    %v3193 = vunpack.c.l.b16 %v2063
    %v3194 = vunpack.c.h.b16 %v2063
    %v3195 = vunpack.c.l.b16 %v2064
    %v3196 = vunpack.c.h.b16 %v2064
    %v3197 = vunpack.c.l.b16 %v2065
    %v3198 = vunpack.c.h.b16 %v2065
    %v3199 = vunpack.c.l.b16 %v2066
    %v3200 = vunpack.c.h.b16 %v2066
    %v3201 = vunpack.c.l.b16 %v2067
    %v3202 = vunpack.c.h.b16 %v2067
    %v3203 = vunpack.c.l.b16 %v2068
    %v3204 = vunpack.c.h.b16 %v2068
    %v3205 = vunpack.c.l.b16 %v2069
    %v3206 = vunpack.c.h.b16 %v2069
    %v3207 = vunpack.c.l.b16 %v2070
    %v3208 = vunpack.c.h.b16 %v2070
    %v3209 = vunpack.c.l.b16 %v2071
    %v3210 = vunpack.c.h.b16 %v2071
    %v3211 = vunpack.c.l.b16 %v2072
    %v3212 = vunpack.c.h.b16 %v2072
    %v3213 = vunpack.c.l.b16 %v2073
    %v3214 = vunpack.c.h.b16 %v2073
    %v3215 = vunpack.c.l.b16 %v2074
    %v3216 = vunpack.c.h.b16 %v2074
    %v3217 = vunpack.c.l.b16 %v2075
    %v3218 = vunpack.c.h.b16 %v2075
    %v3219 = vunpack.c.l.b16 %v2076
    %v3220 = vunpack.c.h.b16 %v2076
    %v3221 = vunpack.c.l.b16 %v2077
    %v3222 = vunpack.c.h.b16 %v2077
    %v3223 = vunpack.c.l.b16 %v2078
    %v3224 = vunpack.c.h.b16 %v2078
    %v3225 = vunpack.c.l.b16 %v2079
    %v3226 = vunpack.c.h.b16 %v2079
    %v3227 = vunpack.c.l.b16 %v2080
    %v3228 = vunpack.c.h.b16 %v2080
    %v3229 = vunpack.c.l.b16 %v2081
    %v3230 = vunpack.c.h.b16 %v2081
    %v3231 = vunpack.c.l.b16 %v2082
    %v3232 = vunpack.c.h.b16 %v2082
    %v3233 = vunpack.c.l.b16 %v2083
    %v3234 = vunpack.c.h.b16 %v2083
    %v3235 = vunpack.c.l.b16 %v2084
    %v3236 = vunpack.c.h.b16 %v2084
    %v3237 = vunpack.c.l.b16 %v2085
    %v3238 = vunpack.c.h.b16 %v2085
    %v3239 = vunpack.c.l.b16 %v2086
    %v3240 = vunpack.c.h.b16 %v2086
    %v3241 = vunpack.c.l.b16 %v2087
    %v3242 = vunpack.c.h.b16 %v2087
    %v3243 = vunpack.c.l.b16 %v2088
    %v3244 = vunpack.c.h.b16 %v2088
    %v3245 = vunpack.c.l.b16 %v2089
    %v3246 = vunpack.c.h.b16 %v2089
    %v3247 = vunpack.c.l.b16 %v2090
    %v3248 = vunpack.c.h.b16 %v2090
    %v3249 = vunpack.c.l.b16 %v2091
    %v3250 = vunpack.c.h.b16 %v2091
    %v3251 = vunpack.c.l.b16 %v2092
    %v3252 = vunpack.c.h.b16 %v2092
    %v3253 = vunpack.c.l.b16 %v2093
    %v3254 = vunpack.c.h.b16 %v2093
    %v3255 = vunpack.c.l.b16 %v2094
    %v3256 = vunpack.c.h.b16 %v2094
    %v3257 = vunpack.c.l.b16 %v2095
    %v3258 = vunpack.c.h.b16 %v2095
    %v3259 = vunpack.c.l.b16 %v2096
    %v3260 = vunpack.c.h.b16 %v2096
    %v3261 = vunpack.c.l.b16 %v2097
    %v3262 = vunpack.c.h.b16 %v2097
    %v3263 = vunpack.c.l.b16 %v2098
    %v3264 = vunpack.c.h.b16 %v2098
    %v3265 = vunpack.c.l.b16 %v2099
    %v3266 = vunpack.c.h.b16 %v2099
    %v3267 = vunpack.c.l.b16 %v2100
    %v3268 = vunpack.c.h.b16 %v2100
    %v3269 = vunpack.c.l.b16 %v2101
    %v3270 = vunpack.c.h.b16 %v2101
    %v3271 = vunpack.c.l.b16 %v2102
    %v3272 = vunpack.c.h.b16 %v2102
    %v3273 = vunpack.c.l.b16 %v2103
    %v3274 = vunpack.c.h.b16 %v2103
    %v3275 = vunpack.c.l.b16 %v2104
    %v3276 = vunpack.c.h.b16 %v2104
    %v3277 = vunpack.c.l.b16 %v2105
    %v3278 = vunpack.c.h.b16 %v2105
    %v3279 = vunpack.c.l.b16 %v2106
    %v3280 = vunpack.c.h.b16 %v2106
    %v3281 = vunpack.c.l.b16 %v2107
    %v3282 = vunpack.c.h.b16 %v2107
    %v3283 = vunpack.c.l.b16 %v2108
    %v3284 = vunpack.c.h.b16 %v2108
    %v3285 = vunpack.c.l.b16 %v2109
    %v3286 = vunpack.c.h.b16 %v2109
    %v3287 = vunpack.c.l.b16 %v2110
    %v3288 = vunpack.c.h.b16 %v2110
    %v3289 = vunpack.c.l.b16 %v2111
    %v3290 = vunpack.c.h.b16 %v2111
    %v3291 = vunpack.c.l.b16 %v2112
    %v3292 = vunpack.c.h.b16 %v2112
    %v3293 = vunpack.c.l.b16 %v2113
    %v3294 = vunpack.c.h.b16 %v2113
    %v3295 = vunpack.c.l.b16 %v2114
    %v3296 = vunpack.c.h.b16 %v2114
    %v3297 = vunpack.c.l.b16 %v2115
    %v3298 = vunpack.c.h.b16 %v2115
    %v3299 = vunpack.c.l.b16 %v2116
    %v3300 = vunpack.c.h.b16 %v2116
    %v3301 = vunpack.c.l.b16 %v2117
    %v3302 = vunpack.c.h.b16 %v2117
    %v3303 = vunpack.c.l.b16 %v2118
    %v3304 = vunpack.c.h.b16 %v2118
    %v3305 = vunpack.c.l.b16 %v2119
    %v3306 = vunpack.c.h.b16 %v2119
    %v3307 = vunpack.c.l.b16 %v2120
    %v3308 = vunpack.c.h.b16 %v2120
    %v3309 = vunpack.c.l.b16 %v2121
    %v3310 = vunpack.c.h.b16 %v2121
    %v3311 = vunpack.c.l.b16 %v2122
    %v3312 = vunpack.c.h.b16 %v2122
    %v3313 = vunpack.c.l.b16 %v2123
    %v3314 = vunpack.c.h.b16 %v2123
    %v3315 = vunpack.c.l.b16 %v2124
    %v3316 = vunpack.c.h.b16 %v2124
    %v3317 = vunpack.c.l.b16 %v2125
    %v3318 = vunpack.c.h.b16 %v2125
    %v3319 = vunpack.c.l.b16 %v2126
    %v3320 = vunpack.c.h.b16 %v2126
    %v3321 = vunpack.c.l.b16 %v2127
    %v3322 = vunpack.c.h.b16 %v2127
    %v3323 = vunpack.c.l.b16 %v2128
    %v3324 = vunpack.c.h.b16 %v2128
    %v3325 = vunpack.c.l.b16 %v2129
    %v3326 = vunpack.c.h.b16 %v2129
    %v3327 = vunpack.c.l.b16 %v2130
    %v3328 = vunpack.c.h.b16 %v2130
    %v3329 = vunpack.c.l.b16 %v2131
    %v3330 = vunpack.c.h.b16 %v2131
    %v3331 = vunpack.c.l.b16 %v2132
    %v3332 = vunpack.c.h.b16 %v2132
    %v3333 = vunpack.c.l.b16 %v2133
    %v3334 = vunpack.c.h.b16 %v2133
    %v3335 = vunpack.c.l.b16 %v2134
    %v3336 = vunpack.c.h.b16 %v2134
    %v3337 = vunpack.c.l.b16 %v2135
    %v3338 = vunpack.c.h.b16 %v2135
    %v3339 = vunpack.c.l.b16 %v2136
    %v3340 = vunpack.c.h.b16 %v2136
    %v3341 = vunpack.c.l.b16 %v2137
    %v3342 = vunpack.c.h.b16 %v2137
    %v3343 = vunpack.c.l.b16 %v2138
    %v3344 = vunpack.c.h.b16 %v2138
    %v3345 = vunpack.c.l.b16 %v2139
    %v3346 = vunpack.c.h.b16 %v2139
    %v3347 = vunpack.c.l.b16 %v2140
    %v3348 = vunpack.c.h.b16 %v2140
    %v3349 = vunpack.c.l.b16 %v2141
    %v3350 = vunpack.c.h.b16 %v2141
    %v3351 = vunpack.c.l.b16 %v2142
    %v3352 = vunpack.c.h.b16 %v2142
    %v3353 = vunpack.c.l.b16 %v2143
    %v3354 = vunpack.c.h.b16 %v2143
    %v3355 = vunpack.c.l.b16 %v2144
    %v3356 = vunpack.c.h.b16 %v2144
    %v3357 = vunpack.c.l.b16 %v2145
    %v3358 = vunpack.c.h.b16 %v2145
    %v3359 = vunpack.c.l.b16 %v2146
    %v3360 = vunpack.c.h.b16 %v2146
    %v3361 = vunpack.c.l.b16 %v2147
    %v3362 = vunpack.c.h.b16 %v2147
    %v3363 = vunpack.c.l.b16 %v2148
    %v3364 = vunpack.c.h.b16 %v2148
    %v3365 = vunpack.c.l.b16 %v2149
    %v3366 = vunpack.c.h.b16 %v2149
    %v3367 = vunpack.c.l.b16 %v2150
    %v3368 = vunpack.c.h.b16 %v2150
    %v3369 = vunpack.c.l.b16 %v2151
    %v3370 = vunpack.c.h.b16 %v2151
    %v3371 = vunpack.c.l.b16 %v2152
    %v3372 = vunpack.c.h.b16 %v2152
    %v3373 = vunpack.c.l.b16 %v2153
    %v3374 = vunpack.c.h.b16 %v2153
    %v3375 = vunpack.c.l.b16 %v2154
    %v3376 = vunpack.c.h.b16 %v2154
    %v3377 = vunpack.c.l.b16 %v2155
    %v3378 = vunpack.c.h.b16 %v2155
    %v3379 = vunpack.c.l.b16 %v2156
    %v3380 = vunpack.c.h.b16 %v2156
    %v3381 = vunpack.c.l.b16 %v2157
    %v3382 = vunpack.c.h.b16 %v2157
    %v3383 = vunpack.c.l.b16 %v2158
    %v3384 = vunpack.c.h.b16 %v2158
    %v3385 = vunpack.c.l.b16 %v2159
    %v3386 = vunpack.c.h.b16 %v2159
    %v3387 = vunpack.c.l.b16 %v2160
    %v3388 = vunpack.c.h.b16 %v2160
    %v3389 = vunpack.c.l.b16 %v2161
    %v3390 = vunpack.c.h.b16 %v2161
    %v3391 = vunpack.c.l.b16 %v2162
    %v3392 = vunpack.c.h.b16 %v2162
    %v3393 = vunpack.c.l.b16 %v2163
    %v3394 = vunpack.c.h.b16 %v2163
    %v3395 = vunpack.c.l.b16 %v2164
    %v3396 = vunpack.c.h.b16 %v2164
    %v3397 = vunpack.c.l.b16 %v2165
    %v3398 = vunpack.c.h.b16 %v2165
    %v3399 = vunpack.c.l.b16 %v2166
    %v3400 = vunpack.c.h.b16 %v2166
    %v3401 = vunpack.c.l.b16 %v2167
    %v3402 = vunpack.c.h.b16 %v2167
    %v3403 = vunpack.c.l.b16 %v2168
    %v3404 = vunpack.c.h.b16 %v2168
    %v3405 = vunpack.c.l.b16 %v2169
    %v3406 = vunpack.c.h.b16 %v2169
    %v3407 = vunpack.c.l.b16 %v2170
    %v3408 = vunpack.c.h.b16 %v2170
    %v3409 = vunpack.c.l.b16 %v2171
    %v3410 = vunpack.c.h.b16 %v2171
    %v3411 = vunpack.c.l.b16 %v2172
    %v3412 = vunpack.c.h.b16 %v2172
    %v3413 = vunpack.c.l.b16 %v2173
    %v3414 = vunpack.c.h.b16 %v2173
    %v3415 = vunpack.c.l.b16 %v2174
    %v3416 = vunpack.c.h.b16 %v2174
    %v3417 = vunpack.c.l.b16 %v2175
    %v3418 = vunpack.c.h.b16 %v2175
    %v3419 = vunpack.c.l.b16 %v2176
    %v3420 = vunpack.c.h.b16 %v2176
    %v3421 = vunpack.c.l.b16 %v2177
    %v3422 = vunpack.c.h.b16 %v2177
    %v3423 = vunpack.c.l.b16 %v2178
    %v3424 = vunpack.c.h.b16 %v2178
    %v3425 = vunpack.c.l.b16 %v2179
    %v3426 = vunpack.c.h.b16 %v2179
    %v3427 = vunpack.c.l.b16 %v2180
    %v3428 = vunpack.c.h.b16 %v2180
    %v3429 = vunpack.c.l.b16 %v2181
    %v3430 = vunpack.c.h.b16 %v2181
    %v3431 = vunpack.c.l.b16 %v2182
    %v3432 = vunpack.c.h.b16 %v2182
    %v3433 = vunpack.c.l.b16 %v2183
    %v3434 = vunpack.c.h.b16 %v2183
    %v3435 = vunpack.c.l.b16 %v2184
    %v3436 = vunpack.c.h.b16 %v2184
    %v3437 = vunpack.c.l.b16 %v2185
    %v3438 = vunpack.c.h.b16 %v2185
    %v3439 = vunpack.c.l.b16 %v2186
    %v3440 = vunpack.c.h.b16 %v2186
    %v3441 = vunpack.c.l.b16 %v2187
    %v3442 = vunpack.c.h.b16 %v2187
    %v3443 = vunpack.c.l.b16 %v2188
    %v3444 = vunpack.c.h.b16 %v2188
    %v3445 = vunpack.c.l.b16 %v2189
    %v3446 = vunpack.c.h.b16 %v2189
    %v3447 = vunpack.c.l.b16 %v2190
    %v3448 = vunpack.c.h.b16 %v2190
    %v3449 = vunpack.c.l.b16 %v2191
    %v3450 = vunpack.c.h.b16 %v2191
    %v3451 = vunpack.c.l.b16 %v2192
    %v3452 = vunpack.c.h.b16 %v2192
    %v3453 = vunpack.c.l.b16 %v2193
    %v3454 = vunpack.c.h.b16 %v2193
    %v3455 = vunpack.c.l.b16 %v2194
    %v3456 = vunpack.c.h.b16 %v2194
    %v3457 = vunpack.c.l.b16 %v2195
    %v3458 = vunpack.c.h.b16 %v2195
    %v3459 = vunpack.c.l.b16 %v2196
    %v3460 = vunpack.c.h.b16 %v2196
    %v3461 = vunpack.c.l.b16 %v2197
    %v3462 = vunpack.c.h.b16 %v2197
    %v3463 = vunpack.c.l.b16 %v2198
    %v3464 = vunpack.c.h.b16 %v2198
    %v3465 = vunpack.c.l.b16 %v2199
    %v3466 = vunpack.c.h.b16 %v2199
    %v3467 = vunpack.c.l.b16 %v2200
    %v3468 = vunpack.c.h.b16 %v2200
    %v3469 = vunpack.c.l.b16 %v2201
    %v3470 = vunpack.c.h.b16 %v2201
    %v3471 = vunpack.c.l.b16 %v2202
    %v3472 = vunpack.c.h.b16 %v2202
    %v3473 = vunpack.c.l.b16 %v2203
    %v3474 = vunpack.c.h.b16 %v2203
    %v3475 = vunpack.c.l.b16 %v2204
    %v3476 = vunpack.c.h.b16 %v2204
    %v3477 = vunpack.c.l.b16 %v2205
    %v3478 = vunpack.c.h.b16 %v2205
    %v3479 = vunpack.c.l.b16 %v2206
    %v3480 = vunpack.c.h.b16 %v2206
    %v3481 = vunpack.c.l.b16 %v2207
    %v3482 = vunpack.c.h.b16 %v2207
    %v3483 = vunpack.c.l.b16 %v2208
    %v3484 = vunpack.c.h.b16 %v2208
    %v3485 = vunpack.c.l.b16 %v2209
    %v3486 = vunpack.c.h.b16 %v2209
    %v3487 = vunpack.c.l.b16 %v2210
    %v3488 = vunpack.c.h.b16 %v2210
    %v3489 = vunpack.c.l.b16 %v2211
    %v3490 = vunpack.c.h.b16 %v2211
    %v3491 = vunpack.c.l.b16 %v2212
    %v3492 = vunpack.c.h.b16 %v2212
    %v3493 = vunpack.c.l.b16 %v2213
    %v3494 = vunpack.c.h.b16 %v2213
    %v3495 = vunpack.c.l.b16 %v2214
    %v3496 = vunpack.c.h.b16 %v2214
    %v3497 = vunpack.c.l.b16 %v2215
    %v3498 = vunpack.c.h.b16 %v2215
    %v3499 = vunpack.c.l.b16 %v2216
    %v3500 = vunpack.c.h.b16 %v2216
    %v3501 = vunpack.c.l.b16 %v2217
    %v3502 = vunpack.c.h.b16 %v2217
    %v3503 = vunpack.c.l.b16 %v2218
    %v3504 = vunpack.c.h.b16 %v2218
    %v3505 = vunpack.c.l.b16 %v2219
    %v3506 = vunpack.c.h.b16 %v2219
    %v3507 = vunpack.c.l.b16 %v2220
    %v3508 = vunpack.c.h.b16 %v2220
    %v3509 = vunpack.c.l.b16 %v2221
    %v3510 = vunpack.c.h.b16 %v2221
    %v3511 = vunpack.c.l.b16 %v2222
    %v3512 = vunpack.c.h.b16 %v2222
    %v3513 = vunpack.c.l.b16 %v2223
    %v3514 = vunpack.c.h.b16 %v2223
    %v3515 = vunpack.c.l.b16 %v2224
    %v3516 = vunpack.c.h.b16 %v2224
    %v3517 = vunpack.c.l.b16 %v2225
    %v3518 = vunpack.c.h.b16 %v2225
    %v3519 = vunpack.c.l.b16 %v2226
    %v3520 = vunpack.c.h.b16 %v2226
    %v3521 = vunpack.c.l.b16 %v2227
    %v3522 = vunpack.c.h.b16 %v2227
    %v3523 = vunpack.c.l.b16 %v2228
    %v3524 = vunpack.c.h.b16 %v2228
    %v3525 = vunpack.c.l.b16 %v2229
    %v3526 = vunpack.c.h.b16 %v2229
    %v3527 = vunpack.c.l.b16 %v2230
    %v3528 = vunpack.c.h.b16 %v2230
    %v3529 = vunpack.c.l.b16 %v2231
    %v3530 = vunpack.c.h.b16 %v2231
    %v3531 = vunpack.c.l.b16 %v2232
    %v3532 = vunpack.c.h.b16 %v2232
    %v3533 = vunpack.c.l.b16 %v2233
    %v3534 = vunpack.c.h.b16 %v2233
    %v3535 = vunpack.c.l.b16 %v2234
    %v3536 = vunpack.c.h.b16 %v2234
    %v3537 = vunpack.c.l.b16 %v2235
    %v3538 = vunpack.c.h.b16 %v2235
    %v3539 = vunpack.c.l.b16 %v2236
    %v3540 = vunpack.c.h.b16 %v2236
    %v3541 = vunpack.c.l.b16 %v2237
    %v3542 = vunpack.c.h.b16 %v2237
    %v3543 = vunpack.c.l.b16 %v2238
    %v3544 = vunpack.c.h.b16 %v2238
    %v3545 = vunpack.c.l.b16 %v2239
    %v3546 = vunpack.c.h.b16 %v2239
    %v3547 = vunpack.c.l.b16 %v2240
    %v3548 = vunpack.c.h.b16 %v2240
    %v3549 = vunpack.c.l.b16 %v2241
    %v3550 = vunpack.c.h.b16 %v2241
    %v3551 = vunpack.c.l.b16 %v2242
    %v3552 = vunpack.c.h.b16 %v2242
    %v3553 = vunpack.c.l.b16 %v2243
    %v3554 = vunpack.c.h.b16 %v2243
    %v3555 = vunpack.c.l.b16 %v2244
    %v3556 = vunpack.c.h.b16 %v2244
    %v3557 = vunpack.c.l.b16 %v2245
    %v3558 = vunpack.c.h.b16 %v2245
    %v3559 = vunpack.c.l.b16 %v2246
    %v3560 = vunpack.c.h.b16 %v2246
    %v3561 = vunpack.c.l.b16 %v2247
    %v3562 = vunpack.c.h.b16 %v2247
    %v3563 = vunpack.c.l.b16 %v2248
    %v3564 = vunpack.c.h.b16 %v2248
    %v3565 = vunpack.c.l.b16 %v2249
    %v3566 = vunpack.c.h.b16 %v2249
    %v3567 = vunpack.c.l.b16 %v2250
    %v3568 = vunpack.c.h.b16 %v2250
    %v3569 = vunpack.c.l.b16 %v2251
    %v3570 = vunpack.c.h.b16 %v2251
    %v3571 = vunpack.c.l.b16 %v2252
    %v3572 = vunpack.c.h.b16 %v2252
    %v3573 = vunpack.c.l.b16 %v2253
    %v3574 = vunpack.c.h.b16 %v2253
    %v3575 = vunpack.c.l.b16 %v2254
    %v3576 = vunpack.c.h.b16 %v2254
    %v3577 = vunpack.c.l.b16 %v2255
    %v3578 = vunpack.c.h.b16 %v2255
    %v3579 = vunpack.c.l.b16 %v2256
    %v3580 = vunpack.c.h.b16 %v2256
    %v3581 = vunpack.c.l.b16 %v2257
    %v3582 = vunpack.c.h.b16 %v2257
    %v3583 = vunpack.c.l.b16 %v2258
    %v3584 = vunpack.c.h.b16 %v2258
    %v3585 = vunpack.c.l.b16 %v2259
    %v3586 = vunpack.c.h.b16 %v2259
    %v3587 = vunpack.c.l.b16 %v2260
    %v3588 = vunpack.c.h.b16 %v2260
    %v3589 = vunpack.c.l.b16 %v2261
    %v3590 = vunpack.c.h.b16 %v2261
    %v3591 = vunpack.c.l.b16 %v2262
    %v3592 = vunpack.c.h.b16 %v2262
    %v3593 = vunpack.c.l.b16 %v2263
    %v3594 = vunpack.c.h.b16 %v2263
    %v3595 = vunpack.c.l.b16 %v2264
    %v3596 = vunpack.c.h.b16 %v2264
    %v3597 = vunpack.c.l.b16 %v2265
    %v3598 = vunpack.c.h.b16 %v2265
    %v3599 = vunpack.c.l.b16 %v2266
    %v3600 = vunpack.c.h.b16 %v2266
    %v3601 = vunpack.c.l.b16 %v2267
    %v3602 = vunpack.c.h.b16 %v2267
    %v3603 = vunpack.c.l.b16 %v2268
    %v3604 = vunpack.c.h.b16 %v2268
    %v3605 = vunpack.c.l.b16 %v2269
    %v3606 = vunpack.c.h.b16 %v2269
    %v3607 = vunpack.c.l.b16 %v2270
    %v3608 = vunpack.c.h.b16 %v2270
    %v3609 = vunpack.c.l.b16 %v2271
    %v3610 = vunpack.c.h.b16 %v2271
    %v3611 = vunpack.c.l.b16 %v2272
    %v3612 = vunpack.c.h.b16 %v2272
    %v3613 = vunpack.c.l.b16 %v2273
    %v3614 = vunpack.c.h.b16 %v2273
    %v3615 = vunpack.c.l.b16 %v2274
    %v3616 = vunpack.c.h.b16 %v2274
    %v3617 = vunpack.c.l.b16 %v2275
    %v3618 = vunpack.c.h.b16 %v2275
    %v3619 = vunpack.c.l.b16 %v2276
    %v3620 = vunpack.c.h.b16 %v2276
    %v3621 = vunpack.c.l.b16 %v2277
    %v3622 = vunpack.c.h.b16 %v2277
    %v3623 = vunpack.c.l.b16 %v2278
    %v3624 = vunpack.c.h.b16 %v2278
    %v3625 = vunpack.c.l.b16 %v2279
    %v3626 = vunpack.c.h.b16 %v2279
    %v3627 = vunpack.c.l.b16 %v2280
    %v3628 = vunpack.c.h.b16 %v2280
    %v3629 = vunpack.c.l.b16 %v2281
    %v3630 = vunpack.c.h.b16 %v2281
    %v3631 = vunpack.c.l.b16 %v2282
    %v3632 = vunpack.c.h.b16 %v2282
    %v3633 = vunpack.c.l.b16 %v2283
    %v3634 = vunpack.c.h.b16 %v2283
    %v3635 = vunpack.c.l.b16 %v2284
    %v3636 = vunpack.c.h.b16 %v2284
    %v3637 = vunpack.c.l.b16 %v2285
    %v3638 = vunpack.c.h.b16 %v2285
    %v3639 = vunpack.c.l.b16 %v2286
    %v3640 = vunpack.c.h.b16 %v2286
    %v3641 = vunpack.c.l.b16 %v2287
    %v3642 = vunpack.c.h.b16 %v2287
    %v3643 = vunpack.c.l.b16 %v2288
    %v3644 = vunpack.c.h.b16 %v2288
    %v3645 = vunpack.c.l.b16 %v2289
    %v3646 = vunpack.c.h.b16 %v2289
    %v3647 = vunpack.c.l.b16 %v2290
    %v3648 = vunpack.c.h.b16 %v2290
    %v3649 = vunpack.c.l.b16 %v2291
    %v3650 = vunpack.c.h.b16 %v2291
    %v3651 = vunpack.c.l.b16 %v2292
    %v3652 = vunpack.c.h.b16 %v2292
    %v3653 = vunpack.c.l.b16 %v2293
    %v3654 = vunpack.c.h.b16 %v2293
    %v3655 = vunpack.c.l.b16 %v2294
    %v3656 = vunpack.c.h.b16 %v2294
    %v3657 = vunpack.c.l.b16 %v2295
    %v3658 = vunpack.c.h.b16 %v2295
    %v3659 = vunpack.c.l.b16 %v2296
    %v3660 = vunpack.c.h.b16 %v2296
    %v3661 = vunpack.c.l.b16 %v2297
    %v3662 = vunpack.c.h.b16 %v2297
    %v3663 = vunpack.c.l.b16 %v2298
    %v3664 = vunpack.c.h.b16 %v2298
    %v3665 = vunpack.c.l.b16 %v2299
    %v3666 = vunpack.c.h.b16 %v2299
    %v3667 = vunpack.c.l.b16 %v2300
    %v3668 = vunpack.c.h.b16 %v2300
    %v3669 = vunpack.c.l.b16 %v2301
    %v3670 = vunpack.c.h.b16 %v2301
    %v3671 = vunpack.c.l.b16 %v2302
    %v3672 = vunpack.c.h.b16 %v2302
    %v3673 = vunpack.c.l.b16 %v2303
    %v3674 = vunpack.c.h.b16 %v2303
    %v3675 = vunpack.c.l.b16 %v2304
    %v3676 = vunpack.c.h.b16 %v2304
    %v3677 = vunpack.c.l.b16 %v2305
    %v3678 = vunpack.c.h.b16 %v2305
    %v3679 = vunpack.c.l.b16 %v2306
    %v3680 = vunpack.c.h.b16 %v2306
    %v3681 = vunpack.c.l.b16 %v2307
    %v3682 = vunpack.c.h.b16 %v2307
    %v3683 = vunpack.c.l.b16 %v2308
    %v3684 = vunpack.c.h.b16 %v2308
    %v3685 = vunpack.c.l.b16 %v2309
    %v3686 = vunpack.c.h.b16 %v2309
    %v3687 = vunpack.c.l.b16 %v2310
    %v3688 = vunpack.c.h.b16 %v2310
    %v3689 = vunpack.c.l.b16 %v2311
    %v3690 = vunpack.c.h.b16 %v2311
    %v3691 = vunpack.c.l.b16 %v2312
    %v3692 = vunpack.c.h.b16 %v2312
    %v3693 = vunpack.c.l.b16 %v2313
    %v3694 = vunpack.c.h.b16 %v2313
    %v3695 = vunpack.c.l.b16 %v2314
    %v3696 = vunpack.c.h.b16 %v2314
    %v3697 = vunpack.c.l.b16 %v2315
    %v3698 = vunpack.c.h.b16 %v2315
    %v3699 = vunpack.c.l.b16 %v2316
    %v3700 = vunpack.c.h.b16 %v2316
    %v3701 = vunpack.c.l.b16 %v2317
    %v3702 = vunpack.c.h.b16 %v2317
    %v3703 = vunpack.c.l.b16 %v2318
    %v3704 = vunpack.c.h.b16 %v2318
    %v3705 = vunpack.c.l.b16 %v2319
    %v3706 = vunpack.c.h.b16 %v2319
    %v3707 = vunpack.c.l.b16 %v2320
    %v3708 = vunpack.c.h.b16 %v2320
    %v3709 = vunpack.c.l.b16 %v2321
    %v3710 = vunpack.c.h.b16 %v2321
    %v3711 = vunpack.c.l.b16 %v2322
    %v3712 = vunpack.c.h.b16 %v2322
    %v3713 = vunpack.c.l.b16 %v2323
    %v3714 = vunpack.c.h.b16 %v2323
    %v3715 = vunpack.c.l.b16 %v2324
    %v3716 = vunpack.c.h.b16 %v2324
    %v3717 = vunpack.c.l.b16 %v2325
    %v3718 = vunpack.c.h.b16 %v2325
    %v3719 = vunpack.c.l.b16 %v2326
    %v3720 = vunpack.c.h.b16 %v2326
    %v3721 = vunpack.c.l.b16 %v2327
    %v3722 = vunpack.c.h.b16 %v2327
    %v3723 = vunpack.c.l.b16 %v2328
    %v3724 = vunpack.c.h.b16 %v2328
    %v3725 = vunpack.c.l.b16 %v2329
    %v3726 = vunpack.c.h.b16 %v2329
    %v3727 = vunpack.c.l.b16 %v2330
    %v3728 = vunpack.c.h.b16 %v2330
    %v3729 = vunpack.c.l.b16 %v2331
    %v3730 = vunpack.c.h.b16 %v2331
    %v3731 = vunpack.c.l.b16 %v2332
    %v3732 = vunpack.c.h.b16 %v2332
    %v3733 = vunpack.c.l.b16 %v2333
    %v3734 = vunpack.c.h.b16 %v2333
    %v3735 = vunpack.c.l.b16 %v2334
    %v3736 = vunpack.c.h.b16 %v2334
    %v3737 = vunpack.c.l.b16 %v2335
    %v3738 = vunpack.c.h.b16 %v2335
    %v3739 = vunpack.c.l.b16 %v2336
    %v3740 = vunpack.c.h.b16 %v2336
    %v3741 = vunpack.c.l.b16 %v2337
    %v3742 = vunpack.c.h.b16 %v2337
    %v3743 = vunpack.c.l.b16 %v2338
    %v3744 = vunpack.c.h.b16 %v2338
    %v3745 = vunpack.c.l.b16 %v2339
    %v3746 = vunpack.c.h.b16 %v2339
    %v3747 = vunpack.c.l.b16 %v2340
    %v3748 = vunpack.c.h.b16 %v2340
    %v3749 = vunpack.c.l.b16 %v2341
    %v3750 = vunpack.c.h.b16 %v2341
    %v3751 = vunpack.c.l.b16 %v2342
    %v3752 = vunpack.c.h.b16 %v2342
    %v3753 = vunpack.c.l.b16 %v2343
    %v3754 = vunpack.c.h.b16 %v2343
    %v3755 = vunpack.c.l.b16 %v2344
    %v3756 = vunpack.c.h.b16 %v2344
    %v3757 = vunpack.c.l.b16 %v2345
    %v3758 = vunpack.c.h.b16 %v2345
    %v3759 = vunpack.c.l.b16 %v2346
    %v3760 = vunpack.c.h.b16 %v2346
    %v3761 = vunpack.c.l.b16 %v2347
    %v3762 = vunpack.c.h.b16 %v2347
    %v3763 = vunpack.c.l.b16 %v2348
    %v3764 = vunpack.c.h.b16 %v2348
    %v3765 = vunpack.c.l.b16 %v2349
    %v3766 = vunpack.c.h.b16 %v2349
    %v3767 = vunpack.c.l.b16 %v2350
    %v3768 = vunpack.c.h.b16 %v2350
    %v3769 = vunpack.c.l.b16 %v2351
    %v3770 = vunpack.c.h.b16 %v2351
    %v3771 = vunpack.c.l.b16 %v2352
    %v3772 = vunpack.c.h.b16 %v2352
    %v3773 = vunpack.c.l.b16 %v2353
    %v3774 = vunpack.c.h.b16 %v2353
    %v3775 = vunpack.c.l.b16 %v2354
    %v3776 = vunpack.c.h.b16 %v2354
    %v3777 = vunpack.c.l.b16 %v2355
    %v3778 = vunpack.c.h.b16 %v2355
    %v3779 = vunpack.c.l.b16 %v2356
    %v3780 = vunpack.c.h.b16 %v2356
    %v3781 = vunpack.c.l.b16 %v2357
    %v3782 = vunpack.c.h.b16 %v2357
    %v3783 = vunpack.c.l.b16 %v2358
    %v3784 = vunpack.c.h.b16 %v2358
    %v3785 = vunpack.c.l.b16 %v2359
    %v3786 = vunpack.c.h.b16 %v2359
    %v3787 = vunpack.c.l.b16 %v2360
    %v3788 = vunpack.c.h.b16 %v2360
    %v3789 = vunpack.c.l.b16 %v2361
    %v3790 = vunpack.c.h.b16 %v2361
    %v3791 = vunpack.c.l.b16 %v2362
    %v3792 = vunpack.c.h.b16 %v2362
    %v3793 = vunpack.c.l.b16 %v2363
    %v3794 = vunpack.c.h.b16 %v2363
    %v3795 = vunpack.c.l.b16 %v2364
    %v3796 = vunpack.c.h.b16 %v2364
    %v3797 = vunpack.c.l.b16 %v2365
    %v3798 = vunpack.c.h.b16 %v2365
    %v3799 = vunpack.c.l.b16 %v2366
    %v3800 = vunpack.c.h.b16 %v2366
    %v3801 = vunpack.c.l.b16 %v2367
    %v3802 = vunpack.c.h.b16 %v2367
    %v3803 = vunpack.c.l.b16 %v2368
    %v3804 = vunpack.c.h.b16 %v2368
    %v3805 = vunpack.c.l.b16 %v2369
    %v3806 = vunpack.c.h.b16 %v2369
    %v3807 = vunpack.c.l.b16 %v2370
    %v3808 = vunpack.c.h.b16 %v2370
    %v3809 = vunpack.c.l.b16 %v2371
    %v3810 = vunpack.c.h.b16 %v2371
    %v3811 = vunpack.c.l.b16 %v2372
    %v3812 = vunpack.c.h.b16 %v2372
    %v3813 = vunpack.c.l.b16 %v2373
    %v3814 = vunpack.c.h.b16 %v2373
    %v3815 = vunpack.c.l.b16 %v2374
    %v3816 = vunpack.c.h.b16 %v2374
    %v3817 = vunpack.c.l.b16 %v2375
    %v3818 = vunpack.c.h.b16 %v2375
    %v3819 = vunpack.c.l.b16 %v2376
    %v3820 = vunpack.c.h.b16 %v2376
    %v3821 = vunpack.c.l.b16 %v2377
    %v3822 = vunpack.c.h.b16 %v2377
    %v3823 = vunpack.c.l.b16 %v2378
    %v3824 = vunpack.c.h.b16 %v2378
    %v3825 = vunpack.c.l.b16 %v2379
    %v3826 = vunpack.c.h.b16 %v2379
    %v3827 = vunpack.c.l.b16 %v2380
    %v3828 = vunpack.c.h.b16 %v2380
    %v3829 = vunpack.c.l.b16 %v2381
    %v3830 = vunpack.c.h.b16 %v2381
    %v3831 = vunpack.c.l.b16 %v2382
    %v3832 = vunpack.c.h.b16 %v2382
    %v3833 = vunpack.c.l.b16 %v2383
    %v3834 = vunpack.c.h.b16 %v2383
    %v3835 = vunpack.c.l.b16 %v2384
    %v3836 = vunpack.c.h.b16 %v2384
    %v3837 = vunpack.c.l.b16 %v2385
    %v3838 = vunpack.c.h.b16 %v2385
    %v3839 = vunpack.c.l.b16 %v2386
    %v3840 = vunpack.c.h.b16 %v2386
    %v3841 = vunpack.c.l.b16 %v2387
    %v3842 = vunpack.c.h.b16 %v2387
    %v3843 = vunpack.c.l.b16 %v2388
    %v3844 = vunpack.c.h.b16 %v2388
    %v3845 = vunpack.c.l.b16 %v2389
    %v3846 = vunpack.c.h.b16 %v2389
    %v3847 = vunpack.c.l.b16 %v2390
    %v3848 = vunpack.c.h.b16 %v2390
    %v3849 = vunpack.c.l.b16 %v2391
    %v3850 = vunpack.c.h.b16 %v2391
    %v3851 = vunpack.c.l.b16 %v2392
    %v3852 = vunpack.c.h.b16 %v2392
    %v3853 = vunpack.c.l.b16 %v2393
    %v3854 = vunpack.c.h.b16 %v2393
    %v3855 = vunpack.c.l.b16 %v2394
    %v3856 = vunpack.c.h.b16 %v2394
    %v3857 = vunpack.c.l.b16 %v2395
    %v3858 = vunpack.c.h.b16 %v2395
    %v3859 = vunpack.c.l.b16 %v2396
    %v3860 = vunpack.c.h.b16 %v2396
    %v3861 = vunpack.c.l.b16 %v2397
    %v3862 = vunpack.c.h.b16 %v2397
    %v3863 = vunpack.c.l.b16 %v2398
    %v3864 = vunpack.c.h.b16 %v2398
    %v3865 = vunpack.c.l.b16 %v2399
    %v3866 = vunpack.c.h.b16 %v2399
    %v3867 = vunpack.c.l.b16 %v2400
    %v3868 = vunpack.c.h.b16 %v2400
    %v3869 = vunpack.c.l.b16 %v2401
    %v3870 = vunpack.c.h.b16 %v2401
    %v3871 = vunpack.c.l.b16 %v2402
    %v3872 = vunpack.c.h.b16 %v2402
    %v3873 = vunpack.c.l.b16 %v2403
    %v3874 = vunpack.c.h.b16 %v2403
    %v3875 = vunpack.c.l.b16 %v2404
    %v3876 = vunpack.c.h.b16 %v2404
    %v3877 = vunpack.c.l.b16 %v2405
    %v3878 = vunpack.c.h.b16 %v2405
    %v3879 = vunpack.c.l.b16 %v2406
    %v3880 = vunpack.c.h.b16 %v2406
    %v3881 = vunpack.c.l.b16 %v2407
    %v3882 = vunpack.c.h.b16 %v2407
    %v3883 = vunpack.c.l.b16 %v2408
    %v3884 = vunpack.c.h.b16 %v2408
    %v3885 = vunpack.c.l.b16 %v2409
    %v3886 = vunpack.c.h.b16 %v2409
    %v3887 = vunpack.c.l.b16 %v2410
    %v3888 = vunpack.c.h.b16 %v2410
    %v3889 = vunpack.c.l.b16 %v2411
    %v3890 = vunpack.c.h.b16 %v2411
    %v3891 = vunpack.c.l.b16 %v2412
    %v3892 = vunpack.c.h.b16 %v2412
    %v3893 = vunpack.c.l.b16 %v2413
    %v3894 = vunpack.c.h.b16 %v2413
    %v3895 = vunpack.c.l.b16 %v2414
    %v3896 = vunpack.c.h.b16 %v2414
    %v3897 = vunpack.c.l.b16 %v2415
    %v3898 = vunpack.c.h.b16 %v2415
    %v3899 = vunpack.c.l.b16 %v2416
    %v3900 = vunpack.c.h.b16 %v2416
    %v3901 = vunpack.c.l.b16 %v2417
    %v3902 = vunpack.c.h.b16 %v2417
    %v3903 = vunpack.c.l.b16 %v2418
    %v3904 = vunpack.c.h.b16 %v2418
    %v3905 = vunpack.c.l.b16 %v2419
    %v3906 = vunpack.c.h.b16 %v2419
    %v3907 = vunpack.c.l.b16 %v2420
    %v3908 = vunpack.c.h.b16 %v2420
    %v3909 = vunpack.c.l.b16 %v2421
    %v3910 = vunpack.c.h.b16 %v2421
    %v3911 = vunpack.c.l.b16 %v2422
    %v3912 = vunpack.c.h.b16 %v2422
    %v3913 = vunpack.c.l.b16 %v2423
    %v3914 = vunpack.c.h.b16 %v2423
    %v3915 = vunpack.c.l.b16 %v2424
    %v3916 = vunpack.c.h.b16 %v2424
    %v3917 = vunpack.c.l.b16 %v2425
    %v3918 = vunpack.c.h.b16 %v2425
    %v3919 = vunpack.c.l.b16 %v2426
    %v3920 = vunpack.c.h.b16 %v2426
    %v3921 = vunpack.c.l.b16 %v2427
    %v3922 = vunpack.c.h.b16 %v2427
    %v3923 = vunpack.c.l.b16 %v2428
    %v3924 = vunpack.c.h.b16 %v2428
    %v3925 = vunpack.c.l.b16 %v2429
    %v3926 = vunpack.c.h.b16 %v2429
    %v3927 = vunpack.c.l.b16 %v2430
    %v3928 = vunpack.c.h.b16 %v2430
    %v3929 = vunpack.c.l.b16 %v2431
    %v3930 = vunpack.c.h.b16 %v2431
    %v3931 = vunpack.c.l.b16 %v2432
    %v3932 = vunpack.c.h.b16 %v2432
    %v3933 = vunpack.c.l.b16 %v2433
    %v3934 = vunpack.c.h.b16 %v2433
    %v3935 = vunpack.c.l.b16 %v2434
    %v3936 = vunpack.c.h.b16 %v2434
    %v3937 = vunpack.c.l.b16 %v2435
    %v3938 = vunpack.c.h.b16 %v2435
    %v3939 = vunpack.c.l.b16 %v2436
    %v3940 = vunpack.c.h.b16 %v2436
    %v3941 = vunpack.c.l.b16 %v2437
    %v3942 = vunpack.c.h.b16 %v2437
    %v3943 = vunpack.c.l.b16 %v2438
    %v3944 = vunpack.c.h.b16 %v2438
    %v3945 = vunpack.c.l.b16 %v2439
    %v3946 = vunpack.c.h.b16 %v2439
    %v3947 = vunpack.c.l.b16 %v2440
    %v3948 = vunpack.c.h.b16 %v2440
    %v3949 = vunpack.c.l.b16 %v2441
    %v3950 = vunpack.c.h.b16 %v2441
    %v3951 = vunpack.c.l.b16 %v2442
    %v3952 = vunpack.c.h.b16 %v2442
    %v3953 = vunpack.c.l.b16 %v2443
    %v3954 = vunpack.c.h.b16 %v2443
    %v3955 = vunpack.c.l.b16 %v2444
    %v3956 = vunpack.c.h.b16 %v2444
    %v3957 = vunpack.c.l.b16 %v2445
    %v3958 = vunpack.c.h.b16 %v2445
    %v3959 = vunpack.c.l.b16 %v2446
    %v3960 = vunpack.c.h.b16 %v2446
    %v3961 = vunpack.c.l.b16 %v2447
    %v3962 = vunpack.c.h.b16 %v2447
    %v3963 = vunpack.c.l.b16 %v2448
    %v3964 = vunpack.c.h.b16 %v2448
    %v3965 = vunpack.c.l.b16 %v2449
    %v3966 = vunpack.c.h.b16 %v2449
    %v3967 = vunpack.c.l.b16 %v2450
    %v3968 = vunpack.c.h.b16 %v2450
    %v3969 = vunpack.c.l.b16 %v2451
    %v3970 = vunpack.c.h.b16 %v2451
    %v3971 = vunpack.c.l.b16 %v2452
    %v3972 = vunpack.c.h.b16 %v2452
    %v3973 = vunpack.c.l.b16 %v2453
    %v3974 = vunpack.c.h.b16 %v2453
    %v3975 = vunpack.c.l.b16 %v2454
    %v3976 = vunpack.c.h.b16 %v2454
    %v3977 = vunpack.c.l.b16 %v2455
    %v3978 = vunpack.c.h.b16 %v2455
    %v3979 = vunpack.c.l.b16 %v2456
    %v3980 = vunpack.c.h.b16 %v2456
    %v3981 = vunpack.c.l.b16 %v2457
    %v3982 = vunpack.c.h.b16 %v2457
    %v3983 = vunpack.c.l.b16 %v2458
    %v3984 = vunpack.c.h.b16 %v2458
    %v3985 = vunpack.c.l.b16 %v2459
    %v3986 = vunpack.c.h.b16 %v2459
    %v3987 = vunpack.c.l.b16 %v2460
    %v3988 = vunpack.c.h.b16 %v2460
    %v3989 = vunpack.c.l.b16 %v2461
    %v3990 = vunpack.c.h.b16 %v2461
    %v3991 = vunpack.c.l.b16 %v2462
    %v3992 = vunpack.c.h.b16 %v2462
    %v3993 = vunpack.c.l.b16 %v2463
    %v3994 = vunpack.c.h.b16 %v2463
    %v3995 = vunpack.c.l.b16 %v2464
    %v3996 = vunpack.c.h.b16 %v2464
    %v3997 = vunpack.c.l.b16 %v2465
    %v3998 = vunpack.c.h.b16 %v2465
    %v3999 = vunpack.c.l.b16 %v2466
    %v4000 = vunpack.c.h.b16 %v2466
    %v4001 = vunpack.c.l.b16 %v2467
    %v4002 = vunpack.c.h.b16 %v2467
    %v4003 = vunpack.c.l.b16 %v2468
    %v4004 = vunpack.c.h.b16 %v2468
    %v4005 = vunpack.c.l.b16 %v2469
    %v4006 = vunpack.c.h.b16 %v2469
    %v4007 = vunpack.c.l.b16 %v2470
    %v4008 = vunpack.c.h.b16 %v2470
    %v4009 = vunpack.c.l.b16 %v2471
    %v4010 = vunpack.c.h.b16 %v2471
    %v4011 = vunpack.c.l.b16 %v2472
    %v4012 = vunpack.c.h.b16 %v2472
    %v4013 = vunpack.c.l.b16 %v2473
    %v4014 = vunpack.c.h.b16 %v2473
    %v4015 = vunpack.c.l.b16 %v2474
    %v4016 = vunpack.c.h.b16 %v2474
    %v4017 = vunpack.c.l.b16 %v2475
    %v4018 = vunpack.c.h.b16 %v2475
    %v4019 = vunpack.c.l.b16 %v2476
    %v4020 = vunpack.c.h.b16 %v2476
    %v4021 = vunpack.c.l.b16 %v2477
    %v4022 = vunpack.c.h.b16 %v2477
    %v4023 = vunpack.c.l.b16 %v2478
    %v4024 = vunpack.c.h.b16 %v2478
    %v4025 = vunpack.c.l.b16 %v2479
    %v4026 = vunpack.c.h.b16 %v2479
    %v4027 = vunpack.c.l.b16 %v2480
    %v4028 = vunpack.c.h.b16 %v2480
    %v4029 = vunpack.c.l.b16 %v2481
    %v4030 = vunpack.c.h.b16 %v2481
    %v4031 = vunpack.c.l.b16 %v2482
    %v4032 = vunpack.c.h.b16 %v2482
    %v4033 = vunpack.c.l.b16 %v2483
    %v4034 = vunpack.c.h.b16 %v2483
    %v4035 = vunpack.c.l.b16 %v2484
    %v4036 = vunpack.c.h.b16 %v2484
    %v4037 = vunpack.c.l.b16 %v2485
    %v4038 = vunpack.c.h.b16 %v2485
    %v4039 = vunpack.c.l.b16 %v2486
    %v4040 = vunpack.c.h.b16 %v2486
    %v4041 = vunpack.c.l.b16 %v2487
    %v4042 = vunpack.c.h.b16 %v2487
    %v4043 = vunpack.c.l.b16 %v2488
    %v4044 = vunpack.c.h.b16 %v2488
    %v4045 = vunpack.c.l.b16 %v2489
    %v4046 = vunpack.c.h.b16 %v2489
    %v4047 = vunpack.c.l.b16 %v2490
    %v4048 = vunpack.c.h.b16 %v2490
    %v4049 = vunpack.c.l.b16 %v2491
    %v4050 = vunpack.c.h.b16 %v2491
    %v4051 = vunpack.c.l.b16 %v2492
    %v4052 = vunpack.c.h.b16 %v2492
    %v4053 = vunpack.c.l.b16 %v2493
    %v4054 = vunpack.c.h.b16 %v2493
    %v4055 = vunpack.c.l.b16 %v2494
    %v4056 = vunpack.c.h.b16 %v2494
    %v4057 = vunpack.c.l.b16 %v2495
    %v4058 = vunpack.c.h.b16 %v2495
    %v4059 = vunpack.c.l.b16 %v2496
    %v4060 = vunpack.c.h.b16 %v2496
    %v4061 = vunpack.c.l.b16 %v2497
    %v4062 = vunpack.c.h.b16 %v2497
    %v4063 = vunpack.c.l.b16 %v2498
    %v4064 = vunpack.c.h.b16 %v2498
    %v4065 = vunpack.c.l.b16 %v2499
    %v4066 = vunpack.c.h.b16 %v2499
    %v4067 = vunpack.c.l.b16 %v2500
    %v4068 = vunpack.c.h.b16 %v2500
    %v4069 = vunpack.c.l.b16 %v2501
    %v4070 = vunpack.c.h.b16 %v2501
    %v4071 = vunpack.c.l.b16 %v2502
    %v4072 = vunpack.c.h.b16 %v2502
    %v4073 = vunpack.c.l.b16 %v2503
    %v4074 = vunpack.c.h.b16 %v2503
    %v4075 = vunpack.c.l.b16 %v2504
    %v4076 = vunpack.c.h.b16 %v2504
    %v4077 = vunpack.c.l.b16 %v2505
    %v4078 = vunpack.c.h.b16 %v2505
    %v4079 = vunpack.c.l.b16 %v2506
    %v4080 = vunpack.c.h.b16 %v2506
    %v4081 = vunpack.c.l.b16 %v2507
    %v4082 = vunpack.c.h.b16 %v2507
    %v4083 = vunpack.c.l.b16 %v2508
    %v4084 = vunpack.c.h.b16 %v2508
    %v4085 = vunpack.c.l.b16 %v2509
    %v4086 = vunpack.c.h.b16 %v2509
    %v4087 = vunpack.c.l.b16 %v2510
    %v4088 = vunpack.c.h.b16 %v2510
    %v4089 = vunpack.c.l.b16 %v2511
    %v4090 = vunpack.c.h.b16 %v2511
    %v4091 = vunpack.c.l.b16 %v2512
    %v4092 = vunpack.c.h.b16 %v2512
    %v4093 = vunpack.c.l.b16 %v2513
    %v4094 = vunpack.c.h.b16 %v2513
    %v4095 = vunpack.c.l.b16 %v2514
    %v4096 = vunpack.c.h.b16 %v2514
    %v4097 = vunpack.c.l.b16 %v2515
    %v4098 = vunpack.c.h.b16 %v2515
    %v4099 = vunpack.c.l.b16 %v2516
    %v4100 = vunpack.c.h.b16 %v2516
    %v4101 = vunpack.c.l.b16 %v2517
    %v4102 = vunpack.c.h.b16 %v2517
    %v4103 = vunpack.c.l.b16 %v2518
    %v4104 = vunpack.c.h.b16 %v2518
    %v4105 = vunpack.c.l.b16 %v2519
    %v4106 = vunpack.c.h.b16 %v2519
    %v4107 = vunpack.c.l.b16 %v2520
    %v4108 = vunpack.c.h.b16 %v2520
    %v4109 = vunpack.c.l.b16 %v2521
    %v4110 = vunpack.c.h.b16 %v2521
    %v4111 = vunpack.c.l.b16 %v2522
    %v4112 = vunpack.c.h.b16 %v2522
    %v4113 = vunpack.c.l.b16 %v2523
    %v4114 = vunpack.c.h.b16 %v2523
    %v4115 = vunpack.c.l.b16 %v2524
    %v4116 = vunpack.c.h.b16 %v2524
    %v4117 = vunpack.c.l.b16 %v2525
    %v4118 = vunpack.c.h.b16 %v2525
    %v4119 = vunpack.c.l.b16 %v2526
    %v4120 = vunpack.c.h.b16 %v2526
    %v4121 = vunpack.c.l.b16 %v2527
    %v4122 = vunpack.c.h.b16 %v2527
    %v4123 = vunpack.c.l.b16 %v2528
    %v4124 = vunpack.c.h.b16 %v2528
    %v4125 = vunpack.c.l.b16 %v2529
    %v4126 = vunpack.c.h.b16 %v2529
    %v4127 = vunpack.c.l.b16 %v2530
    %v4128 = vunpack.c.h.b16 %v2530
    %v4129 = vunpack.c.l.b16 %v2531
    %v4130 = vunpack.c.h.b16 %v2531
    %v4131 = vunpack.c.l.b16 %v2532
    %v4132 = vunpack.c.h.b16 %v2532
    %v4133 = vunpack.c.l.b16 %v2533
    %v4134 = vunpack.c.h.b16 %v2533
    %v4135 = vunpack.c.l.b16 %v2534
    %v4136 = vunpack.c.h.b16 %v2534
    %v4137 = vunpack.c.l.b16 %v2535
    %v4138 = vunpack.c.h.b16 %v2535
    %v4139 = vunpack.c.l.b16 %v2536
    %v4140 = vunpack.c.h.b16 %v2536
    %v4141 = vunpack.c.l.b16 %v2537
    %v4142 = vunpack.c.h.b16 %v2537
    %v4143 = vunpack.c.l.b16 %v2538
    %v4144 = vunpack.c.h.b16 %v2538
    %v4145 = vunpack.c.l.b16 %v2539
    %v4146 = vunpack.c.h.b16 %v2539
    %v4147 = vunpack.c.l.b16 %v2540
    %v4148 = vunpack.c.h.b16 %v2540
    %v4149 = vunpack.c.l.b16 %v2541
    %v4150 = vunpack.c.h.b16 %v2541
    %v4151 = vunpack.c.l.b16 %v2542
    %v4152 = vunpack.c.h.b16 %v2542
    %v4153 = vunpack.c.l.b16 %v2543
    %v4154 = vunpack.c.h.b16 %v2543
    %v4155 = vunpack.c.l.b16 %v2544
    %v4156 = vunpack.c.h.b16 %v2544
    %v4157 = vunpack.c.l.b16 %v2545
    %v4158 = vunpack.c.h.b16 %v2545
    %v4159 = vunpack.c.l.b16 %v2546
    %v4160 = vunpack.c.h.b16 %v2546
    %v4161 = vunpack.c.l.b16 %v2547
    %v4162 = vunpack.c.h.b16 %v2547
    %v4163 = vunpack.c.l.b16 %v2548
    %v4164 = vunpack.c.h.b16 %v2548
    %v4165 = vunpack.c.l.b16 %v2549
    %v4166 = vunpack.c.h.b16 %v2549
    %v4167 = vunpack.c.l.b16 %v2550
    %v4168 = vunpack.c.h.b16 %v2550
    %v4169 = vunpack.c.l.b16 %v2551
    %v4170 = vunpack.c.h.b16 %v2551
    %v4171 = vunpack.c.l.b16 %v2552
    %v4172 = vunpack.c.h.b16 %v2552
    %v4173 = vpack.c.b16 %v3165, %v3149
    %v4174 = vpack.c.b16 %v3166, %v3150
    %v4175 = vpack.c.b16 %v3167, %v3151
    %v4176 = vpack.c.b16 %v3168, %v3152
    %v4177 = vpack.c.b16 %v3169, %v3153
    %v4178 = vpack.c.b16 %v3170, %v3154
    %v4179 = vpack.c.b16 %v3171, %v3155
    %v4180 = vpack.c.b16 %v3172, %v3156
    %v4181 = vpack.c.b16 %v3173, %v3157
    %v4182 = vpack.c.b16 %v3174, %v3158
    %v4183 = vpack.c.b16 %v3175, %v3159
    %v4184 = vpack.c.b16 %v3176, %v3160
    %v4185 = vpack.c.b16 %v3177, %v3161
    %v4186 = vpack.c.b16 %v3178, %v3162
    %v4187 = vpack.c.b16 %v3179, %v3163
    %v4188 = vpack.c.b16 %v3180, %v3164
    %v4189 = vpack.c.b16 %v3197, %v3181
    %v4190 = vpack.c.b16 %v3198, %v3182
    %v4191 = vpack.c.b16 %v3199, %v3183
    %v4192 = vpack.c.b16 %v3200, %v3184
    %v4193 = vpack.c.b16 %v3201, %v3185
    %v4194 = vpack.c.b16 %v3202, %v3186
    %v4195 = vpack.c.b16 %v3203, %v3187
    %v4196 = vpack.c.b16 %v3204, %v3188
    %v4197 = vpack.c.b16 %v3205, %v3189
    %v4198 = vpack.c.b16 %v3206, %v3190
    %v4199 = vpack.c.b16 %v3207, %v3191
    %v4200 = vpack.c.b16 %v3208, %v3192
    %v4201 = vpack.c.b16 %v3209, %v3193
    %v4202 = vpack.c.b16 %v3210, %v3194
    %v4203 = vpack.c.b16 %v3211, %v3195
    %v4204 = vpack.c.b16 %v3212, %v3196
    %v4205 = vpack.c.b16 %v3229, %v3213
    %v4206 = vpack.c.b16 %v3230, %v3214
    %v4207 = vpack.c.b16 %v3231, %v3215
    %v4208 = vpack.c.b16 %v3232, %v3216
    %v4209 = vpack.c.b16 %v3233, %v3217
    %v4210 = vpack.c.b16 %v3234, %v3218
    %v4211 = vpack.c.b16 %v3235, %v3219
    %v4212 = vpack.c.b16 %v3236, %v3220
    %v4213 = vpack.c.b16 %v3237, %v3221
    %v4214 = vpack.c.b16 %v3238, %v3222
    %v4215 = vpack.c.b16 %v3239, %v3223
    %v4216 = vpack.c.b16 %v3240, %v3224
    %v4217 = vpack.c.b16 %v3241, %v3225
    %v4218 = vpack.c.b16 %v3242, %v3226
    %v4219 = vpack.c.b16 %v3243, %v3227
    %v4220 = vpack.c.b16 %v3244, %v3228
    %v4221 = vpack.c.b16 %v3261, %v3245
    %v4222 = vpack.c.b16 %v3262, %v3246
    %v4223 = vpack.c.b16 %v3263, %v3247
    %v4224 = vpack.c.b16 %v3264, %v3248
    %v4225 = vpack.c.b16 %v3265, %v3249
    %v4226 = vpack.c.b16 %v3266, %v3250
    %v4227 = vpack.c.b16 %v3267, %v3251
    %v4228 = vpack.c.b16 %v3268, %v3252
    %v4229 = vpack.c.b16 %v3269, %v3253
    %v4230 = vpack.c.b16 %v3270, %v3254
    %v4231 = vpack.c.b16 %v3271, %v3255
    %v4232 = vpack.c.b16 %v3272, %v3256
    %v4233 = vpack.c.b16 %v3273, %v3257
    %v4234 = vpack.c.b16 %v3274, %v3258
    %v4235 = vpack.c.b16 %v3275, %v3259
    %v4236 = vpack.c.b16 %v3276, %v3260
    %v4237 = vpack.c.b16 %v3293, %v3277
    %v4238 = vpack.c.b16 %v3294, %v3278
    %v4239 = vpack.c.b16 %v3295, %v3279
    %v4240 = vpack.c.b16 %v3296, %v3280
    %v4241 = vpack.c.b16 %v3297, %v3281
    %v4242 = vpack.c.b16 %v3298, %v3282
    %v4243 = vpack.c.b16 %v3299, %v3283
    %v4244 = vpack.c.b16 %v3300, %v3284
    %v4245 = vpack.c.b16 %v3301, %v3285
    %v4246 = vpack.c.b16 %v3302, %v3286
    %v4247 = vpack.c.b16 %v3303, %v3287
    %v4248 = vpack.c.b16 %v3304, %v3288
    %v4249 = vpack.c.b16 %v3305, %v3289
    %v4250 = vpack.c.b16 %v3306, %v3290
    %v4251 = vpack.c.b16 %v3307, %v3291
    %v4252 = vpack.c.b16 %v3308, %v3292
    %v4253 = vpack.c.b16 %v3325, %v3309
    %v4254 = vpack.c.b16 %v3326, %v3310
    %v4255 = vpack.c.b16 %v3327, %v3311
    %v4256 = vpack.c.b16 %v3328, %v3312
    %v4257 = vpack.c.b16 %v3329, %v3313
    %v4258 = vpack.c.b16 %v3330, %v3314
    %v4259 = vpack.c.b16 %v3331, %v3315
    %v4260 = vpack.c.b16 %v3332, %v3316
    %v4261 = vpack.c.b16 %v3333, %v3317
    %v4262 = vpack.c.b16 %v3334, %v3318
    %v4263 = vpack.c.b16 %v3335, %v3319
    %v4264 = vpack.c.b16 %v3336, %v3320
    %v4265 = vpack.c.b16 %v3337, %v3321
    %v4266 = vpack.c.b16 %v3338, %v3322
    %v4267 = vpack.c.b16 %v3339, %v3323
    %v4268 = vpack.c.b16 %v3340, %v3324
    %v4269 = vpack.c.b16 %v3357, %v3341
    %v4270 = vpack.c.b16 %v3358, %v3342
    %v4271 = vpack.c.b16 %v3359, %v3343
    %v4272 = vpack.c.b16 %v3360, %v3344
    %v4273 = vpack.c.b16 %v3361, %v3345
    %v4274 = vpack.c.b16 %v3362, %v3346
    %v4275 = vpack.c.b16 %v3363, %v3347
    %v4276 = vpack.c.b16 %v3364, %v3348
    %v4277 = vpack.c.b16 %v3365, %v3349
    %v4278 = vpack.c.b16 %v3366, %v3350
    %v4279 = vpack.c.b16 %v3367, %v3351
    %v4280 = vpack.c.b16 %v3368, %v3352
    %v4281 = vpack.c.b16 %v3369, %v3353
    %v4282 = vpack.c.b16 %v3370, %v3354
    %v4283 = vpack.c.b16 %v3371, %v3355
    %v4284 = vpack.c.b16 %v3372, %v3356
    %v4285 = vpack.c.b16 %v3389, %v3373
    %v4286 = vpack.c.b16 %v3390, %v3374
    %v4287 = vpack.c.b16 %v3391, %v3375
    %v4288 = vpack.c.b16 %v3392, %v3376
    %v4289 = vpack.c.b16 %v3393, %v3377
    %v4290 = vpack.c.b16 %v3394, %v3378
    %v4291 = vpack.c.b16 %v3395, %v3379
    %v4292 = vpack.c.b16 %v3396, %v3380
    %v4293 = vpack.c.b16 %v3397, %v3381
    %v4294 = vpack.c.b16 %v3398, %v3382
    %v4295 = vpack.c.b16 %v3399, %v3383
    %v4296 = vpack.c.b16 %v3400, %v3384
    %v4297 = vpack.c.b16 %v3401, %v3385
    %v4298 = vpack.c.b16 %v3402, %v3386
    %v4299 = vpack.c.b16 %v3403, %v3387
    %v4300 = vpack.c.b16 %v3404, %v3388
    %v4301 = vpack.c.b16 %v3421, %v3405
    %v4302 = vpack.c.b16 %v3422, %v3406
    %v4303 = vpack.c.b16 %v3423, %v3407
    %v4304 = vpack.c.b16 %v3424, %v3408
    %v4305 = vpack.c.b16 %v3425, %v3409
    %v4306 = vpack.c.b16 %v3426, %v3410
    %v4307 = vpack.c.b16 %v3427, %v3411
    %v4308 = vpack.c.b16 %v3428, %v3412
    %v4309 = vpack.c.b16 %v3429, %v3413
    %v4310 = vpack.c.b16 %v3430, %v3414
    %v4311 = vpack.c.b16 %v3431, %v3415
    %v4312 = vpack.c.b16 %v3432, %v3416
    %v4313 = vpack.c.b16 %v3433, %v3417
    %v4314 = vpack.c.b16 %v3434, %v3418
    %v4315 = vpack.c.b16 %v3435, %v3419
    %v4316 = vpack.c.b16 %v3436, %v3420
    %v4317 = vpack.c.b16 %v3453, %v3437
    %v4318 = vpack.c.b16 %v3454, %v3438
    %v4319 = vpack.c.b16 %v3455, %v3439
    %v4320 = vpack.c.b16 %v3456, %v3440
    %v4321 = vpack.c.b16 %v3457, %v3441
    %v4322 = vpack.c.b16 %v3458, %v3442
    %v4323 = vpack.c.b16 %v3459, %v3443
    %v4324 = vpack.c.b16 %v3460, %v3444
    %v4325 = vpack.c.b16 %v3461, %v3445
    %v4326 = vpack.c.b16 %v3462, %v3446
    %v4327 = vpack.c.b16 %v3463, %v3447
    %v4328 = vpack.c.b16 %v3464, %v3448
    %v4329 = vpack.c.b16 %v3465, %v3449
    %v4330 = vpack.c.b16 %v3466, %v3450
    %v4331 = vpack.c.b16 %v3467, %v3451
    %v4332 = vpack.c.b16 %v3468, %v3452
    %v4333 = vpack.c.b16 %v3485, %v3469
    %v4334 = vpack.c.b16 %v3486, %v3470
    %v4335 = vpack.c.b16 %v3487, %v3471
    %v4336 = vpack.c.b16 %v3488, %v3472
    %v4337 = vpack.c.b16 %v3489, %v3473
    %v4338 = vpack.c.b16 %v3490, %v3474
    %v4339 = vpack.c.b16 %v3491, %v3475
    %v4340 = vpack.c.b16 %v3492, %v3476
    %v4341 = vpack.c.b16 %v3493, %v3477
    %v4342 = vpack.c.b16 %v3494, %v3478
    %v4343 = vpack.c.b16 %v3495, %v3479
    %v4344 = vpack.c.b16 %v3496, %v3480
    %v4345 = vpack.c.b16 %v3497, %v3481
    %v4346 = vpack.c.b16 %v3498, %v3482
    %v4347 = vpack.c.b16 %v3499, %v3483
    %v4348 = vpack.c.b16 %v3500, %v3484
    %v4349 = vpack.c.b16 %v3517, %v3501
    %v4350 = vpack.c.b16 %v3518, %v3502
    %v4351 = vpack.c.b16 %v3519, %v3503
    %v4352 = vpack.c.b16 %v3520, %v3504
    %v4353 = vpack.c.b16 %v3521, %v3505
    %v4354 = vpack.c.b16 %v3522, %v3506
    %v4355 = vpack.c.b16 %v3523, %v3507
    %v4356 = vpack.c.b16 %v3524, %v3508
    %v4357 = vpack.c.b16 %v3525, %v3509
    %v4358 = vpack.c.b16 %v3526, %v3510
    %v4359 = vpack.c.b16 %v3527, %v3511
    %v4360 = vpack.c.b16 %v3528, %v3512
    %v4361 = vpack.c.b16 %v3529, %v3513
    %v4362 = vpack.c.b16 %v3530, %v3514
    %v4363 = vpack.c.b16 %v3531, %v3515
    %v4364 = vpack.c.b16 %v3532, %v3516
    %v4365 = vpack.c.b16 %v3549, %v3533
    %v4366 = vpack.c.b16 %v3550, %v3534
    %v4367 = vpack.c.b16 %v3551, %v3535
    %v4368 = vpack.c.b16 %v3552, %v3536
    %v4369 = vpack.c.b16 %v3553, %v3537
    %v4370 = vpack.c.b16 %v3554, %v3538
    %v4371 = vpack.c.b16 %v3555, %v3539
    %v4372 = vpack.c.b16 %v3556, %v3540
    %v4373 = vpack.c.b16 %v3557, %v3541
    %v4374 = vpack.c.b16 %v3558, %v3542
    %v4375 = vpack.c.b16 %v3559, %v3543
    %v4376 = vpack.c.b16 %v3560, %v3544
    %v4377 = vpack.c.b16 %v3561, %v3545
    %v4378 = vpack.c.b16 %v3562, %v3546
    %v4379 = vpack.c.b16 %v3563, %v3547
    %v4380 = vpack.c.b16 %v3564, %v3548
    %v4381 = vpack.c.b16 %v3581, %v3565
    %v4382 = vpack.c.b16 %v3582, %v3566
    %v4383 = vpack.c.b16 %v3583, %v3567
    %v4384 = vpack.c.b16 %v3584, %v3568
    %v4385 = vpack.c.b16 %v3585, %v3569
    %v4386 = vpack.c.b16 %v3586, %v3570
    %v4387 = vpack.c.b16 %v3587, %v3571
    %v4388 = vpack.c.b16 %v3588, %v3572
    %v4389 = vpack.c.b16 %v3589, %v3573
    %v4390 = vpack.c.b16 %v3590, %v3574
    %v4391 = vpack.c.b16 %v3591, %v3575
    %v4392 = vpack.c.b16 %v3592, %v3576
    %v4393 = vpack.c.b16 %v3593, %v3577
    %v4394 = vpack.c.b16 %v3594, %v3578
    %v4395 = vpack.c.b16 %v3595, %v3579
    %v4396 = vpack.c.b16 %v3596, %v3580
    %v4397 = vpack.c.b16 %v3613, %v3597
    %v4398 = vpack.c.b16 %v3614, %v3598
    %v4399 = vpack.c.b16 %v3615, %v3599
    %v4400 = vpack.c.b16 %v3616, %v3600
    %v4401 = vpack.c.b16 %v3617, %v3601
    %v4402 = vpack.c.b16 %v3618, %v3602
    %v4403 = vpack.c.b16 %v3619, %v3603
    %v4404 = vpack.c.b16 %v3620, %v3604
    %v4405 = vpack.c.b16 %v3621, %v3605
    %v4406 = vpack.c.b16 %v3622, %v3606
    %v4407 = vpack.c.b16 %v3623, %v3607
    %v4408 = vpack.c.b16 %v3624, %v3608
    %v4409 = vpack.c.b16 %v3625, %v3609
    %v4410 = vpack.c.b16 %v3626, %v3610
    %v4411 = vpack.c.b16 %v3627, %v3611
    %v4412 = vpack.c.b16 %v3628, %v3612
    %v4413 = vpack.c.b16 %v3645, %v3629
    %v4414 = vpack.c.b16 %v3646, %v3630
    %v4415 = vpack.c.b16 %v3647, %v3631
    %v4416 = vpack.c.b16 %v3648, %v3632
    %v4417 = vpack.c.b16 %v3649, %v3633
    %v4418 = vpack.c.b16 %v3650, %v3634
    %v4419 = vpack.c.b16 %v3651, %v3635
    %v4420 = vpack.c.b16 %v3652, %v3636
    %v4421 = vpack.c.b16 %v3653, %v3637
    %v4422 = vpack.c.b16 %v3654, %v3638
    %v4423 = vpack.c.b16 %v3655, %v3639
    %v4424 = vpack.c.b16 %v3656, %v3640
    %v4425 = vpack.c.b16 %v3657, %v3641
    %v4426 = vpack.c.b16 %v3658, %v3642
    %v4427 = vpack.c.b16 %v3659, %v3643
    %v4428 = vpack.c.b16 %v3660, %v3644
    %v4429 = vpack.c.b16 %v3677, %v3661
    %v4430 = vpack.c.b16 %v3678, %v3662
    %v4431 = vpack.c.b16 %v3679, %v3663
    %v4432 = vpack.c.b16 %v3680, %v3664
    %v4433 = vpack.c.b16 %v3681, %v3665
    %v4434 = vpack.c.b16 %v3682, %v3666
    %v4435 = vpack.c.b16 %v3683, %v3667
    %v4436 = vpack.c.b16 %v3684, %v3668
    %v4437 = vpack.c.b16 %v3685, %v3669
    %v4438 = vpack.c.b16 %v3686, %v3670
    %v4439 = vpack.c.b16 %v3687, %v3671
    %v4440 = vpack.c.b16 %v3688, %v3672
    %v4441 = vpack.c.b16 %v3689, %v3673
    %v4442 = vpack.c.b16 %v3690, %v3674
    %v4443 = vpack.c.b16 %v3691, %v3675
    %v4444 = vpack.c.b16 %v3692, %v3676
    %v4445 = vpack.c.b16 %v3709, %v3693
    %v4446 = vpack.c.b16 %v3710, %v3694
    %v4447 = vpack.c.b16 %v3711, %v3695
    %v4448 = vpack.c.b16 %v3712, %v3696
    %v4449 = vpack.c.b16 %v3713, %v3697
    %v4450 = vpack.c.b16 %v3714, %v3698
    %v4451 = vpack.c.b16 %v3715, %v3699
    %v4452 = vpack.c.b16 %v3716, %v3700
    %v4453 = vpack.c.b16 %v3717, %v3701
    %v4454 = vpack.c.b16 %v3718, %v3702
    %v4455 = vpack.c.b16 %v3719, %v3703
    %v4456 = vpack.c.b16 %v3720, %v3704
    %v4457 = vpack.c.b16 %v3721, %v3705
    %v4458 = vpack.c.b16 %v3722, %v3706
    %v4459 = vpack.c.b16 %v3723, %v3707
    %v4460 = vpack.c.b16 %v3724, %v3708
    %v4461 = vpack.c.b16 %v3741, %v3725
    %v4462 = vpack.c.b16 %v3742, %v3726
    %v4463 = vpack.c.b16 %v3743, %v3727
    %v4464 = vpack.c.b16 %v3744, %v3728
    %v4465 = vpack.c.b16 %v3745, %v3729
    %v4466 = vpack.c.b16 %v3746, %v3730
    %v4467 = vpack.c.b16 %v3747, %v3731
    %v4468 = vpack.c.b16 %v3748, %v3732
    %v4469 = vpack.c.b16 %v3749, %v3733
    %v4470 = vpack.c.b16 %v3750, %v3734
    %v4471 = vpack.c.b16 %v3751, %v3735
    %v4472 = vpack.c.b16 %v3752, %v3736
    %v4473 = vpack.c.b16 %v3753, %v3737
    %v4474 = vpack.c.b16 %v3754, %v3738
    %v4475 = vpack.c.b16 %v3755, %v3739
    %v4476 = vpack.c.b16 %v3756, %v3740
    %v4477 = vpack.c.b16 %v3773, %v3757
    %v4478 = vpack.c.b16 %v3774, %v3758
    %v4479 = vpack.c.b16 %v3775, %v3759
    %v4480 = vpack.c.b16 %v3776, %v3760
    %v4481 = vpack.c.b16 %v3777, %v3761
    %v4482 = vpack.c.b16 %v3778, %v3762
    %v4483 = vpack.c.b16 %v3779, %v3763
    %v4484 = vpack.c.b16 %v3780, %v3764
    %v4485 = vpack.c.b16 %v3781, %v3765
    %v4486 = vpack.c.b16 %v3782, %v3766
    %v4487 = vpack.c.b16 %v3783, %v3767
    %v4488 = vpack.c.b16 %v3784, %v3768
    %v4489 = vpack.c.b16 %v3785, %v3769
    %v4490 = vpack.c.b16 %v3786, %v3770
    %v4491 = vpack.c.b16 %v3787, %v3771
    %v4492 = vpack.c.b16 %v3788, %v3772
    %v4493 = vpack.c.b16 %v3805, %v3789
    %v4494 = vpack.c.b16 %v3806, %v3790
    %v4495 = vpack.c.b16 %v3807, %v3791
    %v4496 = vpack.c.b16 %v3808, %v3792
    %v4497 = vpack.c.b16 %v3809, %v3793
    %v4498 = vpack.c.b16 %v3810, %v3794
    %v4499 = vpack.c.b16 %v3811, %v3795
    %v4500 = vpack.c.b16 %v3812, %v3796
    %v4501 = vpack.c.b16 %v3813, %v3797
    %v4502 = vpack.c.b16 %v3814, %v3798
    %v4503 = vpack.c.b16 %v3815, %v3799
    %v4504 = vpack.c.b16 %v3816, %v3800
    %v4505 = vpack.c.b16 %v3817, %v3801
    %v4506 = vpack.c.b16 %v3818, %v3802
    %v4507 = vpack.c.b16 %v3819, %v3803
    %v4508 = vpack.c.b16 %v3820, %v3804
    %v4509 = vpack.c.b16 %v3837, %v3821
    %v4510 = vpack.c.b16 %v3838, %v3822
    %v4511 = vpack.c.b16 %v3839, %v3823
    %v4512 = vpack.c.b16 %v3840, %v3824
    %v4513 = vpack.c.b16 %v3841, %v3825
    %v4514 = vpack.c.b16 %v3842, %v3826
    %v4515 = vpack.c.b16 %v3843, %v3827
    %v4516 = vpack.c.b16 %v3844, %v3828
    %v4517 = vpack.c.b16 %v3845, %v3829
    %v4518 = vpack.c.b16 %v3846, %v3830
    %v4519 = vpack.c.b16 %v3847, %v3831
    %v4520 = vpack.c.b16 %v3848, %v3832
    %v4521 = vpack.c.b16 %v3849, %v3833
    %v4522 = vpack.c.b16 %v3850, %v3834
    %v4523 = vpack.c.b16 %v3851, %v3835
    %v4524 = vpack.c.b16 %v3852, %v3836
    %v4525 = vpack.c.b16 %v3869, %v3853
    %v4526 = vpack.c.b16 %v3870, %v3854
    %v4527 = vpack.c.b16 %v3871, %v3855
    %v4528 = vpack.c.b16 %v3872, %v3856
    %v4529 = vpack.c.b16 %v3873, %v3857
    %v4530 = vpack.c.b16 %v3874, %v3858
    %v4531 = vpack.c.b16 %v3875, %v3859
    %v4532 = vpack.c.b16 %v3876, %v3860
    %v4533 = vpack.c.b16 %v3877, %v3861
    %v4534 = vpack.c.b16 %v3878, %v3862
    %v4535 = vpack.c.b16 %v3879, %v3863
    %v4536 = vpack.c.b16 %v3880, %v3864
    %v4537 = vpack.c.b16 %v3881, %v3865
    %v4538 = vpack.c.b16 %v3882, %v3866
    %v4539 = vpack.c.b16 %v3883, %v3867
    %v4540 = vpack.c.b16 %v3884, %v3868
    %v4541 = vpack.c.b16 %v3901, %v3885
    %v4542 = vpack.c.b16 %v3902, %v3886
    %v4543 = vpack.c.b16 %v3903, %v3887
    %v4544 = vpack.c.b16 %v3904, %v3888
    %v4545 = vpack.c.b16 %v3905, %v3889
    %v4546 = vpack.c.b16 %v3906, %v3890
    %v4547 = vpack.c.b16 %v3907, %v3891
    %v4548 = vpack.c.b16 %v3908, %v3892
    %v4549 = vpack.c.b16 %v3909, %v3893
    %v4550 = vpack.c.b16 %v3910, %v3894
    %v4551 = vpack.c.b16 %v3911, %v3895
    %v4552 = vpack.c.b16 %v3912, %v3896
    %v4553 = vpack.c.b16 %v3913, %v3897
    %v4554 = vpack.c.b16 %v3914, %v3898
    %v4555 = vpack.c.b16 %v3915, %v3899
    %v4556 = vpack.c.b16 %v3916, %v3900
    %v4557 = vpack.c.b16 %v3933, %v3917
    %v4558 = vpack.c.b16 %v3934, %v3918
    %v4559 = vpack.c.b16 %v3935, %v3919
    %v4560 = vpack.c.b16 %v3936, %v3920
    %v4561 = vpack.c.b16 %v3937, %v3921
    %v4562 = vpack.c.b16 %v3938, %v3922
    %v4563 = vpack.c.b16 %v3939, %v3923
    %v4564 = vpack.c.b16 %v3940, %v3924
    %v4565 = vpack.c.b16 %v3941, %v3925
    %v4566 = vpack.c.b16 %v3942, %v3926
    %v4567 = vpack.c.b16 %v3943, %v3927
    %v4568 = vpack.c.b16 %v3944, %v3928
    %v4569 = vpack.c.b16 %v3945, %v3929
    %v4570 = vpack.c.b16 %v3946, %v3930
    %v4571 = vpack.c.b16 %v3947, %v3931
    %v4572 = vpack.c.b16 %v3948, %v3932
    %v4573 = vpack.c.b16 %v3965, %v3949
    %v4574 = vpack.c.b16 %v3966, %v3950
    %v4575 = vpack.c.b16 %v3967, %v3951
    %v4576 = vpack.c.b16 %v3968, %v3952
    %v4577 = vpack.c.b16 %v3969, %v3953
    %v4578 = vpack.c.b16 %v3970, %v3954
    %v4579 = vpack.c.b16 %v3971, %v3955
    %v4580 = vpack.c.b16 %v3972, %v3956
    %v4581 = vpack.c.b16 %v3973, %v3957
    %v4582 = vpack.c.b16 %v3974, %v3958
    %v4583 = vpack.c.b16 %v3975, %v3959
    %v4584 = vpack.c.b16 %v3976, %v3960
    %v4585 = vpack.c.b16 %v3977, %v3961
    %v4586 = vpack.c.b16 %v3978, %v3962
    %v4587 = vpack.c.b16 %v3979, %v3963
    %v4588 = vpack.c.b16 %v3980, %v3964
    %v4589 = vpack.c.b16 %v3997, %v3981
    %v4590 = vpack.c.b16 %v3998, %v3982
    %v4591 = vpack.c.b16 %v3999, %v3983
    %v4592 = vpack.c.b16 %v4000, %v3984
    %v4593 = vpack.c.b16 %v4001, %v3985
    %v4594 = vpack.c.b16 %v4002, %v3986
    %v4595 = vpack.c.b16 %v4003, %v3987
    %v4596 = vpack.c.b16 %v4004, %v3988
    %v4597 = vpack.c.b16 %v4005, %v3989
    %v4598 = vpack.c.b16 %v4006, %v3990
    %v4599 = vpack.c.b16 %v4007, %v3991
    %v4600 = vpack.c.b16 %v4008, %v3992
    %v4601 = vpack.c.b16 %v4009, %v3993
    %v4602 = vpack.c.b16 %v4010, %v3994
    %v4603 = vpack.c.b16 %v4011, %v3995
    %v4604 = vpack.c.b16 %v4012, %v3996
    %v4605 = vpack.c.b16 %v4029, %v4013
    %v4606 = vpack.c.b16 %v4030, %v4014
    %v4607 = vpack.c.b16 %v4031, %v4015
    %v4608 = vpack.c.b16 %v4032, %v4016
    %v4609 = vpack.c.b16 %v4033, %v4017
    %v4610 = vpack.c.b16 %v4034, %v4018
    %v4611 = vpack.c.b16 %v4035, %v4019
    %v4612 = vpack.c.b16 %v4036, %v4020
    %v4613 = vpack.c.b16 %v4037, %v4021
    %v4614 = vpack.c.b16 %v4038, %v4022
    %v4615 = vpack.c.b16 %v4039, %v4023
    %v4616 = vpack.c.b16 %v4040, %v4024
    %v4617 = vpack.c.b16 %v4041, %v4025
    %v4618 = vpack.c.b16 %v4042, %v4026
    %v4619 = vpack.c.b16 %v4043, %v4027
    %v4620 = vpack.c.b16 %v4044, %v4028
    %v4621 = vpack.c.b16 %v4061, %v4045
    %v4622 = vpack.c.b16 %v4062, %v4046
    %v4623 = vpack.c.b16 %v4063, %v4047
    %v4624 = vpack.c.b16 %v4064, %v4048
    %v4625 = vpack.c.b16 %v4065, %v4049
    %v4626 = vpack.c.b16 %v4066, %v4050
    %v4627 = vpack.c.b16 %v4067, %v4051
    %v4628 = vpack.c.b16 %v4068, %v4052
    %v4629 = vpack.c.b16 %v4069, %v4053
    %v4630 = vpack.c.b16 %v4070, %v4054
    %v4631 = vpack.c.b16 %v4071, %v4055
    %v4632 = vpack.c.b16 %v4072, %v4056
    %v4633 = vpack.c.b16 %v4073, %v4057
    %v4634 = vpack.c.b16 %v4074, %v4058
    %v4635 = vpack.c.b16 %v4075, %v4059
    %v4636 = vpack.c.b16 %v4076, %v4060
    %v4637 = vpack.c.b16 %v4093, %v4077
    %v4638 = vpack.c.b16 %v4094, %v4078
    %v4639 = vpack.c.b16 %v4095, %v4079
    %v4640 = vpack.c.b16 %v4096, %v4080
    %v4641 = vpack.c.b16 %v4097, %v4081
    %v4642 = vpack.c.b16 %v4098, %v4082
    %v4643 = vpack.c.b16 %v4099, %v4083
    %v4644 = vpack.c.b16 %v4100, %v4084
    %v4645 = vpack.c.b16 %v4101, %v4085
    %v4646 = vpack.c.b16 %v4102, %v4086
    %v4647 = vpack.c.b16 %v4103, %v4087
    %v4648 = vpack.c.b16 %v4104, %v4088
    %v4649 = vpack.c.b16 %v4105, %v4089
    %v4650 = vpack.c.b16 %v4106, %v4090
    %v4651 = vpack.c.b16 %v4107, %v4091
    %v4652 = vpack.c.b16 %v4108, %v4092
    %v4653 = vpack.c.b16 %v4125, %v4109
    %v4654 = vpack.c.b16 %v4126, %v4110
    %v4655 = vpack.c.b16 %v4127, %v4111
    %v4656 = vpack.c.b16 %v4128, %v4112
    %v4657 = vpack.c.b16 %v4129, %v4113
    %v4658 = vpack.c.b16 %v4130, %v4114
    %v4659 = vpack.c.b16 %v4131, %v4115
    %v4660 = vpack.c.b16 %v4132, %v4116
    %v4661 = vpack.c.b16 %v4133, %v4117
    %v4662 = vpack.c.b16 %v4134, %v4118
    %v4663 = vpack.c.b16 %v4135, %v4119
    %v4664 = vpack.c.b16 %v4136, %v4120
    %v4665 = vpack.c.b16 %v4137, %v4121
    %v4666 = vpack.c.b16 %v4138, %v4122
    %v4667 = vpack.c.b16 %v4139, %v4123
    %v4668 = vpack.c.b16 %v4140, %v4124
    %v4669 = vpack.c.b16 %v4157, %v4141
    %v4670 = vpack.c.b16 %v4158, %v4142
    %v4671 = vpack.c.b16 %v4159, %v4143
    %v4672 = vpack.c.b16 %v4160, %v4144
    %v4673 = vpack.c.b16 %v4161, %v4145
    %v4674 = vpack.c.b16 %v4162, %v4146
    %v4675 = vpack.c.b16 %v4163, %v4147
    %v4676 = vpack.c.b16 %v4164, %v4148
    %v4677 = vpack.c.b16 %v4165, %v4149
    %v4678 = vpack.c.b16 %v4166, %v4150
    %v4679 = vpack.c.b16 %v4167, %v4151
    %v4680 = vpack.c.b16 %v4168, %v4152
    %v4681 = vpack.c.b16 %v4169, %v4153
    %v4682 = vpack.c.b16 %v4170, %v4154
    %v4683 = vpack.c.b16 %v4171, %v4155
    %v4684 = vpack.c.b16 %v4172, %v4156
    %5197 = vmatprep.subr.bf16.mxu0 %v4286
    %5198 = vmatpush1.bf16.msra.mxu0 %v4285
    %5199 = vmatprep.subr.bf16.mxu0 %v4270
    %5200 = vmatpush1.bf16.msra.mxu0 %v4269
    %5201 = vmatprep.subr.bf16.mxu0 %v4254
    %5202 = vmatpush1.bf16.msra.mxu0 %v4253
    %5203 = vmatprep.subr.bf16.mxu0 %v4238
    %5204 = vmatpush1.bf16.msra.mxu0 %v4237
    %5205 = vmatprep.subr.bf16.mxu0 %v4222
    %5206 = vmatpush1.bf16.msra.mxu0 %v4221
    %5207 = vmatprep.subr.bf16.mxu0 %v4206
    %5208 = vmatpush1.bf16.msra.mxu0 %v4205
    %5209 = vmatprep.subr.bf16.mxu0 %v4190
    %5210 = vmatpush1.bf16.msra.mxu0 %v4189
    %5211 = vmatprep.subr.bf16.mxu0 %v4174
    %5212 = vmatpush1.bf16.msra.mxu0 %v4173
    %5213 = vmatprep.subr.bf16.mxu0 %v4414
    %5214 = vmatpush2.bf16.msra.mxu0 %v4413
    %5215 = vmatprep.subr.bf16.mxu0 %v4398
    %5216 = vmatpush2.bf16.msra.mxu0 %v4397
    %5217 = vmatprep.subr.bf16.mxu0 %v4382
    %5218 = vmatpush2.bf16.msra.mxu0 %v4381
    %5219 = vmatprep.subr.bf16.mxu0 %v4366
    %5220 = vmatpush2.bf16.msra.mxu0 %v4365
    %5221 = vmatprep.subr.bf16.mxu0 %v4350
    %5222 = vmatpush2.bf16.msra.mxu0 %v4349
    %5223 = vmatprep.subr.bf16.mxu0 %v4334
    %5224 = vmatpush2.bf16.msra.mxu0 %v4333
    %5225 = vmatprep.subr.bf16.mxu0 %v4318
    %5226 = vmatpush2.bf16.msra.mxu0 %v4317
    %5227 = vmatprep.subr.bf16.mxu0 %v4302
    %5228 = vmatpush2.bf16.msra.mxu0 %v4301
    %5229 = vmatprep.mubr.bf16.mxu0 %v2038
    %5230 = vmatmul.mubr.bf16.gmra.mxu0 %v2037
    %v5231 = vpop.f32.mrf.mxu0
    %v5232 = vadd.f32 %v2560, %v5231
    %v5233 = vpop.f32.mrf.mxu0
    %v5234 = vadd.f32 %v2564, %v5233
    %v5235 = vpop.f32.mrf.mxu0
    %v5236 = vpop.f32.mrf.mxu0
    %5237 = vdwg.mxu0
    %5238 = vmatprep.subr.bf16.mxu0 %v4542
    %5239 = vmatpush1.bf16.msra.mxu0 %v4541
    %5240 = vmatprep.subr.bf16.mxu0 %v4526
    %5241 = vmatpush1.bf16.msra.mxu0 %v4525
    %5242 = vmatprep.subr.bf16.mxu0 %v4510
    %5243 = vmatpush1.bf16.msra.mxu0 %v4509
    %5244 = vmatprep.subr.bf16.mxu0 %v4494
    %5245 = vmatpush1.bf16.msra.mxu0 %v4493
    %5246 = vmatprep.subr.bf16.mxu0 %v4478
    %5247 = vmatpush1.bf16.msra.mxu0 %v4477
    %5248 = vmatprep.subr.bf16.mxu0 %v4462
    %5249 = vmatpush1.bf16.msra.mxu0 %v4461
    %5250 = vmatprep.subr.bf16.mxu0 %v4446
    %5251 = vmatpush1.bf16.msra.mxu0 %v4445
    %5252 = vmatprep.subr.bf16.mxu0 %v4430
    %5253 = vmatpush1.bf16.msra.mxu0 %v4429
    %5254 = vmatprep.subr.bf16.mxu0 %v4670
    %5255 = vmatpush2.bf16.msra.mxu0 %v4669
    %5256 = vmatprep.subr.bf16.mxu0 %v4654
    %5257 = vmatpush2.bf16.msra.mxu0 %v4653
    %5258 = vmatprep.subr.bf16.mxu0 %v4638
    %5259 = vmatpush2.bf16.msra.mxu0 %v4637
    %5260 = vmatprep.subr.bf16.mxu0 %v4622
    %5261 = vmatpush2.bf16.msra.mxu0 %v4621
    %5262 = vmatprep.subr.bf16.mxu0 %v4606
    %5263 = vmatpush2.bf16.msra.mxu0 %v4605
    %5264 = vmatprep.subr.bf16.mxu0 %v4590
    %5265 = vmatpush2.bf16.msra.mxu0 %v4589
    %5266 = vmatprep.subr.bf16.mxu0 %v4574
    %5267 = vmatpush2.bf16.msra.mxu0 %v4573
    %5268 = vmatprep.subr.bf16.mxu0 %v4558
    %5269 = vmatpush2.bf16.msra.mxu0 %v4557
    %5270 = vmatprep.mubr.bf16.mxu0 %v2040
    %5271 = vmatmul.mubr.bf16.gmra.mxu0 %v2039
    %v5272 = vpop.f32.mrf.mxu0
    %v5273 = vadd.f32 %v5232, %v5272
    %v5274 = vpop.f32.mrf.mxu0
    %v5275 = vadd.f32 %v5234, %v5274
    %v5276 = vpop.f32.mrf.mxu0
    %v5277 = vpop.f32.mrf.mxu0
    %5278 = vdwg.mxu0
    %5279 = vmatprep.subr.bf16.mxu0 %v4288
    %5280 = vmatpush1.bf16.msra.mxu0 %v4287
    %5281 = vmatprep.subr.bf16.mxu0 %v4272
    %5282 = vmatpush1.bf16.msra.mxu0 %v4271
    %5283 = vmatprep.subr.bf16.mxu0 %v4256
    %5284 = vmatpush1.bf16.msra.mxu0 %v4255
    %5285 = vmatprep.subr.bf16.mxu0 %v4240
    %5286 = vmatpush1.bf16.msra.mxu0 %v4239
    %5287 = vmatprep.subr.bf16.mxu0 %v4224
    %5288 = vmatpush1.bf16.msra.mxu0 %v4223
    %5289 = vmatprep.subr.bf16.mxu0 %v4208
    %5290 = vmatpush1.bf16.msra.mxu0 %v4207
    %5291 = vmatprep.subr.bf16.mxu0 %v4192
    %5292 = vmatpush1.bf16.msra.mxu0 %v4191
    %5293 = vmatprep.subr.bf16.mxu0 %v4176
    %5294 = vmatpush1.bf16.msra.mxu0 %v4175
    %5295 = vmatprep.subr.bf16.mxu0 %v4416
    %5296 = vmatpush2.bf16.msra.mxu0 %v4415
    %5297 = vmatprep.subr.bf16.mxu0 %v4400
    %5298 = vmatpush2.bf16.msra.mxu0 %v4399
    %5299 = vmatprep.subr.bf16.mxu0 %v4384
    %5300 = vmatpush2.bf16.msra.mxu0 %v4383
    %5301 = vmatprep.subr.bf16.mxu0 %v4368
    %5302 = vmatpush2.bf16.msra.mxu0 %v4367
    %5303 = vmatprep.subr.bf16.mxu0 %v4352
    %5304 = vmatpush2.bf16.msra.mxu0 %v4351
    %5305 = vmatprep.subr.bf16.mxu0 %v4336
    %5306 = vmatpush2.bf16.msra.mxu0 %v4335
    %5307 = vmatprep.subr.bf16.mxu0 %v4320
    %5308 = vmatpush2.bf16.msra.mxu0 %v4319
    %5309 = vmatprep.subr.bf16.mxu0 %v4304
    %5310 = vmatpush2.bf16.msra.mxu0 %v4303
    %5311 = vmatprep.mubr.bf16.mxu0 %v2038
    %5312 = vmatmul.mubr.bf16.gmra.mxu0 %v2037
    %v5313 = vpop.f32.mrf.mxu0
    %v5314 = vadd.f32 %v2568, %v5313
    %v5315 = vpop.f32.mrf.mxu0
    %v5316 = vadd.f32 %v2572, %v5315
    %v5317 = vpop.f32.mrf.mxu0
    %v5318 = vpop.f32.mrf.mxu0
    %5319 = vdwg.mxu0
    %5320 = vmatprep.subr.bf16.mxu0 %v4544
    %5321 = vmatpush1.bf16.msra.mxu0 %v4543
    %5322 = vmatprep.subr.bf16.mxu0 %v4528
    %5323 = vmatpush1.bf16.msra.mxu0 %v4527
    %5324 = vmatprep.subr.bf16.mxu0 %v4512
    %5325 = vmatpush1.bf16.msra.mxu0 %v4511
    %5326 = vmatprep.subr.bf16.mxu0 %v4496
    %5327 = vmatpush1.bf16.msra.mxu0 %v4495
    %5328 = vmatprep.subr.bf16.mxu0 %v4480
    %5329 = vmatpush1.bf16.msra.mxu0 %v4479
    %5330 = vmatprep.subr.bf16.mxu0 %v4464
    %5331 = vmatpush1.bf16.msra.mxu0 %v4463
    %5332 = vmatprep.subr.bf16.mxu0 %v4448
    %5333 = vmatpush1.bf16.msra.mxu0 %v4447
    %5334 = vmatprep.subr.bf16.mxu0 %v4432
    %5335 = vmatpush1.bf16.msra.mxu0 %v4431
    %5336 = vmatprep.subr.bf16.mxu0 %v4672
    %5337 = vmatpush2.bf16.msra.mxu0 %v4671
    %5338 = vmatprep.subr.bf16.mxu0 %v4656
    %5339 = vmatpush2.bf16.msra.mxu0 %v4655
    %5340 = vmatprep.subr.bf16.mxu0 %v4640
    %5341 = vmatpush2.bf16.msra.mxu0 %v4639
    %5342 = vmatprep.subr.bf16.mxu0 %v4624
    %5343 = vmatpush2.bf16.msra.mxu0 %v4623
    %5344 = vmatprep.subr.bf16.mxu0 %v4608
    %5345 = vmatpush2.bf16.msra.mxu0 %v4607
    %5346 = vmatprep.subr.bf16.mxu0 %v4592
    %5347 = vmatpush2.bf16.msra.mxu0 %v4591
    %5348 = vmatprep.subr.bf16.mxu0 %v4576
    %5349 = vmatpush2.bf16.msra.mxu0 %v4575
    %5350 = vmatprep.subr.bf16.mxu0 %v4560
    %5351 = vmatpush2.bf16.msra.mxu0 %v4559
    %5352 = vmatprep.mubr.bf16.mxu0 %v2040
    %5353 = vmatmul.mubr.bf16.gmra.mxu0 %v2039
    %v5354 = vpop.f32.mrf.mxu0
    %v5355 = vadd.f32 %v5314, %v5354
    %v5356 = vpop.f32.mrf.mxu0
    %v5357 = vadd.f32 %v5316, %v5356
    %v5358 = vpop.f32.mrf.mxu0
    %v5359 = vpop.f32.mrf.mxu0
    %5360 = vdwg.mxu0
    %5361 = vmatprep.subr.bf16.mxu0 %v4290
    %5362 = vmatpush1.bf16.msra.mxu0 %v4289
    %5363 = vmatprep.subr.bf16.mxu0 %v4274
    %5364 = vmatpush1.bf16.msra.mxu0 %v4273
    %5365 = vmatprep.subr.bf16.mxu0 %v4258
    %5366 = vmatpush1.bf16.msra.mxu0 %v4257
    %5367 = vmatprep.subr.bf16.mxu0 %v4242
    %5368 = vmatpush1.bf16.msra.mxu0 %v4241
    %5369 = vmatprep.subr.bf16.mxu0 %v4226
    %5370 = vmatpush1.bf16.msra.mxu0 %v4225
    %5371 = vmatprep.subr.bf16.mxu0 %v4210
    %5372 = vmatpush1.bf16.msra.mxu0 %v4209
    %5373 = vmatprep.subr.bf16.mxu0 %v4194
    %5374 = vmatpush1.bf16.msra.mxu0 %v4193
    %5375 = vmatprep.subr.bf16.mxu0 %v4178
    %5376 = vmatpush1.bf16.msra.mxu0 %v4177
    %5377 = vmatprep.subr.bf16.mxu0 %v4418
    %5378 = vmatpush2.bf16.msra.mxu0 %v4417
    %5379 = vmatprep.subr.bf16.mxu0 %v4402
    %5380 = vmatpush2.bf16.msra.mxu0 %v4401
    %5381 = vmatprep.subr.bf16.mxu0 %v4386
    %5382 = vmatpush2.bf16.msra.mxu0 %v4385
    %5383 = vmatprep.subr.bf16.mxu0 %v4370
    %5384 = vmatpush2.bf16.msra.mxu0 %v4369
    %5385 = vmatprep.subr.bf16.mxu0 %v4354
    %5386 = vmatpush2.bf16.msra.mxu0 %v4353
    %5387 = vmatprep.subr.bf16.mxu0 %v4338
    %5388 = vmatpush2.bf16.msra.mxu0 %v4337
    %5389 = vmatprep.subr.bf16.mxu0 %v4322
    %5390 = vmatpush2.bf16.msra.mxu0 %v4321
    %5391 = vmatprep.subr.bf16.mxu0 %v4306
    %5392 = vmatpush2.bf16.msra.mxu0 %v4305
    %5393 = vmatprep.mubr.bf16.mxu0 %v2038
    %5394 = vmatmul.mubr.bf16.gmra.mxu0 %v2037
    %v5395 = vpop.f32.mrf.mxu0
    %v5396 = vadd.f32 %v2576, %v5395
    %v5397 = vpop.f32.mrf.mxu0
    %v5398 = vadd.f32 %v2580, %v5397
    %v5399 = vpop.f32.mrf.mxu0
    %v5400 = vpop.f32.mrf.mxu0
    %5401 = vdwg.mxu0
    %5402 = vmatprep.subr.bf16.mxu0 %v4546
    %5403 = vmatpush1.bf16.msra.mxu0 %v4545
    %5404 = vmatprep.subr.bf16.mxu0 %v4530
    %5405 = vmatpush1.bf16.msra.mxu0 %v4529
    %5406 = vmatprep.subr.bf16.mxu0 %v4514
    %5407 = vmatpush1.bf16.msra.mxu0 %v4513
    %5408 = vmatprep.subr.bf16.mxu0 %v4498
    %5409 = vmatpush1.bf16.msra.mxu0 %v4497
    %5410 = vmatprep.subr.bf16.mxu0 %v4482
    %5411 = vmatpush1.bf16.msra.mxu0 %v4481
    %5412 = vmatprep.subr.bf16.mxu0 %v4466
    %5413 = vmatpush1.bf16.msra.mxu0 %v4465
    %5414 = vmatprep.subr.bf16.mxu0 %v4450
    %5415 = vmatpush1.bf16.msra.mxu0 %v4449
    %5416 = vmatprep.subr.bf16.mxu0 %v4434
    %5417 = vmatpush1.bf16.msra.mxu0 %v4433
    %5418 = vmatprep.subr.bf16.mxu0 %v4674
    %5419 = vmatpush2.bf16.msra.mxu0 %v4673
    %5420 = vmatprep.subr.bf16.mxu0 %v4658
    %5421 = vmatpush2.bf16.msra.mxu0 %v4657
    %5422 = vmatprep.subr.bf16.mxu0 %v4642
    %5423 = vmatpush2.bf16.msra.mxu0 %v4641
    %5424 = vmatprep.subr.bf16.mxu0 %v4626
    %5425 = vmatpush2.bf16.msra.mxu0 %v4625
    %5426 = vmatprep.subr.bf16.mxu0 %v4610
    %5427 = vmatpush2.bf16.msra.mxu0 %v4609
    %5428 = vmatprep.subr.bf16.mxu0 %v4594
    %5429 = vmatpush2.bf16.msra.mxu0 %v4593
    %5430 = vmatprep.subr.bf16.mxu0 %v4578
    %5431 = vmatpush2.bf16.msra.mxu0 %v4577
    %5432 = vmatprep.subr.bf16.mxu0 %v4562
    %5433 = vmatpush2.bf16.msra.mxu0 %v4561
    %5434 = vmatprep.mubr.bf16.mxu0 %v2040
    %5435 = vmatmul.mubr.bf16.gmra.mxu0 %v2039
    %v5436 = vpop.f32.mrf.mxu0
    %v5437 = vadd.f32 %v5396, %v5436
    %v5438 = vpop.f32.mrf.mxu0
    %v5439 = vadd.f32 %v5398, %v5438
    %v5440 = vpop.f32.mrf.mxu0
    %v5441 = vpop.f32.mrf.mxu0
    %5442 = vdwg.mxu0
    %5443 = vmatprep.subr.bf16.mxu0 %v4292
    %5444 = vmatpush1.bf16.msra.mxu0 %v4291
    %5445 = vmatprep.subr.bf16.mxu0 %v4276
    %5446 = vmatpush1.bf16.msra.mxu0 %v4275
    %5447 = vmatprep.subr.bf16.mxu0 %v4260
    %5448 = vmatpush1.bf16.msra.mxu0 %v4259
    %5449 = vmatprep.subr.bf16.mxu0 %v4244
    %5450 = vmatpush1.bf16.msra.mxu0 %v4243
    %5451 = vmatprep.subr.bf16.mxu0 %v4228
    %5452 = vmatpush1.bf16.msra.mxu0 %v4227
    %5453 = vmatprep.subr.bf16.mxu0 %v4212
    %5454 = vmatpush1.bf16.msra.mxu0 %v4211
    %5455 = vmatprep.subr.bf16.mxu0 %v4196
    %5456 = vmatpush1.bf16.msra.mxu0 %v4195
    %5457 = vmatprep.subr.bf16.mxu0 %v4180
    %5458 = vmatpush1.bf16.msra.mxu0 %v4179
    %5459 = vmatprep.subr.bf16.mxu0 %v4420
    %5460 = vmatpush2.bf16.msra.mxu0 %v4419
    %5461 = vmatprep.subr.bf16.mxu0 %v4404
    %5462 = vmatpush2.bf16.msra.mxu0 %v4403
    %5463 = vmatprep.subr.bf16.mxu0 %v4388
    %5464 = vmatpush2.bf16.msra.mxu0 %v4387
    %5465 = vmatprep.subr.bf16.mxu0 %v4372
    %5466 = vmatpush2.bf16.msra.mxu0 %v4371
    %5467 = vmatprep.subr.bf16.mxu0 %v4356
    %5468 = vmatpush2.bf16.msra.mxu0 %v4355
    %5469 = vmatprep.subr.bf16.mxu0 %v4340
    %5470 = vmatpush2.bf16.msra.mxu0 %v4339
    %5471 = vmatprep.subr.bf16.mxu0 %v4324
    %5472 = vmatpush2.bf16.msra.mxu0 %v4323
    %5473 = vmatprep.subr.bf16.mxu0 %v4308
    %5474 = vmatpush2.bf16.msra.mxu0 %v4307
    %5475 = vmatprep.mubr.bf16.mxu0 %v2038
    %5476 = vmatmul.mubr.bf16.gmra.mxu0 %v2037
    %v5477 = vpop.f32.mrf.mxu0
    %v5478 = vadd.f32 %v2584, %v5477
    %v5479 = vpop.f32.mrf.mxu0
    %v5480 = vadd.f32 %v2588, %v5479
    %v5481 = vpop.f32.mrf.mxu0
    %v5482 = vpop.f32.mrf.mxu0
    %5483 = vdwg.mxu0
    %5484 = vmatprep.subr.bf16.mxu0 %v4548
    %5485 = vmatpush1.bf16.msra.mxu0 %v4547
    %5486 = vmatprep.subr.bf16.mxu0 %v4532
    %5487 = vmatpush1.bf16.msra.mxu0 %v4531
    %5488 = vmatprep.subr.bf16.mxu0 %v4516
    %5489 = vmatpush1.bf16.msra.mxu0 %v4515
    %5490 = vmatprep.subr.bf16.mxu0 %v4500
    %5491 = vmatpush1.bf16.msra.mxu0 %v4499
    %5492 = vmatprep.subr.bf16.mxu0 %v4484
    %5493 = vmatpush1.bf16.msra.mxu0 %v4483
    %5494 = vmatprep.subr.bf16.mxu0 %v4468
    %5495 = vmatpush1.bf16.msra.mxu0 %v4467
    %5496 = vmatprep.subr.bf16.mxu0 %v4452
    %5497 = vmatpush1.bf16.msra.mxu0 %v4451
    %5498 = vmatprep.subr.bf16.mxu0 %v4436
    %5499 = vmatpush1.bf16.msra.mxu0 %v4435
    %5500 = vmatprep.subr.bf16.mxu0 %v4676
    %5501 = vmatpush2.bf16.msra.mxu0 %v4675
    %5502 = vmatprep.subr.bf16.mxu0 %v4660
    %5503 = vmatpush2.bf16.msra.mxu0 %v4659
    %5504 = vmatprep.subr.bf16.mxu0 %v4644
    %5505 = vmatpush2.bf16.msra.mxu0 %v4643
    %5506 = vmatprep.subr.bf16.mxu0 %v4628
    %5507 = vmatpush2.bf16.msra.mxu0 %v4627
    %5508 = vmatprep.subr.bf16.mxu0 %v4612
    %5509 = vmatpush2.bf16.msra.mxu0 %v4611
    %5510 = vmatprep.subr.bf16.mxu0 %v4596
    %5511 = vmatpush2.bf16.msra.mxu0 %v4595
    %5512 = vmatprep.subr.bf16.mxu0 %v4580
    %5513 = vmatpush2.bf16.msra.mxu0 %v4579
    %5514 = vmatprep.subr.bf16.mxu0 %v4564
    %5515 = vmatpush2.bf16.msra.mxu0 %v4563
    %5516 = vmatprep.mubr.bf16.mxu0 %v2040
    %5517 = vmatmul.mubr.bf16.gmra.mxu0 %v2039
    %v5518 = vpop.f32.mrf.mxu0
    %v5519 = vadd.f32 %v5478, %v5518
    %v5520 = vpop.f32.mrf.mxu0
    %v5521 = vadd.f32 %v5480, %v5520
    %v5522 = vpop.f32.mrf.mxu0
    %v5523 = vpop.f32.mrf.mxu0
    %5524 = vdwg.mxu0
    %5525 = vmatprep.subr.bf16.mxu0 %v4294
    %5526 = vmatpush1.bf16.msra.mxu0 %v4293
    %5527 = vmatprep.subr.bf16.mxu0 %v4278
    %5528 = vmatpush1.bf16.msra.mxu0 %v4277
    %5529 = vmatprep.subr.bf16.mxu0 %v4262
    %5530 = vmatpush1.bf16.msra.mxu0 %v4261
    %5531 = vmatprep.subr.bf16.mxu0 %v4246
    %5532 = vmatpush1.bf16.msra.mxu0 %v4245
    %5533 = vmatprep.subr.bf16.mxu0 %v4230
    %5534 = vmatpush1.bf16.msra.mxu0 %v4229
    %5535 = vmatprep.subr.bf16.mxu0 %v4214
    %5536 = vmatpush1.bf16.msra.mxu0 %v4213
    %5537 = vmatprep.subr.bf16.mxu0 %v4198
    %5538 = vmatpush1.bf16.msra.mxu0 %v4197
    %5539 = vmatprep.subr.bf16.mxu0 %v4182
    %5540 = vmatpush1.bf16.msra.mxu0 %v4181
    %5541 = vmatprep.subr.bf16.mxu0 %v4422
    %5542 = vmatpush2.bf16.msra.mxu0 %v4421
    %5543 = vmatprep.subr.bf16.mxu0 %v4406
    %5544 = vmatpush2.bf16.msra.mxu0 %v4405
    %5545 = vmatprep.subr.bf16.mxu0 %v4390
    %5546 = vmatpush2.bf16.msra.mxu0 %v4389
    %5547 = vmatprep.subr.bf16.mxu0 %v4374
    %5548 = vmatpush2.bf16.msra.mxu0 %v4373
    %5549 = vmatprep.subr.bf16.mxu0 %v4358
    %5550 = vmatpush2.bf16.msra.mxu0 %v4357
    %5551 = vmatprep.subr.bf16.mxu0 %v4342
    %5552 = vmatpush2.bf16.msra.mxu0 %v4341
    %5553 = vmatprep.subr.bf16.mxu0 %v4326
    %5554 = vmatpush2.bf16.msra.mxu0 %v4325
    %5555 = vmatprep.subr.bf16.mxu0 %v4310
    %5556 = vmatpush2.bf16.msra.mxu0 %v4309
    %5557 = vmatprep.mubr.bf16.mxu0 %v2038
    %5558 = vmatmul.mubr.bf16.gmra.mxu0 %v2037
    %v5559 = vpop.f32.mrf.mxu0
    %v5560 = vadd.f32 %v2592, %v5559
    %v5561 = vpop.f32.mrf.mxu0
    %v5562 = vadd.f32 %v2596, %v5561
    %v5563 = vpop.f32.mrf.mxu0
    %v5564 = vpop.f32.mrf.mxu0
    %5565 = vdwg.mxu0
    %5566 = vmatprep.subr.bf16.mxu0 %v4550
    %5567 = vmatpush1.bf16.msra.mxu0 %v4549
    %5568 = vmatprep.subr.bf16.mxu0 %v4534
    %5569 = vmatpush1.bf16.msra.mxu0 %v4533
    %5570 = vmatprep.subr.bf16.mxu0 %v4518
    %5571 = vmatpush1.bf16.msra.mxu0 %v4517
    %5572 = vmatprep.subr.bf16.mxu0 %v4502
    %5573 = vmatpush1.bf16.msra.mxu0 %v4501
    %5574 = vmatprep.subr.bf16.mxu0 %v4486
    %5575 = vmatpush1.bf16.msra.mxu0 %v4485
    %5576 = vmatprep.subr.bf16.mxu0 %v4470
    %5577 = vmatpush1.bf16.msra.mxu0 %v4469
    %5578 = vmatprep.subr.bf16.mxu0 %v4454
    %5579 = vmatpush1.bf16.msra.mxu0 %v4453
    %5580 = vmatprep.subr.bf16.mxu0 %v4438
    %5581 = vmatpush1.bf16.msra.mxu0 %v4437
    %5582 = vmatprep.subr.bf16.mxu0 %v4678
    %5583 = vmatpush2.bf16.msra.mxu0 %v4677
    %5584 = vmatprep.subr.bf16.mxu0 %v4662
    %5585 = vmatpush2.bf16.msra.mxu0 %v4661
    %5586 = vmatprep.subr.bf16.mxu0 %v4646
    %5587 = vmatpush2.bf16.msra.mxu0 %v4645
    %5588 = vmatprep.subr.bf16.mxu0 %v4630
    %5589 = vmatpush2.bf16.msra.mxu0 %v4629
    %5590 = vmatprep.subr.bf16.mxu0 %v4614
    %5591 = vmatpush2.bf16.msra.mxu0 %v4613
    %5592 = vmatprep.subr.bf16.mxu0 %v4598
    %5593 = vmatpush2.bf16.msra.mxu0 %v4597
    %5594 = vmatprep.subr.bf16.mxu0 %v4582
    %5595 = vmatpush2.bf16.msra.mxu0 %v4581
    %5596 = vmatprep.subr.bf16.mxu0 %v4566
    %5597 = vmatpush2.bf16.msra.mxu0 %v4565
    %5598 = vmatprep.mubr.bf16.mxu0 %v2040
    %5599 = vmatmul.mubr.bf16.gmra.mxu0 %v2039
    %v5600 = vpop.f32.mrf.mxu0
    %v5601 = vadd.f32 %v5560, %v5600
    %v5602 = vpop.f32.mrf.mxu0
    %v5603 = vadd.f32 %v5562, %v5602
    %v5604 = vpop.f32.mrf.mxu0
    %v5605 = vpop.f32.mrf.mxu0
    %5606 = vdwg.mxu0
    %5607 = vmatprep.subr.bf16.mxu0 %v4296
    %5608 = vmatpush1.bf16.msra.mxu0 %v4295
    %5609 = vmatprep.subr.bf16.mxu0 %v4280
    %5610 = vmatpush1.bf16.msra.mxu0 %v4279
    %5611 = vmatprep.subr.bf16.mxu0 %v4264
    %5612 = vmatpush1.bf16.msra.mxu0 %v4263
    %5613 = vmatprep.subr.bf16.mxu0 %v4248
    %5614 = vmatpush1.bf16.msra.mxu0 %v4247
    %5615 = vmatprep.subr.bf16.mxu0 %v4232
    %5616 = vmatpush1.bf16.msra.mxu0 %v4231
    %5617 = vmatprep.subr.bf16.mxu0 %v4216
    %5618 = vmatpush1.bf16.msra.mxu0 %v4215
    %5619 = vmatprep.subr.bf16.mxu0 %v4200
    %5620 = vmatpush1.bf16.msra.mxu0 %v4199
    %5621 = vmatprep.subr.bf16.mxu0 %v4184
    %5622 = vmatpush1.bf16.msra.mxu0 %v4183
    %5623 = vmatprep.subr.bf16.mxu0 %v4424
    %5624 = vmatpush2.bf16.msra.mxu0 %v4423
    %5625 = vmatprep.subr.bf16.mxu0 %v4408
    %5626 = vmatpush2.bf16.msra.mxu0 %v4407
    %5627 = vmatprep.subr.bf16.mxu0 %v4392
    %5628 = vmatpush2.bf16.msra.mxu0 %v4391
    %5629 = vmatprep.subr.bf16.mxu0 %v4376
    %5630 = vmatpush2.bf16.msra.mxu0 %v4375
    %5631 = vmatprep.subr.bf16.mxu0 %v4360
    %5632 = vmatpush2.bf16.msra.mxu0 %v4359
    %5633 = vmatprep.subr.bf16.mxu0 %v4344
    %5634 = vmatpush2.bf16.msra.mxu0 %v4343
    %5635 = vmatprep.subr.bf16.mxu0 %v4328
    %5636 = vmatpush2.bf16.msra.mxu0 %v4327
    %5637 = vmatprep.subr.bf16.mxu0 %v4312
    %5638 = vmatpush2.bf16.msra.mxu0 %v4311
    %5639 = vmatprep.mubr.bf16.mxu0 %v2038
    %5640 = vmatmul.mubr.bf16.gmra.mxu0 %v2037
    %v5641 = vpop.f32.mrf.mxu0
    %v5642 = vadd.f32 %v2600, %v5641
    %v5643 = vpop.f32.mrf.mxu0
    %v5644 = vadd.f32 %v2604, %v5643
    %v5645 = vpop.f32.mrf.mxu0
    %v5646 = vpop.f32.mrf.mxu0
    %5647 = vdwg.mxu0
    %5648 = vmatprep.subr.bf16.mxu0 %v4552
    %5649 = vmatpush1.bf16.msra.mxu0 %v4551
    %5650 = vmatprep.subr.bf16.mxu0 %v4536
    %5651 = vmatpush1.bf16.msra.mxu0 %v4535
    %5652 = vmatprep.subr.bf16.mxu0 %v4520
    %5653 = vmatpush1.bf16.msra.mxu0 %v4519
    %5654 = vmatprep.subr.bf16.mxu0 %v4504
    %5655 = vmatpush1.bf16.msra.mxu0 %v4503
    %5656 = vmatprep.subr.bf16.mxu0 %v4488
    %5657 = vmatpush1.bf16.msra.mxu0 %v4487
    %5658 = vmatprep.subr.bf16.mxu0 %v4472
    %5659 = vmatpush1.bf16.msra.mxu0 %v4471
    %5660 = vmatprep.subr.bf16.mxu0 %v4456
    %5661 = vmatpush1.bf16.msra.mxu0 %v4455
    %5662 = vmatprep.subr.bf16.mxu0 %v4440
    %5663 = vmatpush1.bf16.msra.mxu0 %v4439
    %5664 = vmatprep.subr.bf16.mxu0 %v4680
    %5665 = vmatpush2.bf16.msra.mxu0 %v4679
    %5666 = vmatprep.subr.bf16.mxu0 %v4664
    %5667 = vmatpush2.bf16.msra.mxu0 %v4663
    %5668 = vmatprep.subr.bf16.mxu0 %v4648
    %5669 = vmatpush2.bf16.msra.mxu0 %v4647
    %5670 = vmatprep.subr.bf16.mxu0 %v4632
    %5671 = vmatpush2.bf16.msra.mxu0 %v4631
    %5672 = vmatprep.subr.bf16.mxu0 %v4616
    %5673 = vmatpush2.bf16.msra.mxu0 %v4615
    %5674 = vmatprep.subr.bf16.mxu0 %v4600
    %5675 = vmatpush2.bf16.msra.mxu0 %v4599
    %5676 = vmatprep.subr.bf16.mxu0 %v4584
    %5677 = vmatpush2.bf16.msra.mxu0 %v4583
    %5678 = vmatprep.subr.bf16.mxu0 %v4568
    %5679 = vmatpush2.bf16.msra.mxu0 %v4567
    %5680 = vmatprep.mubr.bf16.mxu0 %v2040
    %5681 = vmatmul.mubr.bf16.gmra.mxu0 %v2039
    %v5682 = vpop.f32.mrf.mxu0
    %v5683 = vadd.f32 %v5642, %v5682
    %v5684 = vpop.f32.mrf.mxu0
    %v5685 = vadd.f32 %v5644, %v5684
    %v5686 = vpop.f32.mrf.mxu0
    %v5687 = vpop.f32.mrf.mxu0
    %5688 = vdwg.mxu0
    %5689 = vmatprep.subr.bf16.mxu0 %v4298
    %5690 = vmatpush1.bf16.msra.mxu0 %v4297
    %5691 = vmatprep.subr.bf16.mxu0 %v4282
    %5692 = vmatpush1.bf16.msra.mxu0 %v4281
    %5693 = vmatprep.subr.bf16.mxu0 %v4266
    %5694 = vmatpush1.bf16.msra.mxu0 %v4265
    %5695 = vmatprep.subr.bf16.mxu0 %v4250
    %5696 = vmatpush1.bf16.msra.mxu0 %v4249
    %5697 = vmatprep.subr.bf16.mxu0 %v4234
    %5698 = vmatpush1.bf16.msra.mxu0 %v4233
    %5699 = vmatprep.subr.bf16.mxu0 %v4218
    %5700 = vmatpush1.bf16.msra.mxu0 %v4217
    %5701 = vmatprep.subr.bf16.mxu0 %v4202
    %5702 = vmatpush1.bf16.msra.mxu0 %v4201
    %5703 = vmatprep.subr.bf16.mxu0 %v4186
    %5704 = vmatpush1.bf16.msra.mxu0 %v4185
    %5705 = vmatprep.subr.bf16.mxu0 %v4426
    %5706 = vmatpush2.bf16.msra.mxu0 %v4425
    %5707 = vmatprep.subr.bf16.mxu0 %v4410
    %5708 = vmatpush2.bf16.msra.mxu0 %v4409
    %5709 = vmatprep.subr.bf16.mxu0 %v4394
    %5710 = vmatpush2.bf16.msra.mxu0 %v4393
    %5711 = vmatprep.subr.bf16.mxu0 %v4378
    %5712 = vmatpush2.bf16.msra.mxu0 %v4377
    %5713 = vmatprep.subr.bf16.mxu0 %v4362
    %5714 = vmatpush2.bf16.msra.mxu0 %v4361
    %5715 = vmatprep.subr.bf16.mxu0 %v4346
    %5716 = vmatpush2.bf16.msra.mxu0 %v4345
    %5717 = vmatprep.subr.bf16.mxu0 %v4330
    %5718 = vmatpush2.bf16.msra.mxu0 %v4329
    %5719 = vmatprep.subr.bf16.mxu0 %v4314
    %5720 = vmatpush2.bf16.msra.mxu0 %v4313
    %5721 = vmatprep.mubr.bf16.mxu0 %v2038
    %5722 = vmatmul.mubr.bf16.gmra.mxu0 %v2037
    %v5723 = vpop.f32.mrf.mxu0
    %v5724 = vadd.f32 %v2608, %v5723
    %v5725 = vpop.f32.mrf.mxu0
    %v5726 = vadd.f32 %v2612, %v5725
    %v5727 = vpop.f32.mrf.mxu0
    %v5728 = vpop.f32.mrf.mxu0
    %5729 = vdwg.mxu0
    %5730 = vmatprep.subr.bf16.mxu0 %v4554
    %5731 = vmatpush1.bf16.msra.mxu0 %v4553
    %5732 = vmatprep.subr.bf16.mxu0 %v4538
    %5733 = vmatpush1.bf16.msra.mxu0 %v4537
    %5734 = vmatprep.subr.bf16.mxu0 %v4522
    %5735 = vmatpush1.bf16.msra.mxu0 %v4521
    %5736 = vmatprep.subr.bf16.mxu0 %v4506
    %5737 = vmatpush1.bf16.msra.mxu0 %v4505
    %5738 = vmatprep.subr.bf16.mxu0 %v4490
    %5739 = vmatpush1.bf16.msra.mxu0 %v4489
    %5740 = vmatprep.subr.bf16.mxu0 %v4474
    %5741 = vmatpush1.bf16.msra.mxu0 %v4473
    %5742 = vmatprep.subr.bf16.mxu0 %v4458
    %5743 = vmatpush1.bf16.msra.mxu0 %v4457
    %5744 = vmatprep.subr.bf16.mxu0 %v4442
    %5745 = vmatpush1.bf16.msra.mxu0 %v4441
    %5746 = vmatprep.subr.bf16.mxu0 %v4682
    %5747 = vmatpush2.bf16.msra.mxu0 %v4681
    %5748 = vmatprep.subr.bf16.mxu0 %v4666
    %5749 = vmatpush2.bf16.msra.mxu0 %v4665
    %5750 = vmatprep.subr.bf16.mxu0 %v4650
    %5751 = vmatpush2.bf16.msra.mxu0 %v4649
    %5752 = vmatprep.subr.bf16.mxu0 %v4634
    %5753 = vmatpush2.bf16.msra.mxu0 %v4633
    %5754 = vmatprep.subr.bf16.mxu0 %v4618
    %5755 = vmatpush2.bf16.msra.mxu0 %v4617
    %5756 = vmatprep.subr.bf16.mxu0 %v4602
    %5757 = vmatpush2.bf16.msra.mxu0 %v4601
    %5758 = vmatprep.subr.bf16.mxu0 %v4586
    %5759 = vmatpush2.bf16.msra.mxu0 %v4585
    %5760 = vmatprep.subr.bf16.mxu0 %v4570
    %5761 = vmatpush2.bf16.msra.mxu0 %v4569
    %5762 = vmatprep.mubr.bf16.mxu0 %v2040
    %5763 = vmatmul.mubr.bf16.gmra.mxu0 %v2039
    %v5764 = vpop.f32.mrf.mxu0
    %v5765 = vadd.f32 %v5724, %v5764
    %v5766 = vpop.f32.mrf.mxu0
    %v5767 = vadd.f32 %v5726, %v5766
    %v5768 = vpop.f32.mrf.mxu0
    %v5769 = vpop.f32.mrf.mxu0
    %5770 = vdwg.mxu0
    %5771 = vmatprep.subr.bf16.mxu0 %v4300
    %5772 = vmatpush1.bf16.msra.mxu0 %v4299
    %5773 = vmatprep.subr.bf16.mxu0 %v4284
    %5774 = vmatpush1.bf16.msra.mxu0 %v4283
    %5775 = vmatprep.subr.bf16.mxu0 %v4268
    %5776 = vmatpush1.bf16.msra.mxu0 %v4267
    %5777 = vmatprep.subr.bf16.mxu0 %v4252
    %5778 = vmatpush1.bf16.msra.mxu0 %v4251
    %5779 = vmatprep.subr.bf16.mxu0 %v4236
    %5780 = vmatpush1.bf16.msra.mxu0 %v4235
    %5781 = vmatprep.subr.bf16.mxu0 %v4220
    %5782 = vmatpush1.bf16.msra.mxu0 %v4219
    %5783 = vmatprep.subr.bf16.mxu0 %v4204
    %5784 = vmatpush1.bf16.msra.mxu0 %v4203
    %5785 = vmatprep.subr.bf16.mxu0 %v4188
    %5786 = vmatpush1.bf16.msra.mxu0 %v4187
    %5787 = vmatprep.subr.bf16.mxu0 %v4428
    %5788 = vmatpush2.bf16.msra.mxu0 %v4427
    %5789 = vmatprep.subr.bf16.mxu0 %v4412
    %5790 = vmatpush2.bf16.msra.mxu0 %v4411
    %5791 = vmatprep.subr.bf16.mxu0 %v4396
    %5792 = vmatpush2.bf16.msra.mxu0 %v4395
    %5793 = vmatprep.subr.bf16.mxu0 %v4380
    %5794 = vmatpush2.bf16.msra.mxu0 %v4379
    %5795 = vmatprep.subr.bf16.mxu0 %v4364
    %5796 = vmatpush2.bf16.msra.mxu0 %v4363
    %5797 = vmatprep.subr.bf16.mxu0 %v4348
    %5798 = vmatpush2.bf16.msra.mxu0 %v4347
    %5799 = vmatprep.subr.bf16.mxu0 %v4332
    %5800 = vmatpush2.bf16.msra.mxu0 %v4331
    %5801 = vmatprep.subr.bf16.mxu0 %v4316
    %5802 = vmatpush2.bf16.msra.mxu0 %v4315
    %5803 = vmatprep.mubr.bf16.mxu0 %v2038
    %5804 = vmatmul.mubr.bf16.gmra.mxu0 %v2037
    %v5805 = vpop.f32.mrf.mxu0
    %v5806 = vadd.f32 %v2616, %v5805
    %v5807 = vpop.f32.mrf.mxu0
    %v5808 = vadd.f32 %v2620, %v5807
    %v5809 = vpop.f32.mrf.mxu0
    %v5810 = vpop.f32.mrf.mxu0
    %5811 = vdwg.mxu0
    %5812 = vmatprep.subr.bf16.mxu0 %v4556
    %5813 = vmatpush1.bf16.msra.mxu0 %v4555
    %5814 = vmatprep.subr.bf16.mxu0 %v4540
    %5815 = vmatpush1.bf16.msra.mxu0 %v4539
    %5816 = vmatprep.subr.bf16.mxu0 %v4524
    %5817 = vmatpush1.bf16.msra.mxu0 %v4523
    %5818 = vmatprep.subr.bf16.mxu0 %v4508
    %5819 = vmatpush1.bf16.msra.mxu0 %v4507
    %5820 = vmatprep.subr.bf16.mxu0 %v4492
    %5821 = vmatpush1.bf16.msra.mxu0 %v4491
    %5822 = vmatprep.subr.bf16.mxu0 %v4476
    %5823 = vmatpush1.bf16.msra.mxu0 %v4475
    %5824 = vmatprep.subr.bf16.mxu0 %v4460
    %5825 = vmatpush1.bf16.msra.mxu0 %v4459
    %5826 = vmatprep.subr.bf16.mxu0 %v4444
    %5827 = vmatpush1.bf16.msra.mxu0 %v4443
    %5828 = vmatprep.subr.bf16.mxu0 %v4684
    %5829 = vmatpush2.bf16.msra.mxu0 %v4683
    %5830 = vmatprep.subr.bf16.mxu0 %v4668
    %5831 = vmatpush2.bf16.msra.mxu0 %v4667
    %5832 = vmatprep.subr.bf16.mxu0 %v4652
    %5833 = vmatpush2.bf16.msra.mxu0 %v4651
    %5834 = vmatprep.subr.bf16.mxu0 %v4636
    %5835 = vmatpush2.bf16.msra.mxu0 %v4635
    %5836 = vmatprep.subr.bf16.mxu0 %v4620
    %5837 = vmatpush2.bf16.msra.mxu0 %v4619
    %5838 = vmatprep.subr.bf16.mxu0 %v4604
    %5839 = vmatpush2.bf16.msra.mxu0 %v4603
    %5840 = vmatprep.subr.bf16.mxu0 %v4588
    %5841 = vmatpush2.bf16.msra.mxu0 %v4587
    %5842 = vmatprep.subr.bf16.mxu0 %v4572
    %5843 = vmatpush2.bf16.msra.mxu0 %v4571
    %5844 = vmatprep.mubr.bf16.mxu0 %v2040
    %5845 = vmatmul.mubr.bf16.gmra.mxu0 %v2039
    %v5846 = vpop.f32.mrf.mxu0
    %v5847 = vadd.f32 %v5806, %v5846
    %v5848 = vpop.f32.mrf.mxu0
    %v5849 = vadd.f32 %v5808, %v5848
    %v5850 = vpop.f32.mrf.mxu0
    %v5851 = vpop.f32.mrf.mxu0
    %5852 = vdwg.mxu0
    %v5853 = vmax.f32 %v5273, 0.0
    %v5854 = vmax.f32 %v5275, 0.0
    %v5855 = vmax.f32 %v5355, 0.0
    %v5856 = vmax.f32 %v5357, 0.0
    %v5857 = vmax.f32 %v5437, 0.0
    %v5858 = vmax.f32 %v5439, 0.0
    %v5859 = vmax.f32 %v5519, 0.0
    %v5860 = vmax.f32 %v5521, 0.0
    %v5861 = vmax.f32 %v5601, 0.0
    %v5862 = vmax.f32 %v5603, 0.0
    %v5863 = vmax.f32 %v5683, 0.0
    %v5864 = vmax.f32 %v5685, 0.0
    %v5865 = vmax.f32 %v5765, 0.0
    %v5866 = vmax.f32 %v5767, 0.0
    %v5867 = vmax.f32 %v5847, 0.0
    %v5868 = vmax.f32 %v5849, 0.0
    %v5869 = vpack.c.bf16 %v5853, %v5853
    %v5870 = vpack.c.bf16 %v5854, %v5854
    %v5871 = vpack.c.bf16 %v5855, %v5855
    %v5872 = vpack.c.bf16 %v5856, %v5856
    %v5873 = vpack.c.bf16 %v5857, %v5857
    %v5874 = vpack.c.bf16 %v5858, %v5858
    %v5875 = vpack.c.bf16 %v5859, %v5859
    %v5876 = vpack.c.bf16 %v5860, %v5860
    %v5877 = vpack.c.bf16 %v5861, %v5861
    %v5878 = vpack.c.bf16 %v5862, %v5862
    %v5879 = vpack.c.bf16 %v5863, %v5863
    %v5880 = vpack.c.bf16 %v5864, %v5864
    %v5881 = vpack.c.bf16 %v5865, %v5865
    %v5882 = vpack.c.bf16 %v5866, %v5866
    %v5883 = vpack.c.bf16 %v5867, %v5867
    %v5884 = vpack.c.bf16 %v5868, %v5868
    %v5885 = vld [vmem:[#allocation11] sm:$0xf]
    %v5886 = vld [vmem:[#allocation11 + $0x4] sm:$0xf]
    %v5887 = vld [vmem:[#allocation11 + $0x8] sm:$0xf]
    %v5888 = vld [vmem:[#allocation11 + $0xc] sm:$0xf]
    %v5889 = vld [vmem:[#allocation11 + $0x10] sm:$0xf]
    %v5890 = vld [vmem:[#allocation11 + $0x14] sm:$0xf]
    %v5891 = vld [vmem:[#allocation11 + $0x18] sm:$0xf]
    %v5892 = vld [vmem:[#allocation11 + $0x1c] sm:$0xf]
    %v5893 = vld [vmem:[#allocation11 + $0x20] sm:$0xf]
    %v5894 = vld [vmem:[#allocation11 + $0x24] sm:$0xf]
    %v5895 = vld [vmem:[#allocation11 + $0x28] sm:$0xf]
    %v5896 = vld [vmem:[#allocation11 + $0x2c] sm:$0xf]
    %v5897 = vld [vmem:[#allocation11 + $0x30] sm:$0xf]
    %v5898 = vld [vmem:[#allocation11 + $0x34] sm:$0xf]
    %v5899 = vld [vmem:[#allocation11 + $0x38] sm:$0xf]
    %v5900 = vld [vmem:[#allocation11 + $0x3c] sm:$0xf]
    %v5901 = vld [vmem:[#allocation11 + $0x40] sm:$0xf]
    %v5902 = vld [vmem:[#allocation11 + $0x44] sm:$0xf]
    %v5903 = vld [vmem:[#allocation11 + $0x48] sm:$0xf]
    %v5904 = vld [vmem:[#allocation11 + $0x4c] sm:$0xf]
    %v5905 = vld [vmem:[#allocation11 + $0x50] sm:$0xf]
    %v5906 = vld [vmem:[#allocation11 + $0x54] sm:$0xf]
    %v5907 = vld [vmem:[#allocation11 + $0x58] sm:$0xf]
    %v5908 = vld [vmem:[#allocation11 + $0x5c] sm:$0xf]
    %v5909 = vld [vmem:[#allocation11 + $0x60] sm:$0xf]
    %v5910 = vld [vmem:[#allocation11 + $0x64] sm:$0xf]
    %v5911 = vld [vmem:[#allocation11 + $0x68] sm:$0xf]
    %v5912 = vld [vmem:[#allocation11 + $0x6c] sm:$0xf]
    %v5913 = vld [vmem:[#allocation11 + $0x70] sm:$0xf]
    %v5914 = vld [vmem:[#allocation11 + $0x74] sm:$0xf]
    %v5915 = vld [vmem:[#allocation11 + $0x78] sm:$0xf]
    %v5916 = vld [vmem:[#allocation11 + $0x7c] sm:$0xf]
    %v5917 = vld [vmem:[#allocation11 + $0x80] sm:$0xf]
    %v5918 = vld [vmem:[#allocation11 + $0x84] sm:$0xf]
    %v5919 = vld [vmem:[#allocation11 + $0x88] sm:$0xf]
    %v5920 = vld [vmem:[#allocation11 + $0x8c] sm:$0xf]
    %v5921 = vld [vmem:[#allocation11 + $0x90] sm:$0xf]
    %v5922 = vld [vmem:[#allocation11 + $0x94] sm:$0xf]
    %v5923 = vld [vmem:[#allocation11 + $0x98] sm:$0xf]
    %v5924 = vld [vmem:[#allocation11 + $0x9c] sm:$0xf]
    %v5925 = vld [vmem:[#allocation11 + $0xa0] sm:$0xf]
    %v5926 = vld [vmem:[#allocation11 + $0xa4] sm:$0xf]
    %v5927 = vld [vmem:[#allocation11 + $0xa8] sm:$0xf]
    %v5928 = vld [vmem:[#allocation11 + $0xac] sm:$0xf]
    %v5929 = vld [vmem:[#allocation11 + $0xb0] sm:$0xf]
    %v5930 = vld [vmem:[#allocation11 + $0xb4] sm:$0xf]
    %v5931 = vld [vmem:[#allocation11 + $0xb8] sm:$0xf]
    %v5932 = vld [vmem:[#allocation11 + $0xbc] sm:$0xf]
    %v5933 = vld [vmem:[#allocation11 + $0xc0] sm:$0xf]
    %v5934 = vld [vmem:[#allocation11 + $0xc4] sm:$0xf]
    %v5935 = vld [vmem:[#allocation11 + $0xc8] sm:$0xf]
    %v5936 = vld [vmem:[#allocation11 + $0xcc] sm:$0xf]
    %v5937 = vld [vmem:[#allocation11 + $0xd0] sm:$0xf]
    %v5938 = vld [vmem:[#allocation11 + $0xd4] sm:$0xf]
    %v5939 = vld [vmem:[#allocation11 + $0xd8] sm:$0xf]
    %v5940 = vld [vmem:[#allocation11 + $0xdc] sm:$0xf]
    %v5941 = vld [vmem:[#allocation11 + $0xe0] sm:$0xf]
    %v5942 = vld [vmem:[#allocation11 + $0xe4] sm:$0xf]
    %v5943 = vld [vmem:[#allocation11 + $0xe8] sm:$0xf]
    %v5944 = vld [vmem:[#allocation11 + $0xec] sm:$0xf]
    %v5945 = vld [vmem:[#allocation11 + $0xf0] sm:$0xf]
    %v5946 = vld [vmem:[#allocation11 + $0xf4] sm:$0xf]
    %v5947 = vld [vmem:[#allocation11 + $0xf8] sm:$0xf]
    %v5948 = vld [vmem:[#allocation11 + $0xfc] sm:$0xf]
    %v5949 = vld [vmem:[#allocation11 + $0x100] sm:$0xf]
    %v5950 = vld [vmem:[#allocation11 + $0x104] sm:$0xf]
    %v5951 = vld [vmem:[#allocation11 + $0x108] sm:$0xf]
    %v5952 = vld [vmem:[#allocation11 + $0x10c] sm:$0xf]
    %v5953 = vld [vmem:[#allocation11 + $0x110] sm:$0xf]
    %v5954 = vld [vmem:[#allocation11 + $0x114] sm:$0xf]
    %v5955 = vld [vmem:[#allocation11 + $0x118] sm:$0xf]
    %v5956 = vld [vmem:[#allocation11 + $0x11c] sm:$0xf]
    %v5957 = vld [vmem:[#allocation11 + $0x120] sm:$0xf]
    %v5958 = vld [vmem:[#allocation11 + $0x124] sm:$0xf]
    %v5959 = vld [vmem:[#allocation11 + $0x128] sm:$0xf]
    %v5960 = vld [vmem:[#allocation11 + $0x12c] sm:$0xf]
    %v5961 = vld [vmem:[#allocation11 + $0x130] sm:$0xf]
    %v5962 = vld [vmem:[#allocation11 + $0x134] sm:$0xf]
    %v5963 = vld [vmem:[#allocation11 + $0x138] sm:$0xf]
    %v5964 = vld [vmem:[#allocation11 + $0x13c] sm:$0xf]
    %v5965 = vld [vmem:[#allocation11 + $0x140] sm:$0xf]
    %v5966 = vld [vmem:[#allocation11 + $0x144] sm:$0xf]
    %v5967 = vld [vmem:[#allocation11 + $0x148] sm:$0xf]
    %v5968 = vld [vmem:[#allocation11 + $0x14c] sm:$0xf]
    %v5969 = vld [vmem:[#allocation11 + $0x150] sm:$0xf]
    %v5970 = vld [vmem:[#allocation11 + $0x154] sm:$0xf]
    %v5971 = vld [vmem:[#allocation11 + $0x158] sm:$0xf]
    %v5972 = vld [vmem:[#allocation11 + $0x15c] sm:$0xf]
    %v5973 = vld [vmem:[#allocation11 + $0x160] sm:$0xf]
    %v5974 = vld [vmem:[#allocation11 + $0x164] sm:$0xf]
    %v5975 = vld [vmem:[#allocation11 + $0x168] sm:$0xf]
    %v5976 = vld [vmem:[#allocation11 + $0x16c] sm:$0xf]
    %v5977 = vld [vmem:[#allocation11 + $0x170] sm:$0xf]
    %v5978 = vld [vmem:[#allocation11 + $0x174] sm:$0xf]
    %v5979 = vld [vmem:[#allocation11 + $0x178] sm:$0xf]
    %v5980 = vld [vmem:[#allocation11 + $0x17c] sm:$0xf]
    %v5981 = vld [vmem:[#allocation11 + $0x180] sm:$0xf]
    %v5982 = vld [vmem:[#allocation11 + $0x184] sm:$0xf]
    %v5983 = vld [vmem:[#allocation11 + $0x188] sm:$0xf]
    %v5984 = vld [vmem:[#allocation11 + $0x18c] sm:$0xf]
    %v5985 = vld [vmem:[#allocation11 + $0x190] sm:$0xf]
    %v5986 = vld [vmem:[#allocation11 + $0x194] sm:$0xf]
    %v5987 = vld [vmem:[#allocation11 + $0x198] sm:$0xf]
    %v5988 = vld [vmem:[#allocation11 + $0x19c] sm:$0xf]
    %v5989 = vld [vmem:[#allocation11 + $0x1a0] sm:$0xf]
    %v5990 = vld [vmem:[#allocation11 + $0x1a4] sm:$0xf]
    %v5991 = vld [vmem:[#allocation11 + $0x1a8] sm:$0xf]
    %v5992 = vld [vmem:[#allocation11 + $0x1ac] sm:$0xf]
    %v5993 = vld [vmem:[#allocation11 + $0x1b0] sm:$0xf]
    %v5994 = vld [vmem:[#allocation11 + $0x1b4] sm:$0xf]
    %v5995 = vld [vmem:[#allocation11 + $0x1b8] sm:$0xf]
    %v5996 = vld [vmem:[#allocation11 + $0x1bc] sm:$0xf]
    %v5997 = vld [vmem:[#allocation11 + $0x1c0] sm:$0xf]
    %v5998 = vld [vmem:[#allocation11 + $0x1c4] sm:$0xf]
    %v5999 = vld [vmem:[#allocation11 + $0x1c8] sm:$0xf]
    %v6000 = vld [vmem:[#allocation11 + $0x1cc] sm:$0xf]
    %v6001 = vld [vmem:[#allocation11 + $0x1d0] sm:$0xf]
    %v6002 = vld [vmem:[#allocation11 + $0x1d4] sm:$0xf]
    %v6003 = vld [vmem:[#allocation11 + $0x1d8] sm:$0xf]
    %v6004 = vld [vmem:[#allocation11 + $0x1dc] sm:$0xf]
    %v6005 = vld [vmem:[#allocation11 + $0x1e0] sm:$0xf]
    %v6006 = vld [vmem:[#allocation11 + $0x1e4] sm:$0xf]
    %v6007 = vld [vmem:[#allocation11 + $0x1e8] sm:$0xf]
    %v6008 = vld [vmem:[#allocation11 + $0x1ec] sm:$0xf]
    %v6009 = vld [vmem:[#allocation11 + $0x1f0] sm:$0xf]
    %v6010 = vld [vmem:[#allocation11 + $0x1f4] sm:$0xf]
    %v6011 = vld [vmem:[#allocation11 + $0x1f8] sm:$0xf]
    %v6012 = vld [vmem:[#allocation11 + $0x1fc] sm:$0xf]
    %v6013 = vld [vmem:[#allocation11 + $0x200] sm:$0xf]
    %v6014 = vld [vmem:[#allocation11 + $0x204] sm:$0xf]
    %v6015 = vld [vmem:[#allocation11 + $0x208] sm:$0xf]
    %v6016 = vld [vmem:[#allocation11 + $0x20c] sm:$0xf]
    %v6017 = vld [vmem:[#allocation11 + $0x210] sm:$0xf]
    %v6018 = vld [vmem:[#allocation11 + $0x214] sm:$0xf]
    %v6019 = vld [vmem:[#allocation11 + $0x218] sm:$0xf]
    %v6020 = vld [vmem:[#allocation11 + $0x21c] sm:$0xf]
    %v6021 = vld [vmem:[#allocation11 + $0x220] sm:$0xf]
    %v6022 = vld [vmem:[#allocation11 + $0x224] sm:$0xf]
    %v6023 = vld [vmem:[#allocation11 + $0x228] sm:$0xf]
    %v6024 = vld [vmem:[#allocation11 + $0x22c] sm:$0xf]
    %v6025 = vld [vmem:[#allocation11 + $0x230] sm:$0xf]
    %v6026 = vld [vmem:[#allocation11 + $0x234] sm:$0xf]
    %v6027 = vld [vmem:[#allocation11 + $0x238] sm:$0xf]
    %v6028 = vld [vmem:[#allocation11 + $0x23c] sm:$0xf]
    %v6029 = vld [vmem:[#allocation11 + $0x240] sm:$0xf]
    %v6030 = vld [vmem:[#allocation11 + $0x244] sm:$0xf]
    %v6031 = vld [vmem:[#allocation11 + $0x248] sm:$0xf]
    %v6032 = vld [vmem:[#allocation11 + $0x24c] sm:$0xf]
    %v6033 = vld [vmem:[#allocation11 + $0x250] sm:$0xf]
    %v6034 = vld [vmem:[#allocation11 + $0x254] sm:$0xf]
    %v6035 = vld [vmem:[#allocation11 + $0x258] sm:$0xf]
    %v6036 = vld [vmem:[#allocation11 + $0x25c] sm:$0xf]
    %v6037 = vld [vmem:[#allocation11 + $0x260] sm:$0xf]
    %v6038 = vld [vmem:[#allocation11 + $0x264] sm:$0xf]
    %v6039 = vld [vmem:[#allocation11 + $0x268] sm:$0xf]
    %v6040 = vld [vmem:[#allocation11 + $0x26c] sm:$0xf]
    %v6041 = vld [vmem:[#allocation11 + $0x270] sm:$0xf]
    %v6042 = vld [vmem:[#allocation11 + $0x274] sm:$0xf]
    %v6043 = vld [vmem:[#allocation11 + $0x278] sm:$0xf]
    %v6044 = vld [vmem:[#allocation11 + $0x27c] sm:$0xf]
    %v6045 = vld [vmem:[#allocation11 + $0x280] sm:$0xf]
    %v6046 = vld [vmem:[#allocation11 + $0x284] sm:$0xf]
    %v6047 = vld [vmem:[#allocation11 + $0x288] sm:$0xf]
    %v6048 = vld [vmem:[#allocation11 + $0x28c] sm:$0xf]
    %v6049 = vld [vmem:[#allocation11 + $0x290] sm:$0xf]
    %v6050 = vld [vmem:[#allocation11 + $0x294] sm:$0xf]
    %v6051 = vld [vmem:[#allocation11 + $0x298] sm:$0xf]
    %v6052 = vld [vmem:[#allocation11 + $0x29c] sm:$0xf]
    %v6053 = vld [vmem:[#allocation11 + $0x2a0] sm:$0xf]
    %v6054 = vld [vmem:[#allocation11 + $0x2a4] sm:$0xf]
    %v6055 = vld [vmem:[#allocation11 + $0x2a8] sm:$0xf]
    %v6056 = vld [vmem:[#allocation11 + $0x2ac] sm:$0xf]
    %v6057 = vld [vmem:[#allocation11 + $0x2b0] sm:$0xf]
    %v6058 = vld [vmem:[#allocation11 + $0x2b4] sm:$0xf]
    %v6059 = vld [vmem:[#allocation11 + $0x2b8] sm:$0xf]
    %v6060 = vld [vmem:[#allocation11 + $0x2bc] sm:$0xf]
    %v6061 = vld [vmem:[#allocation11 + $0x2c0] sm:$0xf]
    %v6062 = vld [vmem:[#allocation11 + $0x2c4] sm:$0xf]
    %v6063 = vld [vmem:[#allocation11 + $0x2c8] sm:$0xf]
    %v6064 = vld [vmem:[#allocation11 + $0x2cc] sm:$0xf]
    %v6065 = vld [vmem:[#allocation11 + $0x2d0] sm:$0xf]
    %v6066 = vld [vmem:[#allocation11 + $0x2d4] sm:$0xf]
    %v6067 = vld [vmem:[#allocation11 + $0x2d8] sm:$0xf]
    %v6068 = vld [vmem:[#allocation11 + $0x2dc] sm:$0xf]
    %v6069 = vld [vmem:[#allocation11 + $0x2e0] sm:$0xf]
    %v6070 = vld [vmem:[#allocation11 + $0x2e4] sm:$0xf]
    %v6071 = vld [vmem:[#allocation11 + $0x2e8] sm:$0xf]
    %v6072 = vld [vmem:[#allocation11 + $0x2ec] sm:$0xf]
    %v6073 = vld [vmem:[#allocation11 + $0x2f0] sm:$0xf]
    %v6074 = vld [vmem:[#allocation11 + $0x2f4] sm:$0xf]
    %v6075 = vld [vmem:[#allocation11 + $0x2f8] sm:$0xf]
    %v6076 = vld [vmem:[#allocation11 + $0x2fc] sm:$0xf]
    %v6077 = vld [vmem:[#allocation11 + $0x300] sm:$0xf]
    %v6078 = vld [vmem:[#allocation11 + $0x304] sm:$0xf]
    %v6079 = vld [vmem:[#allocation11 + $0x308] sm:$0xf]
    %v6080 = vld [vmem:[#allocation11 + $0x30c] sm:$0xf]
    %v6081 = vld [vmem:[#allocation11 + $0x310] sm:$0xf]
    %v6082 = vld [vmem:[#allocation11 + $0x314] sm:$0xf]
    %v6083 = vld [vmem:[#allocation11 + $0x318] sm:$0xf]
    %v6084 = vld [vmem:[#allocation11 + $0x31c] sm:$0xf]
    %v6085 = vld [vmem:[#allocation11 + $0x320] sm:$0xf]
    %v6086 = vld [vmem:[#allocation11 + $0x324] sm:$0xf]
    %v6087 = vld [vmem:[#allocation11 + $0x328] sm:$0xf]
    %v6088 = vld [vmem:[#allocation11 + $0x32c] sm:$0xf]
    %v6089 = vld [vmem:[#allocation11 + $0x330] sm:$0xf]
    %v6090 = vld [vmem:[#allocation11 + $0x334] sm:$0xf]
    %v6091 = vld [vmem:[#allocation11 + $0x338] sm:$0xf]
    %v6092 = vld [vmem:[#allocation11 + $0x33c] sm:$0xf]
    %v6093 = vld [vmem:[#allocation11 + $0x340] sm:$0xf]
    %v6094 = vld [vmem:[#allocation11 + $0x344] sm:$0xf]
    %v6095 = vld [vmem:[#allocation11 + $0x348] sm:$0xf]
    %v6096 = vld [vmem:[#allocation11 + $0x34c] sm:$0xf]
    %v6097 = vld [vmem:[#allocation11 + $0x350] sm:$0xf]
    %v6098 = vld [vmem:[#allocation11 + $0x354] sm:$0xf]
    %v6099 = vld [vmem:[#allocation11 + $0x358] sm:$0xf]
    %v6100 = vld [vmem:[#allocation11 + $0x35c] sm:$0xf]
    %v6101 = vld [vmem:[#allocation11 + $0x360] sm:$0xf]
    %v6102 = vld [vmem:[#allocation11 + $0x364] sm:$0xf]
    %v6103 = vld [vmem:[#allocation11 + $0x368] sm:$0xf]
    %v6104 = vld [vmem:[#allocation11 + $0x36c] sm:$0xf]
    %v6105 = vld [vmem:[#allocation11 + $0x370] sm:$0xf]
    %v6106 = vld [vmem:[#allocation11 + $0x374] sm:$0xf]
    %v6107 = vld [vmem:[#allocation11 + $0x378] sm:$0xf]
    %v6108 = vld [vmem:[#allocation11 + $0x37c] sm:$0xf]
    %v6109 = vld [vmem:[#allocation11 + $0x380] sm:$0xf]
    %v6110 = vld [vmem:[#allocation11 + $0x384] sm:$0xf]
    %v6111 = vld [vmem:[#allocation11 + $0x388] sm:$0xf]
    %v6112 = vld [vmem:[#allocation11 + $0x38c] sm:$0xf]
    %v6113 = vld [vmem:[#allocation11 + $0x390] sm:$0xf]
    %v6114 = vld [vmem:[#allocation11 + $0x394] sm:$0xf]
    %v6115 = vld [vmem:[#allocation11 + $0x398] sm:$0xf]
    %v6116 = vld [vmem:[#allocation11 + $0x39c] sm:$0xf]
    %v6117 = vld [vmem:[#allocation11 + $0x3a0] sm:$0xf]
    %v6118 = vld [vmem:[#allocation11 + $0x3a4] sm:$0xf]
    %v6119 = vld [vmem:[#allocation11 + $0x3a8] sm:$0xf]
    %v6120 = vld [vmem:[#allocation11 + $0x3ac] sm:$0xf]
    %v6121 = vld [vmem:[#allocation11 + $0x3b0] sm:$0xf]
    %v6122 = vld [vmem:[#allocation11 + $0x3b4] sm:$0xf]
    %v6123 = vld [vmem:[#allocation11 + $0x3b8] sm:$0xf]
    %v6124 = vld [vmem:[#allocation11 + $0x3bc] sm:$0xf]
    %v6125 = vld [vmem:[#allocation11 + $0x3c0] sm:$0xf]
    %v6126 = vld [vmem:[#allocation11 + $0x3c4] sm:$0xf]
    %v6127 = vld [vmem:[#allocation11 + $0x3c8] sm:$0xf]
    %v6128 = vld [vmem:[#allocation11 + $0x3cc] sm:$0xf]
    %v6129 = vld [vmem:[#allocation11 + $0x3d0] sm:$0xf]
    %v6130 = vld [vmem:[#allocation11 + $0x3d4] sm:$0xf]
    %v6131 = vld [vmem:[#allocation11 + $0x3d8] sm:$0xf]
    %v6132 = vld [vmem:[#allocation11 + $0x3dc] sm:$0xf]
    %v6133 = vld [vmem:[#allocation11 + $0x3e0] sm:$0xf]
    %v6134 = vld [vmem:[#allocation11 + $0x3e4] sm:$0xf]
    %v6135 = vld [vmem:[#allocation11 + $0x3e8] sm:$0xf]
    %v6136 = vld [vmem:[#allocation11 + $0x3ec] sm:$0xf]
    %v6137 = vld [vmem:[#allocation11 + $0x3f0] sm:$0xf]
    %v6138 = vld [vmem:[#allocation11 + $0x3f4] sm:$0xf]
    %v6139 = vld [vmem:[#allocation11 + $0x3f8] sm:$0xf]
    %v6140 = vld [vmem:[#allocation11 + $0x3fc] sm:$0xf]
    %v6141 = vld [vmem:[#allocation13] sm:$0x1]
    %v6143 = vlaneseq
    %v6144 = vshrl.u32 %v6143, 7
    %v6145 = vsub.s32 0, %v6144
    %v6146 = vrot.slane %v6141, %v6145
    %v6404 = vunpack.c.l.b16 %v5885
    %v6405 = vunpack.c.l.b16 %v5886
    %v6406 = vunpack.c.l.b16 %v5887
    %v6407 = vunpack.c.l.b16 %v5888
    %v6408 = vunpack.c.l.b16 %v5889
    %v6409 = vunpack.c.l.b16 %v5890
    %v6410 = vunpack.c.l.b16 %v5891
    %v6411 = vunpack.c.l.b16 %v5892
    %v6412 = vunpack.c.l.b16 %v5893
    %v6413 = vunpack.c.l.b16 %v5894
    %v6414 = vunpack.c.l.b16 %v5895
    %v6415 = vunpack.c.l.b16 %v5896
    %v6416 = vunpack.c.l.b16 %v5897
    %v6417 = vunpack.c.l.b16 %v5898
    %v6418 = vunpack.c.l.b16 %v5899
    %v6419 = vunpack.c.l.b16 %v5900
    %v6420 = vunpack.c.l.b16 %v5901
    %v6421 = vunpack.c.l.b16 %v5902
    %v6422 = vunpack.c.l.b16 %v5903
    %v6423 = vunpack.c.l.b16 %v5904
    %v6424 = vunpack.c.l.b16 %v5905
    %v6425 = vunpack.c.l.b16 %v5906
    %v6426 = vunpack.c.l.b16 %v5907
    %v6427 = vunpack.c.l.b16 %v5908
    %v6428 = vunpack.c.l.b16 %v5909
    %v6429 = vunpack.c.l.b16 %v5910
    %v6430 = vunpack.c.l.b16 %v5911
    %v6431 = vunpack.c.l.b16 %v5912
    %v6432 = vunpack.c.l.b16 %v5913
    %v6433 = vunpack.c.l.b16 %v5914
    %v6434 = vunpack.c.l.b16 %v5915
    %v6435 = vunpack.c.l.b16 %v5916
    %v6436 = vunpack.c.l.b16 %v5917
    %v6437 = vunpack.c.l.b16 %v5918
    %v6438 = vunpack.c.l.b16 %v5919
    %v6439 = vunpack.c.l.b16 %v5920
    %v6440 = vunpack.c.l.b16 %v5921
    %v6441 = vunpack.c.l.b16 %v5922
    %v6442 = vunpack.c.l.b16 %v5923
    %v6443 = vunpack.c.l.b16 %v5924
    %v6444 = vunpack.c.l.b16 %v5925
    %v6445 = vunpack.c.l.b16 %v5926
    %v6446 = vunpack.c.l.b16 %v5927
    %v6447 = vunpack.c.l.b16 %v5928
    %v6448 = vunpack.c.l.b16 %v5929
    %v6449 = vunpack.c.l.b16 %v5930
    %v6450 = vunpack.c.l.b16 %v5931
    %v6451 = vunpack.c.l.b16 %v5932
    %v6452 = vunpack.c.l.b16 %v5933
    %v6453 = vunpack.c.l.b16 %v5934
    %v6454 = vunpack.c.l.b16 %v5935
    %v6455 = vunpack.c.l.b16 %v5936
    %v6456 = vunpack.c.l.b16 %v5937
    %v6457 = vunpack.c.l.b16 %v5938
    %v6458 = vunpack.c.l.b16 %v5939
    %v6459 = vunpack.c.l.b16 %v5940
    %v6460 = vunpack.c.l.b16 %v5941
    %v6461 = vunpack.c.l.b16 %v5942
    %v6462 = vunpack.c.l.b16 %v5943
    %v6463 = vunpack.c.l.b16 %v5944
    %v6464 = vunpack.c.l.b16 %v5945
    %v6465 = vunpack.c.l.b16 %v5946
    %v6466 = vunpack.c.l.b16 %v5947
    %v6467 = vunpack.c.l.b16 %v5948
    %v6468 = vunpack.c.l.b16 %v5949
    %v6469 = vunpack.c.l.b16 %v5950
    %v6470 = vunpack.c.l.b16 %v5951
    %v6471 = vunpack.c.l.b16 %v5952
    %v6472 = vunpack.c.l.b16 %v5953
    %v6473 = vunpack.c.l.b16 %v5954
    %v6474 = vunpack.c.l.b16 %v5955
    %v6475 = vunpack.c.l.b16 %v5956
    %v6476 = vunpack.c.l.b16 %v5957
    %v6477 = vunpack.c.l.b16 %v5958
    %v6478 = vunpack.c.l.b16 %v5959
    %v6479 = vunpack.c.l.b16 %v5960
    %v6480 = vunpack.c.l.b16 %v5961
    %v6481 = vunpack.c.l.b16 %v5962
    %v6482 = vunpack.c.l.b16 %v5963
    %v6483 = vunpack.c.l.b16 %v5964
    %v6484 = vunpack.c.l.b16 %v5965
    %v6485 = vunpack.c.l.b16 %v5966
    %v6486 = vunpack.c.l.b16 %v5967
    %v6487 = vunpack.c.l.b16 %v5968
    %v6488 = vunpack.c.l.b16 %v5969
    %v6489 = vunpack.c.l.b16 %v5970
    %v6490 = vunpack.c.l.b16 %v5971
    %v6491 = vunpack.c.l.b16 %v5972
    %v6492 = vunpack.c.l.b16 %v5973
    %v6493 = vunpack.c.l.b16 %v5974
    %v6494 = vunpack.c.l.b16 %v5975
    %v6495 = vunpack.c.l.b16 %v5976
    %v6496 = vunpack.c.l.b16 %v5977
    %v6497 = vunpack.c.l.b16 %v5978
    %v6498 = vunpack.c.l.b16 %v5979
    %v6499 = vunpack.c.l.b16 %v5980
    %v6500 = vunpack.c.l.b16 %v5981
    %v6501 = vunpack.c.l.b16 %v5982
    %v6502 = vunpack.c.l.b16 %v5983
    %v6503 = vunpack.c.l.b16 %v5984
    %v6504 = vunpack.c.l.b16 %v5985
    %v6505 = vunpack.c.l.b16 %v5986
    %v6506 = vunpack.c.l.b16 %v5987
    %v6507 = vunpack.c.l.b16 %v5988
    %v6508 = vunpack.c.l.b16 %v5989
    %v6509 = vunpack.c.l.b16 %v5990
    %v6510 = vunpack.c.l.b16 %v5991
    %v6511 = vunpack.c.l.b16 %v5992
    %v6512 = vunpack.c.l.b16 %v5993
    %v6513 = vunpack.c.l.b16 %v5994
    %v6514 = vunpack.c.l.b16 %v5995
    %v6515 = vunpack.c.l.b16 %v5996
    %v6516 = vunpack.c.l.b16 %v5997
    %v6517 = vunpack.c.l.b16 %v5998
    %v6518 = vunpack.c.l.b16 %v5999
    %v6519 = vunpack.c.l.b16 %v6000
    %v6520 = vunpack.c.l.b16 %v6001
    %v6521 = vunpack.c.l.b16 %v6002
    %v6522 = vunpack.c.l.b16 %v6003
    %v6523 = vunpack.c.l.b16 %v6004
    %v6524 = vunpack.c.l.b16 %v6005
    %v6525 = vunpack.c.l.b16 %v6006
    %v6526 = vunpack.c.l.b16 %v6007
    %v6527 = vunpack.c.l.b16 %v6008
    %v6528 = vunpack.c.l.b16 %v6009
    %v6529 = vunpack.c.l.b16 %v6010
    %v6530 = vunpack.c.l.b16 %v6011
    %v6531 = vunpack.c.l.b16 %v6012
    %v6532 = vunpack.c.l.b16 %v6013
    %v6533 = vunpack.c.l.b16 %v6014
    %v6534 = vunpack.c.l.b16 %v6015
    %v6535 = vunpack.c.l.b16 %v6016
    %v6536 = vunpack.c.l.b16 %v6017
    %v6537 = vunpack.c.l.b16 %v6018
    %v6538 = vunpack.c.l.b16 %v6019
    %v6539 = vunpack.c.l.b16 %v6020
    %v6540 = vunpack.c.l.b16 %v6021
    %v6541 = vunpack.c.l.b16 %v6022
    %v6542 = vunpack.c.l.b16 %v6023
    %v6543 = vunpack.c.l.b16 %v6024
    %v6544 = vunpack.c.l.b16 %v6025
    %v6545 = vunpack.c.l.b16 %v6026
    %v6546 = vunpack.c.l.b16 %v6027
    %v6547 = vunpack.c.l.b16 %v6028
    %v6548 = vunpack.c.l.b16 %v6029
    %v6549 = vunpack.c.l.b16 %v6030
    %v6550 = vunpack.c.l.b16 %v6031
    %v6551 = vunpack.c.l.b16 %v6032
    %v6552 = vunpack.c.l.b16 %v6033
    %v6553 = vunpack.c.l.b16 %v6034
    %v6554 = vunpack.c.l.b16 %v6035
    %v6555 = vunpack.c.l.b16 %v6036
    %v6556 = vunpack.c.l.b16 %v6037
    %v6557 = vunpack.c.l.b16 %v6038
    %v6558 = vunpack.c.l.b16 %v6039
    %v6559 = vunpack.c.l.b16 %v6040
    %v6560 = vunpack.c.l.b16 %v6041
    %v6561 = vunpack.c.l.b16 %v6042
    %v6562 = vunpack.c.l.b16 %v6043
    %v6563 = vunpack.c.l.b16 %v6044
    %v6564 = vunpack.c.l.b16 %v6045
    %v6565 = vunpack.c.l.b16 %v6046
    %v6566 = vunpack.c.l.b16 %v6047
    %v6567 = vunpack.c.l.b16 %v6048
    %v6568 = vunpack.c.l.b16 %v6049
    %v6569 = vunpack.c.l.b16 %v6050
    %v6570 = vunpack.c.l.b16 %v6051
    %v6571 = vunpack.c.l.b16 %v6052
    %v6572 = vunpack.c.l.b16 %v6053
    %v6573 = vunpack.c.l.b16 %v6054
    %v6574 = vunpack.c.l.b16 %v6055
    %v6575 = vunpack.c.l.b16 %v6056
    %v6576 = vunpack.c.l.b16 %v6057
    %v6577 = vunpack.c.l.b16 %v6058
    %v6578 = vunpack.c.l.b16 %v6059
    %v6579 = vunpack.c.l.b16 %v6060
    %v6580 = vunpack.c.l.b16 %v6061
    %v6581 = vunpack.c.l.b16 %v6062
    %v6582 = vunpack.c.l.b16 %v6063
    %v6583 = vunpack.c.l.b16 %v6064
    %v6584 = vunpack.c.l.b16 %v6065
    %v6585 = vunpack.c.l.b16 %v6066
    %v6586 = vunpack.c.l.b16 %v6067
    %v6587 = vunpack.c.l.b16 %v6068
    %v6588 = vunpack.c.l.b16 %v6069
    %v6589 = vunpack.c.l.b16 %v6070
    %v6590 = vunpack.c.l.b16 %v6071
    %v6591 = vunpack.c.l.b16 %v6072
    %v6592 = vunpack.c.l.b16 %v6073
    %v6593 = vunpack.c.l.b16 %v6074
    %v6594 = vunpack.c.l.b16 %v6075
    %v6595 = vunpack.c.l.b16 %v6076
    %v6596 = vunpack.c.l.b16 %v6077
    %v6597 = vunpack.c.l.b16 %v6078
    %v6598 = vunpack.c.l.b16 %v6079
    %v6599 = vunpack.c.l.b16 %v6080
    %v6600 = vunpack.c.l.b16 %v6081
    %v6601 = vunpack.c.l.b16 %v6082
    %v6602 = vunpack.c.l.b16 %v6083
    %v6603 = vunpack.c.l.b16 %v6084
    %v6604 = vunpack.c.l.b16 %v6085
    %v6605 = vunpack.c.l.b16 %v6086
    %v6606 = vunpack.c.l.b16 %v6087
    %v6607 = vunpack.c.l.b16 %v6088
    %v6608 = vunpack.c.l.b16 %v6089
    %v6609 = vunpack.c.l.b16 %v6090
    %v6610 = vunpack.c.l.b16 %v6091
    %v6611 = vunpack.c.l.b16 %v6092
    %v6612 = vunpack.c.l.b16 %v6093
    %v6613 = vunpack.c.l.b16 %v6094
    %v6614 = vunpack.c.l.b16 %v6095
    %v6615 = vunpack.c.l.b16 %v6096
    %v6616 = vunpack.c.l.b16 %v6097
    %v6617 = vunpack.c.l.b16 %v6098
    %v6618 = vunpack.c.l.b16 %v6099
    %v6619 = vunpack.c.l.b16 %v6100
    %v6620 = vunpack.c.l.b16 %v6101
    %v6621 = vunpack.c.l.b16 %v6102
    %v6622 = vunpack.c.l.b16 %v6103
    %v6623 = vunpack.c.l.b16 %v6104
    %v6624 = vunpack.c.l.b16 %v6105
    %v6625 = vunpack.c.l.b16 %v6106
    %v6626 = vunpack.c.l.b16 %v6107
    %v6627 = vunpack.c.l.b16 %v6108
    %v6628 = vunpack.c.l.b16 %v6109
    %v6629 = vunpack.c.l.b16 %v6110
    %v6630 = vunpack.c.l.b16 %v6111
    %v6631 = vunpack.c.l.b16 %v6112
    %v6632 = vunpack.c.l.b16 %v6113
    %v6633 = vunpack.c.l.b16 %v6114
    %v6634 = vunpack.c.l.b16 %v6115
    %v6635 = vunpack.c.l.b16 %v6116
    %v6636 = vunpack.c.l.b16 %v6117
    %v6637 = vunpack.c.l.b16 %v6118
    %v6638 = vunpack.c.l.b16 %v6119
    %v6639 = vunpack.c.l.b16 %v6120
    %v6640 = vunpack.c.l.b16 %v6121
    %v6641 = vunpack.c.l.b16 %v6122
    %v6642 = vunpack.c.l.b16 %v6123
    %v6643 = vunpack.c.l.b16 %v6124
    %v6644 = vunpack.c.l.b16 %v6125
    %v6645 = vunpack.c.l.b16 %v6126
    %v6646 = vunpack.c.l.b16 %v6127
    %v6647 = vunpack.c.l.b16 %v6128
    %v6648 = vunpack.c.l.b16 %v6129
    %v6649 = vunpack.c.l.b16 %v6130
    %v6650 = vunpack.c.l.b16 %v6131
    %v6651 = vunpack.c.l.b16 %v6132
    %v6652 = vunpack.c.l.b16 %v6133
    %v6653 = vunpack.c.l.b16 %v6134
    %v6654 = vunpack.c.l.b16 %v6135
    %v6655 = vunpack.c.l.b16 %v6136
    %v6656 = vunpack.c.l.b16 %v6137
    %v6657 = vunpack.c.l.b16 %v6138
    %v6658 = vunpack.c.l.b16 %v6139
    %v6659 = vunpack.c.l.b16 %v6140
    %v6660 = vpack.c.b16 %v6405, %v6404
    %v6661 = vpack.c.b16 %v6407, %v6406
    %v6662 = vpack.c.b16 %v6409, %v6408
    %v6663 = vpack.c.b16 %v6411, %v6410
    %v6664 = vpack.c.b16 %v6413, %v6412
    %v6665 = vpack.c.b16 %v6415, %v6414
    %v6666 = vpack.c.b16 %v6417, %v6416
    %v6667 = vpack.c.b16 %v6419, %v6418
    %v6668 = vpack.c.b16 %v6421, %v6420
    %v6669 = vpack.c.b16 %v6423, %v6422
    %v6670 = vpack.c.b16 %v6425, %v6424
    %v6671 = vpack.c.b16 %v6427, %v6426
    %v6672 = vpack.c.b16 %v6429, %v6428
    %v6673 = vpack.c.b16 %v6431, %v6430
    %v6674 = vpack.c.b16 %v6433, %v6432
    %v6675 = vpack.c.b16 %v6435, %v6434
    %v6676 = vpack.c.b16 %v6437, %v6436
    %v6677 = vpack.c.b16 %v6439, %v6438
    %v6678 = vpack.c.b16 %v6441, %v6440
    %v6679 = vpack.c.b16 %v6443, %v6442
    %v6680 = vpack.c.b16 %v6445, %v6444
    %v6681 = vpack.c.b16 %v6447, %v6446
    %v6682 = vpack.c.b16 %v6449, %v6448
    %v6683 = vpack.c.b16 %v6451, %v6450
    %v6684 = vpack.c.b16 %v6453, %v6452
    %v6685 = vpack.c.b16 %v6455, %v6454
    %v6686 = vpack.c.b16 %v6457, %v6456
    %v6687 = vpack.c.b16 %v6459, %v6458
    %v6688 = vpack.c.b16 %v6461, %v6460
    %v6689 = vpack.c.b16 %v6463, %v6462
    %v6690 = vpack.c.b16 %v6465, %v6464
    %v6691 = vpack.c.b16 %v6467, %v6466
    %v6692 = vpack.c.b16 %v6469, %v6468
    %v6693 = vpack.c.b16 %v6471, %v6470
    %v6694 = vpack.c.b16 %v6473, %v6472
    %v6695 = vpack.c.b16 %v6475, %v6474
    %v6696 = vpack.c.b16 %v6477, %v6476
    %v6697 = vpack.c.b16 %v6479, %v6478
    %v6698 = vpack.c.b16 %v6481, %v6480
    %v6699 = vpack.c.b16 %v6483, %v6482
    %v6700 = vpack.c.b16 %v6485, %v6484
    %v6701 = vpack.c.b16 %v6487, %v6486
    %v6702 = vpack.c.b16 %v6489, %v6488
    %v6703 = vpack.c.b16 %v6491, %v6490
    %v6704 = vpack.c.b16 %v6493, %v6492
    %v6705 = vpack.c.b16 %v6495, %v6494
    %v6706 = vpack.c.b16 %v6497, %v6496
    %v6707 = vpack.c.b16 %v6499, %v6498
    %v6708 = vpack.c.b16 %v6501, %v6500
    %v6709 = vpack.c.b16 %v6503, %v6502
    %v6710 = vpack.c.b16 %v6505, %v6504
    %v6711 = vpack.c.b16 %v6507, %v6506
    %v6712 = vpack.c.b16 %v6509, %v6508
    %v6713 = vpack.c.b16 %v6511, %v6510
    %v6714 = vpack.c.b16 %v6513, %v6512
    %v6715 = vpack.c.b16 %v6515, %v6514
    %v6716 = vpack.c.b16 %v6517, %v6516
    %v6717 = vpack.c.b16 %v6519, %v6518
    %v6718 = vpack.c.b16 %v6521, %v6520
    %v6719 = vpack.c.b16 %v6523, %v6522
    %v6720 = vpack.c.b16 %v6525, %v6524
    %v6721 = vpack.c.b16 %v6527, %v6526
    %v6722 = vpack.c.b16 %v6529, %v6528
    %v6723 = vpack.c.b16 %v6531, %v6530
    %v6724 = vpack.c.b16 %v6533, %v6532
    %v6725 = vpack.c.b16 %v6535, %v6534
    %v6726 = vpack.c.b16 %v6537, %v6536
    %v6727 = vpack.c.b16 %v6539, %v6538
    %v6728 = vpack.c.b16 %v6541, %v6540
    %v6729 = vpack.c.b16 %v6543, %v6542
    %v6730 = vpack.c.b16 %v6545, %v6544
    %v6731 = vpack.c.b16 %v6547, %v6546
    %v6732 = vpack.c.b16 %v6549, %v6548
    %v6733 = vpack.c.b16 %v6551, %v6550
    %v6734 = vpack.c.b16 %v6553, %v6552
    %v6735 = vpack.c.b16 %v6555, %v6554
    %v6736 = vpack.c.b16 %v6557, %v6556
    %v6737 = vpack.c.b16 %v6559, %v6558
    %v6738 = vpack.c.b16 %v6561, %v6560
    %v6739 = vpack.c.b16 %v6563, %v6562
    %v6740 = vpack.c.b16 %v6565, %v6564
    %v6741 = vpack.c.b16 %v6567, %v6566
    %v6742 = vpack.c.b16 %v6569, %v6568
    %v6743 = vpack.c.b16 %v6571, %v6570
    %v6744 = vpack.c.b16 %v6573, %v6572
    %v6745 = vpack.c.b16 %v6575, %v6574
    %v6746 = vpack.c.b16 %v6577, %v6576
    %v6747 = vpack.c.b16 %v6579, %v6578
    %v6748 = vpack.c.b16 %v6581, %v6580
    %v6749 = vpack.c.b16 %v6583, %v6582
    %v6750 = vpack.c.b16 %v6585, %v6584
    %v6751 = vpack.c.b16 %v6587, %v6586
    %v6752 = vpack.c.b16 %v6589, %v6588
    %v6753 = vpack.c.b16 %v6591, %v6590
    %v6754 = vpack.c.b16 %v6593, %v6592
    %v6755 = vpack.c.b16 %v6595, %v6594
    %v6756 = vpack.c.b16 %v6597, %v6596
    %v6757 = vpack.c.b16 %v6599, %v6598
    %v6758 = vpack.c.b16 %v6601, %v6600
    %v6759 = vpack.c.b16 %v6603, %v6602
    %v6760 = vpack.c.b16 %v6605, %v6604
    %v6761 = vpack.c.b16 %v6607, %v6606
    %v6762 = vpack.c.b16 %v6609, %v6608
    %v6763 = vpack.c.b16 %v6611, %v6610
    %v6764 = vpack.c.b16 %v6613, %v6612
    %v6765 = vpack.c.b16 %v6615, %v6614
    %v6766 = vpack.c.b16 %v6617, %v6616
    %v6767 = vpack.c.b16 %v6619, %v6618
    %v6768 = vpack.c.b16 %v6621, %v6620
    %v6769 = vpack.c.b16 %v6623, %v6622
    %v6770 = vpack.c.b16 %v6625, %v6624
    %v6771 = vpack.c.b16 %v6627, %v6626
    %v6772 = vpack.c.b16 %v6629, %v6628
    %v6773 = vpack.c.b16 %v6631, %v6630
    %v6774 = vpack.c.b16 %v6633, %v6632
    %v6775 = vpack.c.b16 %v6635, %v6634
    %v6776 = vpack.c.b16 %v6637, %v6636
    %v6777 = vpack.c.b16 %v6639, %v6638
    %v6778 = vpack.c.b16 %v6641, %v6640
    %v6779 = vpack.c.b16 %v6643, %v6642
    %v6780 = vpack.c.b16 %v6645, %v6644
    %v6781 = vpack.c.b16 %v6647, %v6646
    %v6782 = vpack.c.b16 %v6649, %v6648
    %v6783 = vpack.c.b16 %v6651, %v6650
    %v6784 = vpack.c.b16 %v6653, %v6652
    %v6785 = vpack.c.b16 %v6655, %v6654
    %v6786 = vpack.c.b16 %v6657, %v6656
    %v6787 = vpack.c.b16 %v6659, %v6658
    %6916 = vmatprep.subr.bf16.mxu0 0
    %6917 = vmatpush1.bf16.msra.mxu0 %v6667
    %6918 = vmatprep.subr.bf16.mxu0 0
    %6919 = vmatpush1.bf16.msra.mxu0 %v6666
    %6920 = vmatprep.subr.bf16.mxu0 0
    %6921 = vmatpush1.bf16.msra.mxu0 %v6665
    %6922 = vmatprep.subr.bf16.mxu0 0
    %6923 = vmatpush1.bf16.msra.mxu0 %v6664
    %6924 = vmatprep.subr.bf16.mxu0 0
    %6925 = vmatpush1.bf16.msra.mxu0 %v6663
    %6926 = vmatprep.subr.bf16.mxu0 0
    %6927 = vmatpush1.bf16.msra.mxu0 %v6662
    %6928 = vmatprep.subr.bf16.mxu0 0
    %6929 = vmatpush1.bf16.msra.mxu0 %v6661
    %6930 = vmatprep.subr.bf16.mxu0 0
    %6931 = vmatpush1.bf16.msra.mxu0 %v6660
    %6932 = vmatprep.subr.bf16.mxu0 0
    %6933 = vmatpush2.bf16.msra.mxu0 %v6675
    %6934 = vmatprep.subr.bf16.mxu0 0
    %6935 = vmatpush2.bf16.msra.mxu0 %v6674
    %6936 = vmatprep.subr.bf16.mxu0 0
    %6937 = vmatpush2.bf16.msra.mxu0 %v6673
    %6938 = vmatprep.subr.bf16.mxu0 0
    %6939 = vmatpush2.bf16.msra.mxu0 %v6672
    %6940 = vmatprep.subr.bf16.mxu0 0
    %6941 = vmatpush2.bf16.msra.mxu0 %v6671
    %6942 = vmatprep.subr.bf16.mxu0 0
    %6943 = vmatpush2.bf16.msra.mxu0 %v6670
    %6944 = vmatprep.subr.bf16.mxu0 0
    %6945 = vmatpush2.bf16.msra.mxu0 %v6669
    %6946 = vmatprep.subr.bf16.mxu0 0
    %6947 = vmatpush2.bf16.msra.mxu0 %v6668
    %6948 = vmatprep.mubr.bf16.mxu0 %v5870
    %6949 = vmatmul.mubr.bf16.gmra.mxu0 %v5869
    %v6950 = vpop.f32.mrf.mxu0
    %v6951 = vadd.f32 %v6146, %v6950
    %v6952 = vpop.f32.mrf.mxu0
    %v6953 = vpop.f32.mrf.mxu0
    %v6954 = vpop.f32.mrf.mxu0
    %6955 = vdwg.mxu0
    %6956 = vmatprep.subr.bf16.mxu0 0
    %6957 = vmatpush1.bf16.msra.mxu0 %v6683
    %6958 = vmatprep.subr.bf16.mxu0 0
    %6959 = vmatpush1.bf16.msra.mxu0 %v6682
    %6960 = vmatprep.subr.bf16.mxu0 0
    %6961 = vmatpush1.bf16.msra.mxu0 %v6681
    %6962 = vmatprep.subr.bf16.mxu0 0
    %6963 = vmatpush1.bf16.msra.mxu0 %v6680
    %6964 = vmatprep.subr.bf16.mxu0 0
    %6965 = vmatpush1.bf16.msra.mxu0 %v6679
    %6966 = vmatprep.subr.bf16.mxu0 0
    %6967 = vmatpush1.bf16.msra.mxu0 %v6678
    %6968 = vmatprep.subr.bf16.mxu0 0
    %6969 = vmatpush1.bf16.msra.mxu0 %v6677
    %6970 = vmatprep.subr.bf16.mxu0 0
    %6971 = vmatpush1.bf16.msra.mxu0 %v6676
    %6972 = vmatprep.subr.bf16.mxu0 0
    %6973 = vmatpush2.bf16.msra.mxu0 %v6691
    %6974 = vmatprep.subr.bf16.mxu0 0
    %6975 = vmatpush2.bf16.msra.mxu0 %v6690
    %6976 = vmatprep.subr.bf16.mxu0 0
    %6977 = vmatpush2.bf16.msra.mxu0 %v6689
    %6978 = vmatprep.subr.bf16.mxu0 0
    %6979 = vmatpush2.bf16.msra.mxu0 %v6688
    %6980 = vmatprep.subr.bf16.mxu0 0
    %6981 = vmatpush2.bf16.msra.mxu0 %v6687
    %6982 = vmatprep.subr.bf16.mxu0 0
    %6983 = vmatpush2.bf16.msra.mxu0 %v6686
    %6984 = vmatprep.subr.bf16.mxu0 0
    %6985 = vmatpush2.bf16.msra.mxu0 %v6685
    %6986 = vmatprep.subr.bf16.mxu0 0
    %6987 = vmatpush2.bf16.msra.mxu0 %v6684
    %6988 = vmatprep.mubr.bf16.mxu0 %v5872
    %6989 = vmatmul.mubr.bf16.gmra.mxu0 %v5871
    %v6990 = vpop.f32.mrf.mxu0
    %v6991 = vadd.f32 %v6951, %v6990
    %v6992 = vpop.f32.mrf.mxu0
    %v6993 = vpop.f32.mrf.mxu0
    %v6994 = vpop.f32.mrf.mxu0
    %6995 = vdwg.mxu0
    %6996 = vmatprep.subr.bf16.mxu0 0
    %6997 = vmatpush1.bf16.msra.mxu0 %v6699
    %6998 = vmatprep.subr.bf16.mxu0 0
    %6999 = vmatpush1.bf16.msra.mxu0 %v6698
    %7000 = vmatprep.subr.bf16.mxu0 0
    %7001 = vmatpush1.bf16.msra.mxu0 %v6697
    %7002 = vmatprep.subr.bf16.mxu0 0
    %7003 = vmatpush1.bf16.msra.mxu0 %v6696
    %7004 = vmatprep.subr.bf16.mxu0 0
    %7005 = vmatpush1.bf16.msra.mxu0 %v6695
    %7006 = vmatprep.subr.bf16.mxu0 0
    %7007 = vmatpush1.bf16.msra.mxu0 %v6694
    %7008 = vmatprep.subr.bf16.mxu0 0
    %7009 = vmatpush1.bf16.msra.mxu0 %v6693
    %7010 = vmatprep.subr.bf16.mxu0 0
    %7011 = vmatpush1.bf16.msra.mxu0 %v6692
    %7012 = vmatprep.subr.bf16.mxu0 0
    %7013 = vmatpush2.bf16.msra.mxu0 %v6707
    %7014 = vmatprep.subr.bf16.mxu0 0
    %7015 = vmatpush2.bf16.msra.mxu0 %v6706
    %7016 = vmatprep.subr.bf16.mxu0 0
    %7017 = vmatpush2.bf16.msra.mxu0 %v6705
    %7018 = vmatprep.subr.bf16.mxu0 0
    %7019 = vmatpush2.bf16.msra.mxu0 %v6704
    %7020 = vmatprep.subr.bf16.mxu0 0
    %7021 = vmatpush2.bf16.msra.mxu0 %v6703
    %7022 = vmatprep.subr.bf16.mxu0 0
    %7023 = vmatpush2.bf16.msra.mxu0 %v6702
    %7024 = vmatprep.subr.bf16.mxu0 0
    %7025 = vmatpush2.bf16.msra.mxu0 %v6701
    %7026 = vmatprep.subr.bf16.mxu0 0
    %7027 = vmatpush2.bf16.msra.mxu0 %v6700
    %7028 = vmatprep.mubr.bf16.mxu0 %v5874
    %7029 = vmatmul.mubr.bf16.gmra.mxu0 %v5873
    %v7030 = vpop.f32.mrf.mxu0
    %v7031 = vadd.f32 %v6991, %v7030
    %v7032 = vpop.f32.mrf.mxu0
    %v7033 = vpop.f32.mrf.mxu0
    %v7034 = vpop.f32.mrf.mxu0
    %7035 = vdwg.mxu0
    %7036 = vmatprep.subr.bf16.mxu0 0
    %7037 = vmatpush1.bf16.msra.mxu0 %v6715
    %7038 = vmatprep.subr.bf16.mxu0 0
    %7039 = vmatpush1.bf16.msra.mxu0 %v6714
    %7040 = vmatprep.subr.bf16.mxu0 0
    %7041 = vmatpush1.bf16.msra.mxu0 %v6713
    %7042 = vmatprep.subr.bf16.mxu0 0
    %7043 = vmatpush1.bf16.msra.mxu0 %v6712
    %7044 = vmatprep.subr.bf16.mxu0 0
    %7045 = vmatpush1.bf16.msra.mxu0 %v6711
    %7046 = vmatprep.subr.bf16.mxu0 0
    %7047 = vmatpush1.bf16.msra.mxu0 %v6710
    %7048 = vmatprep.subr.bf16.mxu0 0
    %7049 = vmatpush1.bf16.msra.mxu0 %v6709
    %7050 = vmatprep.subr.bf16.mxu0 0
    %7051 = vmatpush1.bf16.msra.mxu0 %v6708
    %7052 = vmatprep.subr.bf16.mxu0 0
    %7053 = vmatpush2.bf16.msra.mxu0 %v6723
    %7054 = vmatprep.subr.bf16.mxu0 0
    %7055 = vmatpush2.bf16.msra.mxu0 %v6722
    %7056 = vmatprep.subr.bf16.mxu0 0
    %7057 = vmatpush2.bf16.msra.mxu0 %v6721
    %7058 = vmatprep.subr.bf16.mxu0 0
    %7059 = vmatpush2.bf16.msra.mxu0 %v6720
    %7060 = vmatprep.subr.bf16.mxu0 0
    %7061 = vmatpush2.bf16.msra.mxu0 %v6719
    %7062 = vmatprep.subr.bf16.mxu0 0
    %7063 = vmatpush2.bf16.msra.mxu0 %v6718
    %7064 = vmatprep.subr.bf16.mxu0 0
    %7065 = vmatpush2.bf16.msra.mxu0 %v6717
    %7066 = vmatprep.subr.bf16.mxu0 0
    %7067 = vmatpush2.bf16.msra.mxu0 %v6716
    %7068 = vmatprep.mubr.bf16.mxu0 %v5876
    %7069 = vmatmul.mubr.bf16.gmra.mxu0 %v5875
    %v7070 = vpop.f32.mrf.mxu0
    %v7071 = vadd.f32 %v7031, %v7070
    %v7072 = vpop.f32.mrf.mxu0
    %v7073 = vpop.f32.mrf.mxu0
    %v7074 = vpop.f32.mrf.mxu0
    %7075 = vdwg.mxu0
    %7076 = vmatprep.subr.bf16.mxu0 0
    %7077 = vmatpush1.bf16.msra.mxu0 %v6731
    %7078 = vmatprep.subr.bf16.mxu0 0
    %7079 = vmatpush1.bf16.msra.mxu0 %v6730
    %7080 = vmatprep.subr.bf16.mxu0 0
    %7081 = vmatpush1.bf16.msra.mxu0 %v6729
    %7082 = vmatprep.subr.bf16.mxu0 0
    %7083 = vmatpush1.bf16.msra.mxu0 %v6728
    %7084 = vmatprep.subr.bf16.mxu0 0
    %7085 = vmatpush1.bf16.msra.mxu0 %v6727
    %7086 = vmatprep.subr.bf16.mxu0 0
    %7087 = vmatpush1.bf16.msra.mxu0 %v6726
    %7088 = vmatprep.subr.bf16.mxu0 0
    %7089 = vmatpush1.bf16.msra.mxu0 %v6725
    %7090 = vmatprep.subr.bf16.mxu0 0
    %7091 = vmatpush1.bf16.msra.mxu0 %v6724
    %7092 = vmatprep.subr.bf16.mxu0 0
    %7093 = vmatpush2.bf16.msra.mxu0 %v6739
    %7094 = vmatprep.subr.bf16.mxu0 0
    %7095 = vmatpush2.bf16.msra.mxu0 %v6738
    %7096 = vmatprep.subr.bf16.mxu0 0
    %7097 = vmatpush2.bf16.msra.mxu0 %v6737
    %7098 = vmatprep.subr.bf16.mxu0 0
    %7099 = vmatpush2.bf16.msra.mxu0 %v6736
    %7100 = vmatprep.subr.bf16.mxu0 0
    %7101 = vmatpush2.bf16.msra.mxu0 %v6735
    %7102 = vmatprep.subr.bf16.mxu0 0
    %7103 = vmatpush2.bf16.msra.mxu0 %v6734
    %7104 = vmatprep.subr.bf16.mxu0 0
    %7105 = vmatpush2.bf16.msra.mxu0 %v6733
    %7106 = vmatprep.subr.bf16.mxu0 0
    %7107 = vmatpush2.bf16.msra.mxu0 %v6732
    %7108 = vmatprep.mubr.bf16.mxu0 %v5878
    %7109 = vmatmul.mubr.bf16.gmra.mxu0 %v5877
    %v7110 = vpop.f32.mrf.mxu0
    %v7111 = vadd.f32 %v7071, %v7110
    %v7112 = vpop.f32.mrf.mxu0
    %v7113 = vpop.f32.mrf.mxu0
    %v7114 = vpop.f32.mrf.mxu0
    %7115 = vdwg.mxu0
    %7116 = vmatprep.subr.bf16.mxu0 0
    %7117 = vmatpush1.bf16.msra.mxu0 %v6747
    %7118 = vmatprep.subr.bf16.mxu0 0
    %7119 = vmatpush1.bf16.msra.mxu0 %v6746
    %7120 = vmatprep.subr.bf16.mxu0 0
    %7121 = vmatpush1.bf16.msra.mxu0 %v6745
    %7122 = vmatprep.subr.bf16.mxu0 0
    %7123 = vmatpush1.bf16.msra.mxu0 %v6744
    %7124 = vmatprep.subr.bf16.mxu0 0
    %7125 = vmatpush1.bf16.msra.mxu0 %v6743
    %7126 = vmatprep.subr.bf16.mxu0 0
    %7127 = vmatpush1.bf16.msra.mxu0 %v6742
    %7128 = vmatprep.subr.bf16.mxu0 0
    %7129 = vmatpush1.bf16.msra.mxu0 %v6741
    %7130 = vmatprep.subr.bf16.mxu0 0
    %7131 = vmatpush1.bf16.msra.mxu0 %v6740
    %7132 = vmatprep.subr.bf16.mxu0 0
    %7133 = vmatpush2.bf16.msra.mxu0 %v6755
    %7134 = vmatprep.subr.bf16.mxu0 0
    %7135 = vmatpush2.bf16.msra.mxu0 %v6754
    %7136 = vmatprep.subr.bf16.mxu0 0
    %7137 = vmatpush2.bf16.msra.mxu0 %v6753
    %7138 = vmatprep.subr.bf16.mxu0 0
    %7139 = vmatpush2.bf16.msra.mxu0 %v6752
    %7140 = vmatprep.subr.bf16.mxu0 0
    %7141 = vmatpush2.bf16.msra.mxu0 %v6751
    %7142 = vmatprep.subr.bf16.mxu0 0
    %7143 = vmatpush2.bf16.msra.mxu0 %v6750
    %7144 = vmatprep.subr.bf16.mxu0 0
    %7145 = vmatpush2.bf16.msra.mxu0 %v6749
    %7146 = vmatprep.subr.bf16.mxu0 0
    %7147 = vmatpush2.bf16.msra.mxu0 %v6748
    %7148 = vmatprep.mubr.bf16.mxu0 %v5880
    %7149 = vmatmul.mubr.bf16.gmra.mxu0 %v5879
    %v7150 = vpop.f32.mrf.mxu0
    %v7151 = vadd.f32 %v7111, %v7150
    %v7152 = vpop.f32.mrf.mxu0
    %v7153 = vpop.f32.mrf.mxu0
    %v7154 = vpop.f32.mrf.mxu0
    %7155 = vdwg.mxu0
    %7156 = vmatprep.subr.bf16.mxu0 0
    %7157 = vmatpush1.bf16.msra.mxu0 %v6763
    %7158 = vmatprep.subr.bf16.mxu0 0
    %7159 = vmatpush1.bf16.msra.mxu0 %v6762
    %7160 = vmatprep.subr.bf16.mxu0 0
    %7161 = vmatpush1.bf16.msra.mxu0 %v6761
    %7162 = vmatprep.subr.bf16.mxu0 0
    %7163 = vmatpush1.bf16.msra.mxu0 %v6760
    %7164 = vmatprep.subr.bf16.mxu0 0
    %7165 = vmatpush1.bf16.msra.mxu0 %v6759
    %7166 = vmatprep.subr.bf16.mxu0 0
    %7167 = vmatpush1.bf16.msra.mxu0 %v6758
    %7168 = vmatprep.subr.bf16.mxu0 0
    %7169 = vmatpush1.bf16.msra.mxu0 %v6757
    %7170 = vmatprep.subr.bf16.mxu0 0
    %7171 = vmatpush1.bf16.msra.mxu0 %v6756
    %7172 = vmatprep.subr.bf16.mxu0 0
    %7173 = vmatpush2.bf16.msra.mxu0 %v6771
    %7174 = vmatprep.subr.bf16.mxu0 0
    %7175 = vmatpush2.bf16.msra.mxu0 %v6770
    %7176 = vmatprep.subr.bf16.mxu0 0
    %7177 = vmatpush2.bf16.msra.mxu0 %v6769
    %7178 = vmatprep.subr.bf16.mxu0 0
    %7179 = vmatpush2.bf16.msra.mxu0 %v6768
    %7180 = vmatprep.subr.bf16.mxu0 0
    %7181 = vmatpush2.bf16.msra.mxu0 %v6767
    %7182 = vmatprep.subr.bf16.mxu0 0
    %7183 = vmatpush2.bf16.msra.mxu0 %v6766
    %7184 = vmatprep.subr.bf16.mxu0 0
    %7185 = vmatpush2.bf16.msra.mxu0 %v6765
    %7186 = vmatprep.subr.bf16.mxu0 0
    %7187 = vmatpush2.bf16.msra.mxu0 %v6764
    %7188 = vmatprep.mubr.bf16.mxu0 %v5882
    %7189 = vmatmul.mubr.bf16.gmra.mxu0 %v5881
    %v7190 = vpop.f32.mrf.mxu0
    %v7191 = vadd.f32 %v7151, %v7190
    %v7192 = vpop.f32.mrf.mxu0
    %v7193 = vpop.f32.mrf.mxu0
    %v7194 = vpop.f32.mrf.mxu0
    %7195 = vdwg.mxu0
    %7196 = vmatprep.subr.bf16.mxu0 0
    %7197 = vmatpush1.bf16.msra.mxu0 %v6779
    %7198 = vmatprep.subr.bf16.mxu0 0
    %7199 = vmatpush1.bf16.msra.mxu0 %v6778
    %7200 = vmatprep.subr.bf16.mxu0 0
    %7201 = vmatpush1.bf16.msra.mxu0 %v6777
    %7202 = vmatprep.subr.bf16.mxu0 0
    %7203 = vmatpush1.bf16.msra.mxu0 %v6776
    %7204 = vmatprep.subr.bf16.mxu0 0
    %7205 = vmatpush1.bf16.msra.mxu0 %v6775
    %7206 = vmatprep.subr.bf16.mxu0 0
    %7207 = vmatpush1.bf16.msra.mxu0 %v6774
    %7208 = vmatprep.subr.bf16.mxu0 0
    %7209 = vmatpush1.bf16.msra.mxu0 %v6773
    %7210 = vmatprep.subr.bf16.mxu0 0
    %7211 = vmatpush1.bf16.msra.mxu0 %v6772
    %7212 = vmatprep.subr.bf16.mxu0 0
    %7213 = vmatpush2.bf16.msra.mxu0 %v6787
    %7214 = vmatprep.subr.bf16.mxu0 0
    %7215 = vmatpush2.bf16.msra.mxu0 %v6786
    %7216 = vmatprep.subr.bf16.mxu0 0
    %7217 = vmatpush2.bf16.msra.mxu0 %v6785
    %7218 = vmatprep.subr.bf16.mxu0 0
    %7219 = vmatpush2.bf16.msra.mxu0 %v6784
    %7220 = vmatprep.subr.bf16.mxu0 0
    %7221 = vmatpush2.bf16.msra.mxu0 %v6783
    %7222 = vmatprep.subr.bf16.mxu0 0
    %7223 = vmatpush2.bf16.msra.mxu0 %v6782
    %7224 = vmatprep.subr.bf16.mxu0 0
    %7225 = vmatpush2.bf16.msra.mxu0 %v6781
    %7226 = vmatprep.subr.bf16.mxu0 0
    %7227 = vmatpush2.bf16.msra.mxu0 %v6780
    %7228 = vmatprep.mubr.bf16.mxu0 %v5884
    %7229 = vmatmul.mubr.bf16.gmra.mxu0 %v5883
    %v7230 = vpop.f32.mrf.mxu0
    %v7231 = vadd.f32 %v7191, %v7230
    %v7232 = vpop.f32.mrf.mxu0
    %v7233 = vpop.f32.mrf.mxu0
    %v7234 = vpop.f32.mrf.mxu0
    %7235 = vdwg.mxu0
    %7236 = vst [vmem:[#allocation14] sm:$0xff] %v7231
    // Predicated region
    $region58: #{tpu_custom_call.1} parent=1 // pred_check
      _
    $region59: #{tpu_custom_call.1} parent=1 // pred_check_branch
      %7238 = sbr.rel (0) target = $region61
    $region60: #{tpu_custom_call.1} parent=1 // pred_region
      %s7240 = ssub.s32 128, 128
      %7241 = vsyncadd [#allocation4], %s7240
      %s7243 = sshll.u32 [#allocation14], 4
      %s7244 = int_to_ptr.vmem [resolvable:$true] %s7243
      %7246 = dma.vmem_to_hbm [thread:$0]  %s7244, 128, %s7, [#allocation4]
    $region61: #{tpu_custom_call.1} parent=1 // pred_fallthru
      _
    // Predicated region
    $region62: #{tpu_custom_call.1} parent=1 // pred_check
      _
    $region63: #{tpu_custom_call.1} parent=1 // pred_check_branch
      %7248 = sbr.rel (0) target = $region65
    $region64: #{tpu_custom_call.1} parent=1 // pred_region
      %7249 = dma.done [#allocation4], 128
    $region65: #{tpu_custom_call.1} parent=1 // pred_fallthru
      _
    %7250 = vsyncpa [#allocation3], 1
    %7251 = vsyncpa [#allocation6], 1
    %7252 = vsyncpa [#allocation9], 1
    %7253 = vsyncpa [#allocation12], 1
    %7254 = vsyncpa [#allocation4], 1

</llo_original>
